<compile_context>
chip_gen: v6e
topology: v6e:2x2x1
jax: 0.10.0
libtpu: 0.0.40
codegen_flags: <defaults>
</compile_context>

<pallas_src>
import functools

import jax
import jax.numpy as jnp
import numpy as np
from jax import lax
from jax.experimental import pallas as pl
from jax.experimental.pallas import tpu as pltpu


def _resample3d_kernel(in_hbm, src_ref, out_ref, slab_ref, copy_sem, *,
                       in_dhw, s_chunk, n_chunks, p_tile, bilinear,
                       compute_dtype):
    D, H, W = in_dhw
    C = out_ref.shape[1]

    b = pl.program_id(0)

    # Load the (padded, chunk-major) input slab for batch b into VMEM once per
    # batch.  The inner grid axis is "arbitrary" (sequential per core), so
    # p == 0 is the first inner step executed for every batch.
    @pl.when(pl.program_id(1) == 0)
    def _load_slab():
        cp = pltpu.make_async_copy(in_hbm.at[b], slab_ref, copy_sem)
        cp.start()
        cp.wait()

    src = src_ref[0]                       # (3, p_tile) f32 absolute coords
    xs = src[0:1, :]
    ys = src[1:2, :]
    zs = src[2:3, :]

    zero = jnp.zeros((), compute_dtype)

    # Corner flat indices + trilinear weights, each (1, p_tile).
    if bilinear:
        x0f = jnp.floor(xs)
        y0f = jnp.floor(ys)
        z0f = jnp.floor(zs)
        wx = xs - x0f
        wy = ys - y0f
        wz = zs - z0f
        x0i = x0f.astype(jnp.int32)
        y0i = y0f.astype(jnp.int32)
        z0i = z0f.astype(jnp.int32)
        x0 = jnp.clip(x0i, 0, W - 1)
        x1 = jnp.clip(x0i + 1, 0, W - 1)
        y0 = jnp.clip(y0i, 0, H - 1)
        y1 = jnp.clip(y0i + 1, 0, H - 1)
        z0 = jnp.clip(z0i, 0, D - 1)
        z1 = jnp.clip(z0i + 1, 0, D - 1)
        corners = []
        for zc, wz_ in ((z0, 1.0 - wz), (z1, wz)):
            for yc, wy_ in ((y0, 1.0 - wy), (y1, wy)):
                for xc, wx_ in ((x0, 1.0 - wx), (x1, wx)):
                    idx = zc * (H * W) + yc * W + xc
                    w = (wz_ * wy_ * wx_).astype(compute_dtype)
                    corners.append((idx, w))
    else:
        # Nearest: round-half-up (matches the original CUDA op; may differ
        # from round-half-to-even at exact .5 ties).
        xn = jnp.clip(jnp.floor(xs + 0.5).astype(jnp.int32), 0, W - 1)
        yn = jnp.clip(jnp.floor(ys + 0.5).astype(jnp.int32), 0, H - 1)
        zn = jnp.clip(jnp.floor(zs + 0.5).astype(jnp.int32), 0, D - 1)
        idx = zn * (H * W) + yn * W + xn
        corners = [(idx, jnp.ones((1, p_tile), compute_dtype))]

    # Hoisted iota, shared by every chunk and every corner.
    base_iota = lax.broadcasted_iota(jnp.int32, (s_chunk, p_tile), 0)

    def body(c, acc):
        s_idx = base_iota + c * s_chunk        # flat source ids of this chunk
        # Combined weight-folded one-hot -> a single matmul per chunk.
        idx0, w0 = corners[0]
        m = jnp.where(s_idx == idx0, w0, zero)
        for idx_c, w_c in corners[1:]:
            m = m + jnp.where(s_idx == idx_c, w_c, zero)
        chunk = slab_ref[c]                    # (C, s_chunk), compute_dtype
        return acc + jnp.dot(chunk, m, preferred_element_type=jnp.float32)

    acc = lax.fori_loop(0, n_chunks, body,
                        jnp.zeros((C, p_tile), jnp.float32))

    out_ref[0] = acc.astype(out_ref.dtype)


def resample3d(inp, flow, kernel_size=1, bilinear=True, *,
               p_tile=256, s_chunk=512, compute_dtype=jnp.bfloat16):
    """Pallas TPU forward of Resample3d.

    inp:  (N, C, D, H, W)
    flow: (N, 3, D', H', W') or (N, D', H', W', 3)
    returns (N, C, D', H', W') in inp.dtype

    p_tile: output-voxel tile width (multiple of 128; 256 for v6e/v7x,
            128 recommended on v5e).
    compute_dtype: dtype of the resident input slab and of the combined
            weight-folded one-hot.  bf16 = fast MXU path / half VMEM;
            float32 = full precision.
    """
    # TODO(synk): kernel_size > 1 window accumulation not implemented.
    assert kernel_size == 1
    assert p_tile % 128 == 0 and s_chunk % 128 == 0

    if flow.shape[-1] == 3:
        flow = jnp.transpose(flow, (0, 4, 1, 2, 3))

    N, C, D, H, W = inp.shape
    Nf, three, Do, Ho, Wo = flow.shape
    assert Nf == N and three == 3
    S = D * H * W
    P = Do * Ho * Wo
    assert S < 2 ** 31, "flat volume index must fit in int32"

    n_chunks = -(-S // s_chunk)
    S_pad = n_chunks * s_chunk
    n_p = -(-P // p_tile)
    P_pad = n_p * p_tile

    # Input: (N, C, S) -> pad S -> chunk-major (N, n_chunks, C, s_chunk).
    x_flat = inp.reshape(N, C, S).astype(compute_dtype)
    if S_pad != S:
        x_flat = jnp.pad(x_flat, ((0, 0), (0, 0), (0, S_pad - S)))
    x_chunks = x_flat.reshape(N, C, n_chunks, s_chunk).transpose(0, 2, 1, 3)

    # Absolute source coordinates (x, y, z) = output meshgrid + flow, so the
    # kernel never does the int div/mod coordinate decomposition.
    zg, yg, xg = jnp.meshgrid(jnp.arange(Do, dtype=jnp.float32),
                              jnp.arange(Ho, dtype=jnp.float32),
                              jnp.arange(Wo, dtype=jnp.float32),
                              indexing="ij")
    base = jnp.stack([xg, yg, zg], axis=0).reshape(1, 3, P)
    src = flow.astype(jnp.float32).reshape(N, 3, P) + base
    if P_pad != P:
        src = jnp.pad(src, ((0, 0), (0, 0), (0, P_pad - P)))

    kernel = functools.partial(
        _resample3d_kernel,
        in_dhw=(D, H, W),
        s_chunk=s_chunk,
        n_chunks=n_chunks,
        p_tile=p_tile,
        bilinear=bilinear,
        compute_dtype=compute_dtype,
    )

    # VMEM budget: single-buffered slab + double-buffered coord/out tiles +
    # per-chunk combined one-hot working set, with headroom.
    itemsize = jnp.dtype(compute_dtype).itemsize
    c_pad = -(-C // 8) * 8
    slab_bytes = n_chunks * c_pad * s_chunk * itemsize
    work_bytes = (2 * 8 * p_tile * 4          # coord tiles (3 rows pad to 8)
                  + 2 * c_pad * p_tile * 4    # output tiles
                  + 6 * s_chunk * p_tile * 4  # combined one-hot + temporaries
                  + 2 * c_pad * p_tile * 4)   # f32 accumulator
    vmem_limit = int(1.25 * (slab_bytes + work_bytes)) + (4 << 20)
    vmem_limit = max(32 << 20, min(vmem_limit, 128 << 20))

    out_flat = pl.pallas_call(
        kernel,
        out_shape=jax.ShapeDtypeStruct((N, C, P_pad), inp.dtype),
        grid_spec=pltpu.PrefetchScalarGridSpec(
            num_scalar_prefetch=0,
            grid=(N, P_pad // p_tile),
            in_specs=[
                pl.BlockSpec(memory_space=pl.ANY),   # full input stays in HBM
                pl.BlockSpec((1, 3, p_tile), lambda b, p: (b, 0, p)),
            ],
            out_specs=pl.BlockSpec((1, C, p_tile), lambda b, p: (b, 0, p)),
            scratch_shapes=[
                pltpu.VMEM((n_chunks, C, s_chunk), compute_dtype),
                pltpu.SemaphoreType.DMA(()),
            ],
        ),
        compiler_params=pltpu.CompilerParams(
            # Batch shards across megacores; inner axis stays sequential so
            # the per-batch slab load at p == 0 runs on the consuming core.
            dimension_semantics=("parallel", "arbitrary"),
            vmem_limit_bytes=vmem_limit,
        ),
    )(x_chunks, src)

    return out_flat[:, :, :P].reshape(N, C, Do, Ho, Wo)


def resample3d_ref(inp, flow, bilinear=True):
    """Pure-JAX reference (same semantics) for correctness checking."""
    if flow.shape[-1] == 3:
        flow = jnp.transpose(flow, (0, 4, 1, 2, 3))
    N, C, D, H, W = inp.shape
    _, _, Do, Ho, Wo = flow.shape
    zg, yg, xg = jnp.meshgrid(jnp.arange(Do), jnp.arange(Ho), jnp.arange(Wo),
                              indexing="ij")
    xs = xg[None].astype(jnp.float32) + flow[:, 0]
    ys = yg[None].astype(jnp.float32) + flow[:, 1]
    zs = zg[None].astype(jnp.float32) + flow[:, 2]

    def sample(img, zi, yi, xi):          # img (C,D,H,W), idx (Do,Ho,Wo)
        return img[:, zi, yi, xi]          # -> (C, Do, Ho, Wo)

    if bilinear:
        x0f = jnp.floor(xs); y0f = jnp.floor(ys); z0f = jnp.floor(zs)
        wx = xs - x0f; wy = ys - y0f; wz = zs - z0f
        x0 = jnp.clip(x0f.astype(jnp.int32), 0, W - 1)
        x1 = jnp.clip(x0f.astype(jnp.int32) + 1, 0, W - 1)
        y0 = jnp.clip(y0f.astype(jnp.int32), 0, H - 1)
        y1 = jnp.clip(y0f.astype(jnp.int32) + 1, 0, H - 1)
        z0 = jnp.clip(z0f.astype(jnp.int32), 0, D - 1)
        z1 = jnp.clip(z0f.astype(jnp.int32) + 1, 0, D - 1)
        out = jnp.zeros((N, C, Do, Ho, Wo), jnp.float32)
        for zc, wz_ in ((z0, 1.0 - wz), (z1, wz)):
            for yc, wy_ in ((y0, 1.0 - wy), (y1, wy)):
                for xc, wx_ in ((x0, 1.0 - wx), (x1, wx)):
                    g = jax.vmap(sample)(inp, zc, yc, xc)
                    out = out + (wz_ * wy_ * wx_)[:, None] * g
        return out
    else:
        xn = jnp.clip(jnp.floor(xs + 0.5).astype(jnp.int32), 0, W - 1)
        yn = jnp.clip(jnp.floor(ys + 0.5).astype(jnp.int32), 0, H - 1)
        zn = jnp.clip(jnp.floor(zs + 0.5).astype(jnp.int32), 0, D - 1)
        return jax.vmap(sample)(inp, zn, yn, xn)


if __name__ == "__main__":
    key = jax.random.PRNGKey(0)
    k1, k2 = jax.random.split(key)

    N, C, D, H, W = 2, 4, 8, 16, 16
    inp = jax.random.normal(k1, (N, C, D, H, W), dtype=jnp.float32)
    # Flow displacements of a few voxels; channel order (dx, dy, dz).
    flow = 2.5 * jax.random.normal(k2, (N, 3, D, H, W), dtype=jnp.float32)

    ref = resample3d_ref(inp, flow, bilinear=True)

    # Full-precision path: f32 slab + f32 combined one-hot.
    out_f32 = resample3d(inp, flow, kernel_size=1, bilinear=True,
                         compute_dtype=jnp.float32)
    out_f32 = jax.block_until_ready(out_f32)
    np.testing.assert_allclose(np.asarray(out_f32), np.asarray(ref),
                               rtol=1e-3, atol=1e-3)
    assert out_f32.shape == (N, C, D, H, W)

    # Fast (default) path: bf16 slab + bf16 combined one-hot, f32 accumulate.
    out_bf16 = resample3d(inp, flow, kernel_size=1, bilinear=True)
    out_bf16 = jax.block_until_ready(out_bf16)
    np.testing.assert_allclose(np.asarray(out_bf16), np.asarray(ref),
                               rtol=3e-2, atol=3e-2)

    # Nearest-neighbour mode.
    out_nn = resample3d(inp, flow, kernel_size=1, bilinear=False,
                        compute_dtype=jnp.float32)
    out_nn = jax.block_until_ready(out_nn)
    ref_nn = resample3d_ref(inp, flow, bilinear=False)
    np.testing.assert_allclose(np.asarray(out_nn), np.asarray(ref_nn),
                               rtol=1e-5, atol=1e-5)

    print("KERNEL_OK")
</pallas_src>

<mosaic_0001>
module attributes {stable_mosaic.version = 11 : i64} {
  func.func @_resample3d_kernel(%arg0: i32, %arg1: i32, %arg2: memref<2x4x4x512xf32, #tpu.memory_space<any>>, %arg3: memref<1x3x256xf32, #tpu.memory_space<vmem>>, %arg4: memref<1x4x256xf32, #tpu.memory_space<vmem>>, %arg5: memref<4x4x512xf32, #tpu.memory_space<vmem>>, %arg6: memref<!tpu.dma_semaphore, #tpu.memory_space<semaphore_mem>>) attributes {dimension_semantics = [#tpu.dimension_semantics<parallel>, #tpu.dimension_semantics<arbitrary>], iteration_bounds = array<i64: 2, 8>, scalar_prefetch = 0 : i64, scratch_operands = 2 : i64, tpu.core_type = #tpu.core_type<tc>, window_params = [{}, {transform_indices = @transform_1, window_bounds = array<i64: 1, 3, 256>}, {transform_indices = @transform_2, window_bounds = array<i64: 1, 4, 256>}]} {
    %c0_i32 = arith.constant 0 : i32
    %0 = arith.cmpi eq, %arg1, %c0_i32 : i32
    %1 = arith.extui %0 : i1 to i32
    %c0_i32_0 = arith.constant 0 : i32
    %2 = arith.cmpi ne, %1, %c0_i32_0 : i32
    scf.if %2 {
      %c0_i32_43 = arith.constant 0 : i32
      %c0_i32_44 = arith.constant 0 : i32
      %c0_i32_45 = arith.constant 0 : i32
      %132 = tpu.memref_slice %arg2[%arg0, %c0_i32_43, %c0_i32_44, %c0_i32_45] : memref<2x4x4x512xf32, #tpu.memory_space<any>> -> memref<1x4x4x512xf32, #tpu.memory_space<any>>
      %133 = tpu.memref_squeeze %132 : memref<1x4x4x512xf32, #tpu.memory_space<any>> -> memref<4x4x512xf32, #tpu.memory_space<any>>
      tpu.enqueue_dma source(%133 : memref<4x4x512xf32, #tpu.memory_space<any>>) target(%arg5 : memref<4x4x512xf32, #tpu.memory_space<vmem>>) target_semaphore(%arg6 : memref<!tpu.dma_semaphore, #tpu.memory_space<semaphore_mem>>)
      %c0_i32_46 = arith.constant 0 : i32
      %c0_i32_47 = arith.constant 0 : i32
      %c0_i32_48 = arith.constant 0 : i32
      %134 = tpu.memref_slice %arg2[%arg0, %c0_i32_46, %c0_i32_47, %c0_i32_48] : memref<2x4x4x512xf32, #tpu.memory_space<any>> -> memref<1x4x4x512xf32, #tpu.memory_space<any>>
      %135 = tpu.memref_squeeze %134 : memref<1x4x4x512xf32, #tpu.memory_space<any>> -> memref<4x4x512xf32, #tpu.memory_space<any>>
      tpu.wait_dma2 semaphore(%arg6 : memref<!tpu.dma_semaphore, #tpu.memory_space<semaphore_mem>>) src(%135 : memref<4x4x512xf32, #tpu.memory_space<any>>) dst(%arg5 : memref<4x4x512xf32, #tpu.memory_space<vmem>>)
    } else {
    }
    %c0 = arith.constant 0 : index
    %c0_1 = arith.constant 0 : index
    %c0_2 = arith.constant 0 : index
    %3 = vector.load %arg3[%c0, %c0_1, %c0_2] : memref<1x3x256xf32, #tpu.memory_space<vmem>>, vector<1x3x256xf32>
    %4 = vector.shape_cast %3 : vector<1x3x256xf32> to vector<3x256xf32>
    %5 = vector.extract_strided_slice %4 {offsets = [0, 0], sizes = [1, 256], strides = [1, 1]} : vector<3x256xf32> to vector<1x256xf32>
    %6 = vector.extract_strided_slice %4 {offsets = [1, 0], sizes = [1, 256], strides = [1, 1]} : vector<3x256xf32> to vector<1x256xf32>
    %7 = vector.extract_strided_slice %4 {offsets = [2, 0], sizes = [1, 256], strides = [1, 1]} : vector<3x256xf32> to vector<1x256xf32>
    %8 = math.floor %5 : vector<1x256xf32>
    %9 = math.floor %6 : vector<1x256xf32>
    %10 = math.floor %7 : vector<1x256xf32>
    %11 = arith.subf %5, %8 : vector<1x256xf32>
    %12 = arith.subf %6, %9 : vector<1x256xf32>
    %13 = arith.subf %7, %10 : vector<1x256xf32>
    %14 = arith.fptosi %8 : vector<1x256xf32> to vector<1x256xi32>
    %15 = arith.fptosi %9 : vector<1x256xf32> to vector<1x256xi32>
    %16 = arith.fptosi %10 : vector<1x256xf32> to vector<1x256xi32>
    %c0_i32_3 = arith.constant 0 : i32
    %c15_i32 = arith.constant 15 : i32
    %17 = vector.broadcast %c0_i32_3 : i32 to vector<1x256xi32>
    %18 = arith.maxsi %17, %14 : vector<1x256xi32>
    %19 = vector.broadcast %c15_i32 : i32 to vector<1x256xi32>
    %20 = arith.minsi %19, %18 : vector<1x256xi32>
    %c1_i32 = arith.constant 1 : i32
    %21 = vector.broadcast %c1_i32 : i32 to vector<1x256xi32>
    %22 = arith.addi %14, %21 : vector<1x256xi32>
    %c0_i32_4 = arith.constant 0 : i32
    %c15_i32_5 = arith.constant 15 : i32
    %23 = vector.broadcast %c0_i32_4 : i32 to vector<1x256xi32>
    %24 = arith.maxsi %23, %22 : vector<1x256xi32>
    %25 = vector.broadcast %c15_i32_5 : i32 to vector<1x256xi32>
    %26 = arith.minsi %25, %24 : vector<1x256xi32>
    %c0_i32_6 = arith.constant 0 : i32
    %c15_i32_7 = arith.constant 15 : i32
    %27 = vector.broadcast %c0_i32_6 : i32 to vector<1x256xi32>
    %28 = arith.maxsi %27, %15 : vector<1x256xi32>
    %29 = vector.broadcast %c15_i32_7 : i32 to vector<1x256xi32>
    %30 = arith.minsi %29, %28 : vector<1x256xi32>
    %c1_i32_8 = arith.constant 1 : i32
    %31 = vector.broadcast %c1_i32_8 : i32 to vector<1x256xi32>
    %32 = arith.addi %15, %31 : vector<1x256xi32>
    %c0_i32_9 = arith.constant 0 : i32
    %c15_i32_10 = arith.constant 15 : i32
    %33 = vector.broadcast %c0_i32_9 : i32 to vector<1x256xi32>
    %34 = arith.maxsi %33, %32 : vector<1x256xi32>
    %35 = vector.broadcast %c15_i32_10 : i32 to vector<1x256xi32>
    %36 = arith.minsi %35, %34 : vector<1x256xi32>
    %c0_i32_11 = arith.constant 0 : i32
    %c7_i32 = arith.constant 7 : i32
    %37 = vector.broadcast %c0_i32_11 : i32 to vector<1x256xi32>
    %38 = arith.maxsi %37, %16 : vector<1x256xi32>
    %39 = vector.broadcast %c7_i32 : i32 to vector<1x256xi32>
    %40 = arith.minsi %39, %38 : vector<1x256xi32>
    %c1_i32_12 = arith.constant 1 : i32
    %41 = vector.broadcast %c1_i32_12 : i32 to vector<1x256xi32>
    %42 = arith.addi %16, %41 : vector<1x256xi32>
    %c0_i32_13 = arith.constant 0 : i32
    %c7_i32_14 = arith.constant 7 : i32
    %43 = vector.broadcast %c0_i32_13 : i32 to vector<1x256xi32>
    %44 = arith.maxsi %43, %42 : vector<1x256xi32>
    %45 = vector.broadcast %c7_i32_14 : i32 to vector<1x256xi32>
    %46 = arith.minsi %45, %44 : vector<1x256xi32>
    %cst = arith.constant 1.000000e+00 : f32
    %47 = vector.broadcast %cst : f32 to vector<1x256xf32>
    %48 = arith.subf %47, %13 : vector<1x256xf32>
    %cst_15 = arith.constant 1.000000e+00 : f32
    %49 = vector.broadcast %cst_15 : f32 to vector<1x256xf32>
    %50 = arith.subf %49, %12 : vector<1x256xf32>
    %cst_16 = arith.constant 1.000000e+00 : f32
    %51 = vector.broadcast %cst_16 : f32 to vector<1x256xf32>
    %52 = arith.subf %51, %11 : vector<1x256xf32>
    %c256_i32 = arith.constant 256 : i32
    %53 = vector.broadcast %c256_i32 : i32 to vector<1x256xi32>
    %54 = arith.muli %40, %53 : vector<1x256xi32>
    %c16_i32 = arith.constant 16 : i32
    %55 = vector.broadcast %c16_i32 : i32 to vector<1x256xi32>
    %56 = arith.muli %30, %55 : vector<1x256xi32>
    %57 = arith.addi %54, %56 : vector<1x256xi32>
    %58 = arith.addi %57, %20 : vector<1x256xi32>
    %59 = arith.mulf %48, %50 : vector<1x256xf32>
    %60 = arith.mulf %59, %52 : vector<1x256xf32>
    %c256_i32_17 = arith.constant 256 : i32
    %61 = vector.broadcast %c256_i32_17 : i32 to vector<1x256xi32>
    %62 = arith.muli %40, %61 : vector<1x256xi32>
    %c16_i32_18 = arith.constant 16 : i32
    %63 = vector.broadcast %c16_i32_18 : i32 to vector<1x256xi32>
    %64 = arith.muli %30, %63 : vector<1x256xi32>
    %65 = arith.addi %62, %64 : vector<1x256xi32>
    %66 = arith.addi %65, %26 : vector<1x256xi32>
    %67 = arith.mulf %48, %50 : vector<1x256xf32>
    %68 = arith.mulf %67, %11 : vector<1x256xf32>
    %cst_19 = arith.constant 1.000000e+00 : f32
    %69 = vector.broadcast %cst_19 : f32 to vector<1x256xf32>
    %70 = arith.subf %69, %11 : vector<1x256xf32>
    %c256_i32_20 = arith.constant 256 : i32
    %71 = vector.broadcast %c256_i32_20 : i32 to vector<1x256xi32>
    %72 = arith.muli %40, %71 : vector<1x256xi32>
    %c16_i32_21 = arith.constant 16 : i32
    %73 = vector.broadcast %c16_i32_21 : i32 to vector<1x256xi32>
    %74 = arith.muli %36, %73 : vector<1x256xi32>
    %75 = arith.addi %72, %74 : vector<1x256xi32>
    %76 = arith.addi %75, %20 : vector<1x256xi32>
    %77 = arith.mulf %48, %12 : vector<1x256xf32>
    %78 = arith.mulf %77, %70 : vector<1x256xf32>
    %c256_i32_22 = arith.constant 256 : i32
    %79 = vector.broadcast %c256_i32_22 : i32 to vector<1x256xi32>
    %80 = arith.muli %40, %79 : vector<1x256xi32>
    %c16_i32_23 = arith.constant 16 : i32
    %81 = vector.broadcast %c16_i32_23 : i32 to vector<1x256xi32>
    %82 = arith.muli %36, %81 : vector<1x256xi32>
    %83 = arith.addi %80, %82 : vector<1x256xi32>
    %84 = arith.addi %83, %26 : vector<1x256xi32>
    %85 = arith.mulf %48, %12 : vector<1x256xf32>
    %86 = arith.mulf %85, %11 : vector<1x256xf32>
    %cst_24 = arith.constant 1.000000e+00 : f32
    %87 = vector.broadcast %cst_24 : f32 to vector<1x256xf32>
    %88 = arith.subf %87, %12 : vector<1x256xf32>
    %cst_25 = arith.constant 1.000000e+00 : f32
    %89 = vector.broadcast %cst_25 : f32 to vector<1x256xf32>
    %90 = arith.subf %89, %11 : vector<1x256xf32>
    %c256_i32_26 = arith.constant 256 : i32
    %91 = vector.broadcast %c256_i32_26 : i32 to vector<1x256xi32>
    %92 = arith.muli %46, %91 : vector<1x256xi32>
    %c16_i32_27 = arith.constant 16 : i32
    %93 = vector.broadcast %c16_i32_27 : i32 to vector<1x256xi32>
    %94 = arith.muli %30, %93 : vector<1x256xi32>
    %95 = arith.addi %92, %94 : vector<1x256xi32>
    %96 = arith.addi %95, %20 : vector<1x256xi32>
    %97 = arith.mulf %13, %88 : vector<1x256xf32>
    %98 = arith.mulf %97, %90 : vector<1x256xf32>
    %c256_i32_28 = arith.constant 256 : i32
    %99 = vector.broadcast %c256_i32_28 : i32 to vector<1x256xi32>
    %100 = arith.muli %46, %99 : vector<1x256xi32>
    %c16_i32_29 = arith.constant 16 : i32
    %101 = vector.broadcast %c16_i32_29 : i32 to vector<1x256xi32>
    %102 = arith.muli %30, %101 : vector<1x256xi32>
    %103 = arith.addi %100, %102 : vector<1x256xi32>
    %104 = arith.addi %103, %26 : vector<1x256xi32>
    %105 = arith.mulf %13, %88 : vector<1x256xf32>
    %106 = arith.mulf %105, %11 : vector<1x256xf32>
    %cst_30 = arith.constant 1.000000e+00 : f32
    %107 = vector.broadcast %cst_30 : f32 to vector<1x256xf32>
    %108 = arith.subf %107, %11 : vector<1x256xf32>
    %c256_i32_31 = arith.constant 256 : i32
    %109 = vector.broadcast %c256_i32_31 : i32 to vector<1x256xi32>
    %110 = arith.muli %46, %109 : vector<1x256xi32>
    %c16_i32_32 = arith.constant 16 : i32
    %111 = vector.broadcast %c16_i32_32 : i32 to vector<1x256xi32>
    %112 = arith.muli %36, %111 : vector<1x256xi32>
    %113 = arith.addi %110, %112 : vector<1x256xi32>
    %114 = arith.addi %113, %20 : vector<1x256xi32>
    %115 = arith.mulf %13, %12 : vector<1x256xf32>
    %116 = arith.mulf %115, %108 : vector<1x256xf32>
    %c256_i32_33 = arith.constant 256 : i32
    %117 = vector.broadcast %c256_i32_33 : i32 to vector<1x256xi32>
    %118 = arith.muli %46, %117 : vector<1x256xi32>
    %c16_i32_34 = arith.constant 16 : i32
    %119 = vector.broadcast %c16_i32_34 : i32 to vector<1x256xi32>
    %120 = arith.muli %36, %119 : vector<1x256xi32>
    %121 = arith.addi %118, %120 : vector<1x256xi32>
    %122 = arith.addi %121, %26 : vector<1x256xi32>
    %123 = arith.mulf %13, %12 : vector<1x256xf32>
    %124 = arith.mulf %123, %11 : vector<1x256xf32>
    %125 = tpu.iota {dimensions = array<i32: 0>} : vector<512x256xi32>
    %cst_35 = arith.constant 0.000000e+00 : f32
    %126 = vector.broadcast %cst_35 : f32 to vector<4x256xf32>
    %cst_36 = arith.constant 0.000000e+00 : f32
    %c0_i32_37 = arith.constant 0 : i32
    %c4_i32 = arith.constant 4 : i32
    %127 = arith.addi %c0_i32_37, %c4_i32 : i32
    %c1_i32_38 = arith.constant 1 : i32
    %128 = scf.for %arg7 = %c0_i32_37 to %127 step %c1_i32_38 iter_args(%arg8 = %126) -> (vector<4x256xf32>)  : i32 {
      %c512_i32 = arith.constant 512 : i32
      %132 = arith.muli %arg7, %c512_i32 : i32
      %133 = vector.broadcast %132 : i32 to vector<512x256xi32>
      %134 = arith.addi %125, %133 : vector<512x256xi32>
      %135 = vector.broadcast %58 : vector<1x256xi32> to vector<512x256xi32>
      %136 = arith.cmpi eq, %134, %135 : vector<512x256xi32>
      %137 = vector.shape_cast %60 : vector<1x256xf32> to vector<1x256xf32>
      %138 = vector.broadcast %137 : vector<1x256xf32> to vector<512x256xf32>
      %139 = vector.broadcast %cst_36 : f32 to vector<512x256xf32>
      %140 = arith.select %136, %138, %139 : vector<512x256xi1>, vector<512x256xf32>
      %141 = vector.broadcast %66 : vector<1x256xi32> to vector<512x256xi32>
      %142 = arith.cmpi eq, %134, %141 : vector<512x256xi32>
      %143 = vector.shape_cast %68 : vector<1x256xf32> to vector<1x256xf32>
      %144 = vector.broadcast %143 : vector<1x256xf32> to vector<512x256xf32>
      %145 = vector.broadcast %cst_36 : f32 to vector<512x256xf32>
      %146 = arith.select %142, %144, %145 : vector<512x256xi1>, vector<512x256xf32>
      %147 = arith.addf %140, %146 : vector<512x256xf32>
      %148 = vector.broadcast %76 : vector<1x256xi32> to vector<512x256xi32>
      %149 = arith.cmpi eq, %134, %148 : vector<512x256xi32>
      %150 = vector.shape_cast %78 : vector<1x256xf32> to vector<1x256xf32>
      %151 = vector.broadcast %150 : vector<1x256xf32> to vector<512x256xf32>
      %152 = vector.broadcast %cst_36 : f32 to vector<512x256xf32>
      %153 = arith.select %149, %151, %152 : vector<512x256xi1>, vector<512x256xf32>
      %154 = arith.addf %147, %153 : vector<512x256xf32>
      %155 = vector.broadcast %84 : vector<1x256xi32> to vector<512x256xi32>
      %156 = arith.cmpi eq, %134, %155 : vector<512x256xi32>
      %157 = vector.shape_cast %86 : vector<1x256xf32> to vector<1x256xf32>
      %158 = vector.broadcast %157 : vector<1x256xf32> to vector<512x256xf32>
      %159 = vector.broadcast %cst_36 : f32 to vector<512x256xf32>
      %160 = arith.select %156, %158, %159 : vector<512x256xi1>, vector<512x256xf32>
      %161 = arith.addf %154, %160 : vector<512x256xf32>
      %162 = vector.broadcast %96 : vector<1x256xi32> to vector<512x256xi32>
      %163 = arith.cmpi eq, %134, %162 : vector<512x256xi32>
      %164 = vector.shape_cast %98 : vector<1x256xf32> to vector<1x256xf32>
      %165 = vector.broadcast %164 : vector<1x256xf32> to vector<512x256xf32>
      %166 = vector.broadcast %cst_36 : f32 to vector<512x256xf32>
      %167 = arith.select %163, %165, %166 : vector<512x256xi1>, vector<512x256xf32>
      %168 = arith.addf %161, %167 : vector<512x256xf32>
      %169 = vector.broadcast %104 : vector<1x256xi32> to vector<512x256xi32>
      %170 = arith.cmpi eq, %134, %169 : vector<512x256xi32>
      %171 = vector.shape_cast %106 : vector<1x256xf32> to vector<1x256xf32>
      %172 = vector.broadcast %171 : vector<1x256xf32> to vector<512x256xf32>
      %173 = vector.broadcast %cst_36 : f32 to vector<512x256xf32>
      %174 = arith.select %170, %172, %173 : vector<512x256xi1>, vector<512x256xf32>
      %175 = arith.addf %168, %174 : vector<512x256xf32>
      %176 = vector.broadcast %114 : vector<1x256xi32> to vector<512x256xi32>
      %177 = arith.cmpi eq, %134, %176 : vector<512x256xi32>
      %178 = vector.shape_cast %116 : vector<1x256xf32> to vector<1x256xf32>
      %179 = vector.broadcast %178 : vector<1x256xf32> to vector<512x256xf32>
      %180 = vector.broadcast %cst_36 : f32 to vector<512x256xf32>
      %181 = arith.select %177, %179, %180 : vector<512x256xi1>, vector<512x256xf32>
      %182 = arith.addf %175, %181 : vector<512x256xf32>
      %183 = vector.broadcast %122 : vector<1x256xi32> to vector<512x256xi32>
      %184 = arith.cmpi eq, %134, %183 : vector<512x256xi32>
      %185 = vector.shape_cast %124 : vector<1x256xf32> to vector<1x256xf32>
      %186 = vector.broadcast %185 : vector<1x256xf32> to vector<512x256xf32>
      %187 = vector.broadcast %cst_36 : f32 to vector<512x256xf32>
      %188 = arith.select %184, %186, %187 : vector<512x256xi1>, vector<512x256xf32>
      %189 = arith.addf %182, %188 : vector<512x256xf32>
      %190 = arith.index_cast %arg7 : i32 to index
      %c0_43 = arith.constant 0 : index
      %c0_44 = arith.constant 0 : index
      %191 = vector.load %arg5[%190, %c0_43, %c0_44] : memref<4x4x512xf32, #tpu.memory_space<vmem>>, vector<1x4x512xf32>
      %192 = vector.shape_cast %191 : vector<1x4x512xf32> to vector<4x512xf32>
      %cst_45 = arith.constant dense<0.000000e+00> : vector<4x256xf32>
      %193 = tpu.matmul %192, %189, %cst_45 {dimension_numbers = #tpu.dot_dimension_numbers<[1], [0], [0], [1], [0, 0, 1, 1], [], []>} : vector<4x512xf32>, vector<512x256xf32>, vector<4x256xf32> -> vector<4x256xf32>
      %194 = arith.addf %arg8, %193 : vector<4x256xf32>
      scf.yield %194 : vector<4x256xf32>
    }
    %c4_i32_39 = arith.constant 4 : i32
    %c0_40 = arith.constant 0 : index
    %c0_41 = arith.constant 0 : index
    %c0_42 = arith.constant 0 : index
    %129 = vector.load %arg4[%c0_40, %c0_41, %c0_42] : memref<1x4x256xf32, #tpu.memory_space<vmem>>, vector<1x4x256xf32>
    %130 = vector.shape_cast %129 : vector<1x4x256xf32> to vector<4x256xf32>
    %131 = vector.shape_cast %128 : vector<4x256xf32> to vector<1x4x256xf32>
    tpu.vector_store %arg4[%c0_40, %c0_41, %c0_42], %131 {strides = array<i32>} : memref<1x4x256xf32, #tpu.memory_space<vmem>>, vector<1x4x256xf32>,
    return
  }
  func.func @transform_1(%arg0: i32, %arg1: i32) -> (i32, i32, i32) {
    %c0_i32 = arith.constant 0 : i32
    %c0_i32_0 = arith.constant 0 : i32
    return %arg0, %c0_i32, %arg1 : i32, i32, i32
  }
  func.func @transform_2(%arg0: i32, %arg1: i32) -> (i32, i32, i32) {
    %c0_i32 = arith.constant 0 : i32
    %c0_i32_0 = arith.constant 0 : i32
    return %arg0, %c0_i32, %arg1 : i32, i32, i32
  }
}

</mosaic_0001>

<llo_original>
// kernel: tpu_custom_call.1
$region0: #{tpu_custom_call.1}
  #allocation0 [shape = 'u32[]', space=smem, size = 0x4, offset = 0x4, fixed_abs, tag = 'smem constant byte address 0x4 - core index']
  #allocation1 [shape = 'u32[144,128]{1,0:T(1,128)}', space=vmem, size = 0x12000, scoped, tag = 'internal scratch']
  #allocation2 [shape = 'f32[4,4,512]{2,1,0:T(4,128)}', space=vmem, size = 0x8000, scoped, tag = 'scratch operand']
  #allocation3 [shape = 's32[1]{0}', space=sflag, size = 0x4, scoped, tag = 'scratch operand']
  #allocation6 [shape = 's32[]', space=sflag, size = 0x4, offset = 0, fixed_abs, tag = 'sflag constant byte address 0x0 - dummy sync flag']
  %s0 = inlined_call_operand.vmem [shape: f32[2,4,4,512], index: 0, kind: input, shape index: {}]
  %s1 = inlined_call_operand.vmem [shape: f32[2,3,2048], index: 1, kind: input, shape index: {}]
  %s2 = inlined_call_operand.hbm [shape: f32[2,4,2048], index: 2, kind: output, shape index: {}]
  %s3 = sld [smem:[#allocation0]]
  $region82: #{tpu_custom_call.1} parent=0
    _
  %s5 = ssub.s32 1, %s3
  %s6 = scalar_select 0, %s5, %s3
  $region1: #{tpu_custom_call.1} parent=0
    #allocation4 [shape = 'u8[8192]{0}', space=vmem, size = 0x2000, scoped, tag = 'output window, operand 0']
    #allocation5 [shape = 's32[2]{0}', space=sflag, size = 0x8, scoped, tag = 'scoped memory for tpu_custom_call.1']
    %7 = vsyncpa [#allocation5], 0
    %s8 = scalar_lea.sflag [#allocation5], 1
    %9 = vsyncpa %s8, 0
    loop: start=0, step=1, limit=18
    $region2: #{tpu_custom_call.1} parent=1 // loop_pre_header
      _
    $region3: #{tpu_custom_call.1} parent=1 // loop_header
      %s11 = sphi 0, %s15
      %p12 = scmp.ge.s32.totalorder %s11, 18
      %s18 = sphi 0, %s30
      %s19 = sphi 0, %s26
      %s20 = sphi 0, %s18
      %s21 = sphi 0, %s19
      %s22 = sphi 0, %s20
      %s23 = sphi 0, %s21
      %s35 = sphi 0, %s37
      %s38 = sphi 0, %s35
      %s39 = sphi 0, %s38
      %s55 = sphi 0, %s39
      %s63 = sphi 0, %s65
      %s66 = sphi 0, %s63
      %s67 = sphi 0, %s66
      %s83 = sphi 0, %s67
    $region4: #{tpu_custom_call.1} parent=1 // loop_header_branch
      %14 = sbr.rel (%p12) target = $region8
    $region5: #{tpu_custom_call.1} parent=1 // loop_body
      %s16 = ssub.s32 %s11, 1
      %s17 = ssub.s32 %s11, 2
      %s24 = sadd.s32 1, %s19
      %p25 = scmp.ge.s32.totalorder %s24, 8
      %s26 = scalar_select %p25, 0, %s24
      %s27 = sadd.s32 1, %s18
      %s28 = scalar_select %p25, %s27, %s18
      %p29 = scmp.ge.s32.totalorder %s28, 2
      %s30 = scalar_select %p29, 0, %s28
      %s31 = ssub.s32 %s18, %s30
      %s32 = ssub.s32 %s19, %s26
      %s33 = sor.u32 %s31, %s32
      %p34 = scmp.eq.s32.totalorder %s33, 0
      %s36 = sadd.s32 %s35, 1
      %s37 = scalar_select %p34, %s35, %s36
      %p40 = pneg %p34
      %p41 = scmp.eq.s32.totalorder %s11, 15
      %p42 = por %p40, %p41
      %p43 = scmp.ne.s32.totalorder %s35, %s38
      %p44 = scmp.eq.s32.totalorder %s11, 0
      %p45 = por %p43, %p44
      %p46 = scmp.ne.s32.totalorder %s35, %s38
      %p47 = scmp.eq.s32.totalorder %s16, 15
      %p48 = por %p46, %p47
      %p49 = scmp.ne.s32.totalorder %s38, %s39
      %p50 = scmp.eq.s32.totalorder %s16, 0
      %p51 = por %p49, %p50
      %p52 = scmp.ne.s32.totalorder %s38, %s39
      %p53 = scmp.eq.s32.totalorder %s17, 15
      %p54 = por %p52, %p53
      %p56 = scmp.ne.s32.totalorder %s39, %s55
      %p57 = scmp.eq.s32.totalorder %s17, 0
      %p58 = por %p56, %p57
      %s59 = ssub.s32 %s18, %s30
      %s60 = ssub.s32 %s19, %s26
      %s61 = sor.u32 %s59, %s60
      %p62 = scmp.eq.s32.totalorder %s61, 0
      %s64 = sadd.s32 %s63, 1
      %s65 = scalar_select %p62, %s63, %s64
      %p68 = pneg %p62
      %p69 = scmp.eq.s32.totalorder %s11, 15
      %p70 = por %p68, %p69
      %p71 = scmp.ne.s32.totalorder %s63, %s66
      %p72 = scmp.eq.s32.totalorder %s11, 0
      %p73 = por %p71, %p72
      %p74 = scmp.ne.s32.totalorder %s63, %s66
      %p75 = scmp.eq.s32.totalorder %s16, 15
      %p76 = por %p74, %p75
      %p77 = scmp.ne.s32.totalorder %s66, %s67
      %p78 = scmp.eq.s32.totalorder %s16, 0
      %p79 = por %p77, %p78
      %p80 = scmp.ne.s32.totalorder %s66, %s67
      %p81 = scmp.eq.s32.totalorder %s17, 15
      %p82 = por %p80, %p81
      %p84 = scmp.ne.s32.totalorder %s67, %s83
      %p85 = scmp.eq.s32.totalorder %s17, 0
      %p86 = por %p84, %p85
      %p87 = scmp.le.s32.totalorder 1, %s11
      %p88 = scmp.lt.s32.totalorder %s11, 17
      %p89 = pnand %p87, %p88
      %p90 = pneg %p89
      // Predicated region
      $region9: #{tpu_custom_call.1} parent=5 // pred_check
        _
      $region10: #{tpu_custom_call.1} parent=5 // pred_check_branch
        %92 = sbr.rel (%p89) target = $region12
      $region11: #{tpu_custom_call.1} parent=5 // pred_region
        %s93 = ssub.s32 %s11, 1
      $region12: #{tpu_custom_call.1} parent=5 // pred_fallthru
        _
      %p94 = scmp.lt.s32.totalorder %s11, 16
      // Predicated region
      $region13: #{tpu_custom_call.1} parent=5 // pred_check
        %p95 = pneg %p94
      $region14: #{tpu_custom_call.1} parent=5 // pred_check_branch
        %97 = sbr.rel (%p95) target = $region16
      $region15: #{tpu_custom_call.1} parent=5 // pred_region
        // Predicated region
        $region17: #{tpu_custom_call.1} parent=15 // pred_check
          %p98 = pneg %p45
        $region18: #{tpu_custom_call.1} parent=15 // pred_check_branch
          %100 = sbr.rel (%p98) target = $region20
        $region19: #{tpu_custom_call.1} parent=15 // pred_region
          %s101 = smul.u32 2, %s19
          %p102 = scmp.lt.s32.totalorder %s18, 1
          %s103 = scalar_select %p102, %s18, 1
          %p104 = scmp.lt.s32.totalorder %s101, 15
          %s105 = scalar_select %p104, %s101, 15
          %s106 = smul.addr %s103, 16
          %s107 = sadd.s32 %s105, %s106
          %s108 = smul.addr %s107, 4
          %s109 = scalar_lea.vmem %s1, %s108
          %s110 = smul.u32 2, %s19
        $region20: #{tpu_custom_call.1} parent=15 // pred_fallthru
          _
      $region16: #{tpu_custom_call.1} parent=5 // pred_fallthru
        _
      %p111 = scmp.le.s32.totalorder 1, %s11
      %p112 = scmp.lt.s32.totalorder %s11, 17
      %p113 = pnand %p111, %p112
      %p114 = pneg %p113
      // Predicated region
      $region21: #{tpu_custom_call.1} parent=5 // pred_check
        _
      $region22: #{tpu_custom_call.1} parent=5 // pred_check_branch
        %116 = sbr.rel (%p113) target = $region24
      $region23: #{tpu_custom_call.1} parent=5 // pred_region
        %s117 = ssub.s32 %s11, 1
        %s118 = smul.u32 2, %s21
        %p119 = scmp.lt.s32.totalorder %s20, 1
        %s120 = scalar_select %p119, %s20, 1
        %p121 = scmp.lt.s32.totalorder %s118, 15
        %s122 = scalar_select %p121, %s118, 15
        %s123 = smul.addr %s120, 16
        %s124 = sadd.s32 %s122, %s123
        %s125 = smul.addr %s124, 4
        %s126 = scalar_lea.vmem %s1, %s125
        %p127 = pneg %p51
        %p128 = pneg %p48
        %p129 = pneg %p79
        %p130 = pneg %p76
        %s131 = sand.u32 %s66, 1
        %s132 = scalar_lea.sflag [#allocation5], %s131
        %s133 = sand.u32 %s66, 1
        %s134 = smul.addr %s133, 8
        %s135 = scalar_lea.vmem [#allocation4], %s134
        %s136 = smul.u32 2, %s21
        %p137 = scmp.lt.s32.totalorder %s20, 1
        %s138 = scalar_select %p137, %s20, 1
        %p139 = scmp.lt.s32.totalorder %s136, 15
        %s140 = scalar_select %p139, %s136, 15
        %s141 = smul.addr %s138, 16
        %s142 = sadd.s32 %s140, %s141
        %s143 = smul.addr %s142, 4
        %s144 = scalar_lea.vmem %s1, %s143
        %s145 = smul.u32 2, %s21
        %s146 = smul.u32 2, %s21
        %p147 = scmp.eq.s32.totalorder %s21, 0
        // Predicated region
        $region25: #{tpu_custom_call.1} parent=23 // pred_check
          %p148 = pneg %p147
        $region26: #{tpu_custom_call.1} parent=23 // pred_check_branch
          %150 = sbr.rel (%p148) target = $region28
        $region27: #{tpu_custom_call.1} parent=23 // pred_region
          %s151 = smul.u32 %s20, 16
          %s152 = smul.addr %s151, 4
          %s153 = scalar_lea.vmem %s0, %s152
          %p155 = scmp.lt.u32.totalorder 64, 8
          %p156 = pneg %p155
          // Predicated region
          $region29: #{tpu_custom_call.1} parent=27 // pred_check
            _
          $region30: #{tpu_custom_call.1} parent=27 // pred_check_branch
            %158 = sbr.rel (%p155) target = $region32
          $region31: #{tpu_custom_call.1} parent=27 // pred_region
            %s174 = sand.u32 64, 7
            %p175 = scmp.eq.s32.totalorder %s174, 0
            // Predicated region
            $region44: #{tpu_custom_call.1} parent=31 // pred_check
              %p176 = pneg %p175
            $region45: #{tpu_custom_call.1} parent=31 // pred_check_branch
              %178 = sbr.rel (%p176) target = $region47
            $region46: #{tpu_custom_call.1} parent=31 // pred_region
              loop: start=0, step=1, limit=1
              $region48: #{tpu_custom_call.1} parent=46 // loop_pre_header
                _
              $region49: #{tpu_custom_call.1} parent=46 // loop_header
                %s180 = sphi 0, %s184
                %p181 = scmp.ge.s32.totalorder %s180, 1
                %s185 = sphi %s153, %s153
                %s186 = sphi [#allocation2], [#allocation2]
              $region50: #{tpu_custom_call.1} parent=46 // loop_header_branch
                %183 = sbr.rel (%p181) target = $region54
              $region51: #{tpu_custom_call.1} parent=46 // loop_body
                %v187 = vld [vmem:[%s185] sm:$0xff]
                %188 = vst [vmem:[%s186] sm:$0xff] %v187
                %v189 = vld [vmem:[%s185 + $0x8] sm:$0xff]
                %190 = vst [vmem:[%s186 + $0x8] sm:$0xff] %v189
                %v191 = vld [vmem:[%s185 + $0x10] sm:$0xff]
                %192 = vst [vmem:[%s186 + $0x10] sm:$0xff] %v191
                %v193 = vld [vmem:[%s185 + $0x18] sm:$0xff]
                %194 = vst [vmem:[%s186 + $0x18] sm:$0xff] %v193
                %v195 = vld [vmem:[%s185 + $0x20] sm:$0xff]
                %196 = vst [vmem:[%s186 + $0x20] sm:$0xff] %v195
                %v197 = vld [vmem:[%s185 + $0x28] sm:$0xff]
                %198 = vst [vmem:[%s186 + $0x28] sm:$0xff] %v197
                %v199 = vld [vmem:[%s185 + $0x30] sm:$0xff]
                %200 = vst [vmem:[%s186 + $0x30] sm:$0xff] %v199
                %v201 = vld [vmem:[%s185 + $0x38] sm:$0xff]
                %202 = vst [vmem:[%s186 + $0x38] sm:$0xff] %v201
              $region52: #{tpu_custom_call.1} parent=46 // loop_footer
                %s184 = sadd.s32 1, %s180
              $region53: #{tpu_custom_call.1} parent=46 // loop_footer_branch
                %179 = sbr.rel target = $region49
              $region54: #{tpu_custom_call.1} parent=46 // loop_exit
                _
            $region47: #{tpu_custom_call.1} parent=31 // pred_fallthru
              _
            %p203 = pneg %p175
            // Predicated region
            $region55: #{tpu_custom_call.1} parent=31 // pred_check
              _
            $region56: #{tpu_custom_call.1} parent=31 // pred_check_branch
              %205 = sbr.rel (%p175) target = $region58
            $region57: #{tpu_custom_call.1} parent=31 // pred_region
              %s206 = sand.u32 64, 7
            $region58: #{tpu_custom_call.1} parent=31 // pred_fallthru
              _
          $region32: #{tpu_custom_call.1} parent=27 // pred_fallthru
            _
          // Predicated region
          $region33: #{tpu_custom_call.1} parent=27 // pred_check
            %p159 = pneg %p155
          $region34: #{tpu_custom_call.1} parent=27 // pred_check_branch
            %161 = sbr.rel (%p159) target = $region36
          $region35: #{tpu_custom_call.1} parent=27 // pred_region
            %s162 = sshll.u32 1, 64
            %s163 = ssub.s32 %s162, 1
            loop: start=0, step=1, limit=1
            $region37: #{tpu_custom_call.1} parent=35 // loop_pre_header
              _
            $region38: #{tpu_custom_call.1} parent=35 // loop_header
              %s165 = sphi 0, %s169
              %p166 = scmp.ge.s32.totalorder %s165, 1
              %s170 = sphi %s153, %s153
              %s171 = sphi [#allocation2], [#allocation2]
            $region39: #{tpu_custom_call.1} parent=35 // loop_header_branch
              %168 = sbr.rel (%p166) target = $region43
            $region40: #{tpu_custom_call.1} parent=35 // loop_body
              %v172 = vld [vmem:[%s170] sm:%s163]
              %173 = vst [vmem:[%s171] sm:%s163] %v172
            $region41: #{tpu_custom_call.1} parent=35 // loop_footer
              %s169 = sadd.s32 1, %s165
            $region42: #{tpu_custom_call.1} parent=35 // loop_footer_branch
              %164 = sbr.rel target = $region38
            $region43: #{tpu_custom_call.1} parent=35 // loop_exit
              _
          $region36: #{tpu_custom_call.1} parent=27 // pred_fallthru
            _
          // Predicated region
          $region59: #{tpu_custom_call.1} parent=27 // pred_check
            _
          $region60: #{tpu_custom_call.1} parent=27 // pred_check_branch
            %209 = sbr.rel (0) target = $region62
          $region61: #{tpu_custom_call.1} parent=27 // pred_region
            %210 = vsyncadd [#allocation3], 1024
          $region62: #{tpu_custom_call.1} parent=27 // pred_fallthru
            _
          %s211 = smul.u32 4, 4
          %s212 = smul.u32 %s211, 1
          %s213 = smul.u32 %s212, 4
          %s214 = sshll.u32 %s213, 4
          %215 = dma.done [#allocation3], %s214
        $region28: #{tpu_custom_call.1} parent=23 // pred_fallthru
          _
        %v216 = vld [vmem:[%s144] sm:$0x77]
        %v217 = vfloor.f32 %v216
        %v218 = vsub.f32 %v216, %v217
        %v219 = vcvt.f32.s32.to.zero.pseudo %v217
        %vm220 = vcmp.gt.s32.totalorder %v219, 0
        %v221 = vsel %vm220, %v219, 0
        %vm222 = vcmp.lt.s32.totalorder %v221, 15
        %v223 = vsel %vm222, %v221, 15
        %v224 = vadd.s32 %v219, 1
        %vm225 = vcmp.gt.s32.totalorder %v224, 0
        %v226 = vsel %vm225, %v224, 0
        %vm227 = vcmp.lt.s32.totalorder %v226, 15
        %v228 = vsel %vm227, %v226, 15
        %vm229 = vcmp.lt.s32.totalorder %v221, 7
        %v230 = vsel %vm229, %v221, 7
        %vm231 = vcmp.lt.s32.totalorder %v226, 7
        %v232 = vsel %vm231, %v226, 7
        %v233 = vsub.f32 1.0, %v218
        %v234 = vmul.u32 %v230, 256
        %v235 = vmul.u32 %v223, 16
        %v236 = vrot.slane %v235, 7
        %v237 = vadd.s32 %v234, %v236
        %v238 = vrot.slane %v223, 6
        %v239 = vadd.s32 %v237, %v238
        %v241 = vrot.slane %v233, 7
        %v243 = vmul.f32 %v233, %v241
        %v244 = vrot.slane %v233, 6
        %v246 = vmul.f32 %v243, %v244
        %v247 = vrot.slane %v228, 6
        %v248 = vadd.s32 %v237, %v247
        %v250 = vrot.slane %v218, 6
        %v252 = vmul.f32 %v243, %v250
        %v253 = vmul.u32 %v228, 16
        %v254 = vrot.slane %v253, 7
        %v255 = vadd.s32 %v234, %v254
        %v256 = vadd.s32 %v255, %v238
        %v257 = vrot.slane %v218, 7
        %v259 = vmul.f32 %v233, %v257
        %v260 = vmul.f32 %v259, %v244
        %v261 = vadd.s32 %v255, %v247
        %v262 = vmul.f32 %v259, %v250
        %v263 = vmul.u32 %v232, 256
        %v264 = vadd.s32 %v263, %v236
        %v265 = vadd.s32 %v264, %v238
        %v266 = vmul.f32 %v218, %v241
        %v267 = vmul.f32 %v266, %v244
        %v268 = vadd.s32 %v264, %v247
        %v269 = vmul.f32 %v266, %v250
        %v270 = vadd.s32 %v263, %v254
        %v271 = vadd.s32 %v270, %v238
        %v272 = vmul.f32 %v218, %v257
        %v273 = vmul.f32 %v272, %v244
        %v274 = vadd.s32 %v270, %v247
        %v275 = vmul.f32 %v272, %v250
        %v276 = vlaneseq
        %v277 = vshrl.u32 %v276, 7
        %v278 = vadd.s32 %v277, 8
        %v279 = vadd.s32 %v277, 16
        %v280 = vadd.s32 %v277, 24
        %v281 = vadd.s32 %v277, 32
        %v282 = vadd.s32 %v277, 40
        %v283 = vadd.s32 %v277, 48
        %v284 = vadd.s32 %v277, 56
        %v285 = vadd.s32 %v277, 64
        %v286 = vadd.s32 %v277, 72
        %v287 = vadd.s32 %v277, 80
        %v288 = vadd.s32 %v277, 88
        %v289 = vadd.s32 %v277, 96
        %v290 = vadd.s32 %v277, 104
        %v291 = vadd.s32 %v277, 112
        %v292 = vadd.s32 %v277, 120
        %v293 = vadd.s32 %v277, 128
        %v294 = vadd.s32 %v277, 136
        %v295 = vadd.s32 %v277, 144
        %v296 = vadd.s32 %v277, 152
        %v297 = vadd.s32 %v277, 160
        %v298 = vadd.s32 %v277, 168
        %v299 = vadd.s32 %v277, 176
        %v300 = vadd.s32 %v277, 184
        %v301 = vadd.s32 %v277, 192
        %v302 = vadd.s32 %v277, 200
        %v303 = vadd.s32 %v277, 208
        %v304 = vadd.s32 %v277, 216
        %v305 = vadd.s32 %v277, 224
        %v306 = vadd.s32 %v277, 232
        %v307 = vadd.s32 %v277, 240
        %v308 = vadd.s32 %v277, 248
        %v309 = vadd.s32 %v277, 256
        %v310 = vadd.s32 %v277, 264
        %v311 = vadd.s32 %v277, 272
        %v312 = vadd.s32 %v277, 280
        %v313 = vadd.s32 %v277, 288
        %v314 = vadd.s32 %v277, 296
        %v315 = vadd.s32 %v277, 304
        %v316 = vadd.s32 %v277, 312
        %v317 = vadd.s32 %v277, 320
        %v318 = vadd.s32 %v277, 328
        %v319 = vadd.s32 %v277, 336
        %v320 = vadd.s32 %v277, 344
        %v321 = vadd.s32 %v277, 352
        %v322 = vadd.s32 %v277, 360
        %v323 = vadd.s32 %v277, 368
        %v324 = vadd.s32 %v277, 376
        %v325 = vadd.s32 %v277, 384
        %v326 = vadd.s32 %v277, 392
        %v327 = vadd.s32 %v277, 400
        %v328 = vadd.s32 %v277, 408
        %v329 = vadd.s32 %v277, 416
        %v330 = vadd.s32 %v277, 424
        %v331 = vadd.s32 %v277, 432
        %v332 = vadd.s32 %v277, 440
        %v333 = vadd.s32 %v277, 448
        %v334 = vadd.s32 %v277, 456
        %v335 = vadd.s32 %v277, 464
        %v336 = vadd.s32 %v277, 472
        %v337 = vadd.s32 %v277, 480
        %v338 = vadd.s32 %v277, 488
        %v339 = vadd.s32 %v277, 496
        %v340 = vadd.s32 %v277, 504
        loop: start=0, step=1, limit=4
        $region63: #{tpu_custom_call.1} parent=23 // loop_pre_header
          _
        $region64: #{tpu_custom_call.1} parent=23 // loop_header
          %s342 = sphi 0, %s346
          %p343 = scmp.ge.s32.totalorder %s342, 4
          %v347 = vphi 0.0, %v3792
          %v348 = vphi 0.0, %v3793
        $region65: #{tpu_custom_call.1} parent=23 // loop_header_branch
          %345 = sbr.rel (%p343) target = $region69
        $region66: #{tpu_custom_call.1} parent=23 // loop_body
          %s349 = smul.u32 %s342, 512
          %v350 = vstv %s349
          %v351 = vadd.s32 %v277, %v350
          %v352 = vadd.s32 %v278, %v350
          %v353 = vadd.s32 %v279, %v350
          %v354 = vadd.s32 %v280, %v350
          %v355 = vadd.s32 %v281, %v350
          %v356 = vadd.s32 %v282, %v350
          %v357 = vadd.s32 %v283, %v350
          %v358 = vadd.s32 %v284, %v350
          %v359 = vadd.s32 %v285, %v350
          %v360 = vadd.s32 %v286, %v350
          %v361 = vadd.s32 %v287, %v350
          %v362 = vadd.s32 %v288, %v350
          %v363 = vadd.s32 %v289, %v350
          %v364 = vadd.s32 %v290, %v350
          %v365 = vadd.s32 %v291, %v350
          %v366 = vadd.s32 %v292, %v350
          %v367 = vadd.s32 %v293, %v350
          %v368 = vadd.s32 %v294, %v350
          %v369 = vadd.s32 %v295, %v350
          %v370 = vadd.s32 %v296, %v350
          %v371 = vadd.s32 %v297, %v350
          %v372 = vadd.s32 %v298, %v350
          %v373 = vadd.s32 %v299, %v350
          %v374 = vadd.s32 %v300, %v350
          %v375 = vadd.s32 %v301, %v350
          %v376 = vadd.s32 %v302, %v350
          %v377 = vadd.s32 %v303, %v350
          %v378 = vadd.s32 %v304, %v350
          %v379 = vadd.s32 %v305, %v350
          %v380 = vadd.s32 %v306, %v350
          %v381 = vadd.s32 %v307, %v350
          %v382 = vadd.s32 %v308, %v350
          %v383 = vadd.s32 %v309, %v350
          %v384 = vadd.s32 %v310, %v350
          %v385 = vadd.s32 %v311, %v350
          %v386 = vadd.s32 %v312, %v350
          %v387 = vadd.s32 %v313, %v350
          %v388 = vadd.s32 %v314, %v350
          %v389 = vadd.s32 %v315, %v350
          %v390 = vadd.s32 %v316, %v350
          %v391 = vadd.s32 %v317, %v350
          %v392 = vadd.s32 %v318, %v350
          %v393 = vadd.s32 %v319, %v350
          %v394 = vadd.s32 %v320, %v350
          %v395 = vadd.s32 %v321, %v350
          %v396 = vadd.s32 %v322, %v350
          %v397 = vadd.s32 %v323, %v350
          %v398 = vadd.s32 %v324, %v350
          %v399 = vadd.s32 %v325, %v350
          %v400 = vadd.s32 %v326, %v350
          %v401 = vadd.s32 %v327, %v350
          %v402 = vadd.s32 %v328, %v350
          %v403 = vadd.s32 %v329, %v350
          %v404 = vadd.s32 %v330, %v350
          %v405 = vadd.s32 %v331, %v350
          %v406 = vadd.s32 %v332, %v350
          %v407 = vadd.s32 %v333, %v350
          %v408 = vadd.s32 %v334, %v350
          %v409 = vadd.s32 %v335, %v350
          %v410 = vadd.s32 %v336, %v350
          %v411 = vadd.s32 %v337, %v350
          %v412 = vadd.s32 %v338, %v350
          %v413 = vadd.s32 %v339, %v350
          %v414 = vadd.s32 %v340, %v350
          %v415 = vlaneseq
          %v416 = vshrl.u32 %v415, 7
          %v417 = vsub.s32 2, %v416
          %v418 = vrot.slane %v239, %v417
          %v419 = vlaneseq
          %v420 = vshrl.u32 %v419, 7
          %v421 = vsub.s32 6, %v420
          %v422 = vrot.slane %v239, %v421
          %v423 = vlaneseq
          %v424 = vshrl.u32 %v423, 7
          %v425 = vsub.s32 2, %v424
          %v426 = vrot.slane %v418, %v425
          %v427 = vlaneseq
          %v428 = vshrl.u32 %v427, 7
          %v429 = vsub.s32 2, %v428
          %v430 = vrot.slane %v422, %v429
          %vm431 = vcmp.eq.s32.totalorder %v351, %v426
          %vm432 = vcmp.eq.s32.totalorder %v351, %v430
          %vm433 = vcmp.eq.s32.totalorder %v352, %v426
          %vm434 = vcmp.eq.s32.totalorder %v352, %v430
          %vm435 = vcmp.eq.s32.totalorder %v353, %v426
          %vm436 = vcmp.eq.s32.totalorder %v353, %v430
          %vm437 = vcmp.eq.s32.totalorder %v354, %v426
          %vm438 = vcmp.eq.s32.totalorder %v354, %v430
          %vm439 = vcmp.eq.s32.totalorder %v355, %v426
          %vm440 = vcmp.eq.s32.totalorder %v355, %v430
          %vm441 = vcmp.eq.s32.totalorder %v356, %v426
          %vm442 = vcmp.eq.s32.totalorder %v356, %v430
          %vm443 = vcmp.eq.s32.totalorder %v357, %v426
          %vm444 = vcmp.eq.s32.totalorder %v357, %v430
          %vm445 = vcmp.eq.s32.totalorder %v358, %v426
          %vm446 = vcmp.eq.s32.totalorder %v358, %v430
          %vm447 = vcmp.eq.s32.totalorder %v359, %v426
          %vm448 = vcmp.eq.s32.totalorder %v359, %v430
          %vm449 = vcmp.eq.s32.totalorder %v360, %v426
          %vm450 = vcmp.eq.s32.totalorder %v360, %v430
          %vm451 = vcmp.eq.s32.totalorder %v361, %v426
          %vm452 = vcmp.eq.s32.totalorder %v361, %v430
          %vm453 = vcmp.eq.s32.totalorder %v362, %v426
          %vm454 = vcmp.eq.s32.totalorder %v362, %v430
          %vm455 = vcmp.eq.s32.totalorder %v363, %v426
          %vm456 = vcmp.eq.s32.totalorder %v363, %v430
          %vm457 = vcmp.eq.s32.totalorder %v364, %v426
          %vm458 = vcmp.eq.s32.totalorder %v364, %v430
          %vm459 = vcmp.eq.s32.totalorder %v365, %v426
          %vm460 = vcmp.eq.s32.totalorder %v365, %v430
          %vm461 = vcmp.eq.s32.totalorder %v366, %v426
          %vm462 = vcmp.eq.s32.totalorder %v366, %v430
          %vm463 = vcmp.eq.s32.totalorder %v367, %v426
          %vm464 = vcmp.eq.s32.totalorder %v367, %v430
          %vm465 = vcmp.eq.s32.totalorder %v368, %v426
          %vm466 = vcmp.eq.s32.totalorder %v368, %v430
          %vm467 = vcmp.eq.s32.totalorder %v369, %v426
          %vm468 = vcmp.eq.s32.totalorder %v369, %v430
          %vm469 = vcmp.eq.s32.totalorder %v370, %v426
          %vm470 = vcmp.eq.s32.totalorder %v370, %v430
          %vm471 = vcmp.eq.s32.totalorder %v371, %v426
          %vm472 = vcmp.eq.s32.totalorder %v371, %v430
          %vm473 = vcmp.eq.s32.totalorder %v372, %v426
          %vm474 = vcmp.eq.s32.totalorder %v372, %v430
          %vm475 = vcmp.eq.s32.totalorder %v373, %v426
          %vm476 = vcmp.eq.s32.totalorder %v373, %v430
          %vm477 = vcmp.eq.s32.totalorder %v374, %v426
          %vm478 = vcmp.eq.s32.totalorder %v374, %v430
          %vm479 = vcmp.eq.s32.totalorder %v375, %v426
          %vm480 = vcmp.eq.s32.totalorder %v375, %v430
          %vm481 = vcmp.eq.s32.totalorder %v376, %v426
          %vm482 = vcmp.eq.s32.totalorder %v376, %v430
          %vm483 = vcmp.eq.s32.totalorder %v377, %v426
          %vm484 = vcmp.eq.s32.totalorder %v377, %v430
          %vm485 = vcmp.eq.s32.totalorder %v378, %v426
          %vm486 = vcmp.eq.s32.totalorder %v378, %v430
          %vm487 = vcmp.eq.s32.totalorder %v379, %v426
          %vm488 = vcmp.eq.s32.totalorder %v379, %v430
          %vm489 = vcmp.eq.s32.totalorder %v380, %v426
          %vm490 = vcmp.eq.s32.totalorder %v380, %v430
          %vm491 = vcmp.eq.s32.totalorder %v381, %v426
          %vm492 = vcmp.eq.s32.totalorder %v381, %v430
          %vm493 = vcmp.eq.s32.totalorder %v382, %v426
          %vm494 = vcmp.eq.s32.totalorder %v382, %v430
          %vm495 = vcmp.eq.s32.totalorder %v383, %v426
          %vm496 = vcmp.eq.s32.totalorder %v383, %v430
          %vm497 = vcmp.eq.s32.totalorder %v384, %v426
          %vm498 = vcmp.eq.s32.totalorder %v384, %v430
          %vm499 = vcmp.eq.s32.totalorder %v385, %v426
          %vm500 = vcmp.eq.s32.totalorder %v385, %v430
          %vm501 = vcmp.eq.s32.totalorder %v386, %v426
          %vm502 = vcmp.eq.s32.totalorder %v386, %v430
          %vm503 = vcmp.eq.s32.totalorder %v387, %v426
          %vm504 = vcmp.eq.s32.totalorder %v387, %v430
          %vm505 = vcmp.eq.s32.totalorder %v388, %v426
          %vm506 = vcmp.eq.s32.totalorder %v388, %v430
          %vm507 = vcmp.eq.s32.totalorder %v389, %v426
          %vm508 = vcmp.eq.s32.totalorder %v389, %v430
          %vm509 = vcmp.eq.s32.totalorder %v390, %v426
          %vm510 = vcmp.eq.s32.totalorder %v390, %v430
          %vm511 = vcmp.eq.s32.totalorder %v391, %v426
          %vm512 = vcmp.eq.s32.totalorder %v391, %v430
          %vm513 = vcmp.eq.s32.totalorder %v392, %v426
          %vm514 = vcmp.eq.s32.totalorder %v392, %v430
          %vm515 = vcmp.eq.s32.totalorder %v393, %v426
          %vm516 = vcmp.eq.s32.totalorder %v393, %v430
          %vm517 = vcmp.eq.s32.totalorder %v394, %v426
          %vm518 = vcmp.eq.s32.totalorder %v394, %v430
          %vm519 = vcmp.eq.s32.totalorder %v395, %v426
          %vm520 = vcmp.eq.s32.totalorder %v395, %v430
          %vm521 = vcmp.eq.s32.totalorder %v396, %v426
          %vm522 = vcmp.eq.s32.totalorder %v396, %v430
          %vm523 = vcmp.eq.s32.totalorder %v397, %v426
          %vm524 = vcmp.eq.s32.totalorder %v397, %v430
          %vm525 = vcmp.eq.s32.totalorder %v398, %v426
          %vm526 = vcmp.eq.s32.totalorder %v398, %v430
          %vm527 = vcmp.eq.s32.totalorder %v399, %v426
          %vm528 = vcmp.eq.s32.totalorder %v399, %v430
          %vm529 = vcmp.eq.s32.totalorder %v400, %v426
          %vm530 = vcmp.eq.s32.totalorder %v400, %v430
          %vm531 = vcmp.eq.s32.totalorder %v401, %v426
          %vm532 = vcmp.eq.s32.totalorder %v401, %v430
          %vm533 = vcmp.eq.s32.totalorder %v402, %v426
          %vm534 = vcmp.eq.s32.totalorder %v402, %v430
          %vm535 = vcmp.eq.s32.totalorder %v403, %v426
          %vm536 = vcmp.eq.s32.totalorder %v403, %v430
          %vm537 = vcmp.eq.s32.totalorder %v404, %v426
          %vm538 = vcmp.eq.s32.totalorder %v404, %v430
          %vm539 = vcmp.eq.s32.totalorder %v405, %v426
          %vm540 = vcmp.eq.s32.totalorder %v405, %v430
          %vm541 = vcmp.eq.s32.totalorder %v406, %v426
          %vm542 = vcmp.eq.s32.totalorder %v406, %v430
          %vm543 = vcmp.eq.s32.totalorder %v407, %v426
          %vm544 = vcmp.eq.s32.totalorder %v407, %v430
          %vm545 = vcmp.eq.s32.totalorder %v408, %v426
          %vm546 = vcmp.eq.s32.totalorder %v408, %v430
          %vm547 = vcmp.eq.s32.totalorder %v409, %v426
          %vm548 = vcmp.eq.s32.totalorder %v409, %v430
          %vm549 = vcmp.eq.s32.totalorder %v410, %v426
          %vm550 = vcmp.eq.s32.totalorder %v410, %v430
          %vm551 = vcmp.eq.s32.totalorder %v411, %v426
          %vm552 = vcmp.eq.s32.totalorder %v411, %v430
          %vm553 = vcmp.eq.s32.totalorder %v412, %v426
          %vm554 = vcmp.eq.s32.totalorder %v412, %v430
          %vm555 = vcmp.eq.s32.totalorder %v413, %v426
          %vm556 = vcmp.eq.s32.totalorder %v413, %v430
          %vm557 = vcmp.eq.s32.totalorder %v414, %v426
          %vm558 = vcmp.eq.s32.totalorder %v414, %v430
          %v560 = vlaneseq
          %v561 = vshrl.u32 %v560, 7
          %v562 = vsub.s32 2, %v561
          %v563 = vrot.slane %v246, %v562
          %v564 = vlaneseq
          %v565 = vshrl.u32 %v564, 7
          %v566 = vsub.s32 6, %v565
          %v567 = vrot.slane %v246, %v566
          %v570 = vlaneseq
          %v571 = vshrl.u32 %v570, 7
          %v572 = vsub.s32 2, %v571
          %v573 = vrot.slane %v563, %v572
          %v574 = vlaneseq
          %v575 = vshrl.u32 %v574, 7
          %v576 = vsub.s32 2, %v575
          %v577 = vrot.slane %v567, %v576
          %v578 = vsel %vm431, %v573, 0.0
          %v579 = vsel %vm432, %v577, 0.0
          %v580 = vsel %vm433, %v573, 0.0
          %v581 = vsel %vm434, %v577, 0.0
          %v582 = vsel %vm435, %v573, 0.0
          %v583 = vsel %vm436, %v577, 0.0
          %v584 = vsel %vm437, %v573, 0.0
          %v585 = vsel %vm438, %v577, 0.0
          %v586 = vsel %vm439, %v573, 0.0
          %v587 = vsel %vm440, %v577, 0.0
          %v588 = vsel %vm441, %v573, 0.0
          %v589 = vsel %vm442, %v577, 0.0
          %v590 = vsel %vm443, %v573, 0.0
          %v591 = vsel %vm444, %v577, 0.0
          %v592 = vsel %vm445, %v573, 0.0
          %v593 = vsel %vm446, %v577, 0.0
          %v594 = vsel %vm447, %v573, 0.0
          %v595 = vsel %vm448, %v577, 0.0
          %v596 = vsel %vm449, %v573, 0.0
          %v597 = vsel %vm450, %v577, 0.0
          %v598 = vsel %vm451, %v573, 0.0
          %v599 = vsel %vm452, %v577, 0.0
          %v600 = vsel %vm453, %v573, 0.0
          %v601 = vsel %vm454, %v577, 0.0
          %v602 = vsel %vm455, %v573, 0.0
          %v603 = vsel %vm456, %v577, 0.0
          %v604 = vsel %vm457, %v573, 0.0
          %v605 = vsel %vm458, %v577, 0.0
          %v606 = vsel %vm459, %v573, 0.0
          %v607 = vsel %vm460, %v577, 0.0
          %v608 = vsel %vm461, %v573, 0.0
          %v609 = vsel %vm462, %v577, 0.0
          %v610 = vsel %vm463, %v573, 0.0
          %v611 = vsel %vm464, %v577, 0.0
          %v612 = vsel %vm465, %v573, 0.0
          %v613 = vsel %vm466, %v577, 0.0
          %v614 = vsel %vm467, %v573, 0.0
          %v615 = vsel %vm468, %v577, 0.0
          %v616 = vsel %vm469, %v573, 0.0
          %v617 = vsel %vm470, %v577, 0.0
          %v618 = vsel %vm471, %v573, 0.0
          %v619 = vsel %vm472, %v577, 0.0
          %v620 = vsel %vm473, %v573, 0.0
          %v621 = vsel %vm474, %v577, 0.0
          %v622 = vsel %vm475, %v573, 0.0
          %v623 = vsel %vm476, %v577, 0.0
          %v624 = vsel %vm477, %v573, 0.0
          %v625 = vsel %vm478, %v577, 0.0
          %v626 = vsel %vm479, %v573, 0.0
          %v627 = vsel %vm480, %v577, 0.0
          %v628 = vsel %vm481, %v573, 0.0
          %v629 = vsel %vm482, %v577, 0.0
          %v630 = vsel %vm483, %v573, 0.0
          %v631 = vsel %vm484, %v577, 0.0
          %v632 = vsel %vm485, %v573, 0.0
          %v633 = vsel %vm486, %v577, 0.0
          %v634 = vsel %vm487, %v573, 0.0
          %v635 = vsel %vm488, %v577, 0.0
          %v636 = vsel %vm489, %v573, 0.0
          %v637 = vsel %vm490, %v577, 0.0
          %v638 = vsel %vm491, %v573, 0.0
          %v639 = vsel %vm492, %v577, 0.0
          %v640 = vsel %vm493, %v573, 0.0
          %v641 = vsel %vm494, %v577, 0.0
          %v642 = vsel %vm495, %v573, 0.0
          %v643 = vsel %vm496, %v577, 0.0
          %v644 = vsel %vm497, %v573, 0.0
          %v645 = vsel %vm498, %v577, 0.0
          %v646 = vsel %vm499, %v573, 0.0
          %v647 = vsel %vm500, %v577, 0.0
          %v648 = vsel %vm501, %v573, 0.0
          %v649 = vsel %vm502, %v577, 0.0
          %v650 = vsel %vm503, %v573, 0.0
          %v651 = vsel %vm504, %v577, 0.0
          %v652 = vsel %vm505, %v573, 0.0
          %v653 = vsel %vm506, %v577, 0.0
          %v654 = vsel %vm507, %v573, 0.0
          %v655 = vsel %vm508, %v577, 0.0
          %v656 = vsel %vm509, %v573, 0.0
          %v657 = vsel %vm510, %v577, 0.0
          %v658 = vsel %vm511, %v573, 0.0
          %v659 = vsel %vm512, %v577, 0.0
          %v660 = vsel %vm513, %v573, 0.0
          %v661 = vsel %vm514, %v577, 0.0
          %v662 = vsel %vm515, %v573, 0.0
          %v663 = vsel %vm516, %v577, 0.0
          %v664 = vsel %vm517, %v573, 0.0
          %v665 = vsel %vm518, %v577, 0.0
          %v666 = vsel %vm519, %v573, 0.0
          %v667 = vsel %vm520, %v577, 0.0
          %v668 = vsel %vm521, %v573, 0.0
          %v669 = vsel %vm522, %v577, 0.0
          %v670 = vsel %vm523, %v573, 0.0
          %v671 = vsel %vm524, %v577, 0.0
          %v672 = vsel %vm525, %v573, 0.0
          %v673 = vsel %vm526, %v577, 0.0
          %v674 = vsel %vm527, %v573, 0.0
          %v675 = vsel %vm528, %v577, 0.0
          %v676 = vsel %vm529, %v573, 0.0
          %v677 = vsel %vm530, %v577, 0.0
          %v678 = vsel %vm531, %v573, 0.0
          %v679 = vsel %vm532, %v577, 0.0
          %v680 = vsel %vm533, %v573, 0.0
          %v681 = vsel %vm534, %v577, 0.0
          %v682 = vsel %vm535, %v573, 0.0
          %v683 = vsel %vm536, %v577, 0.0
          %v684 = vsel %vm537, %v573, 0.0
          %v685 = vsel %vm538, %v577, 0.0
          %v686 = vsel %vm539, %v573, 0.0
          %v687 = vsel %vm540, %v577, 0.0
          %v688 = vsel %vm541, %v573, 0.0
          %v689 = vsel %vm542, %v577, 0.0
          %v690 = vsel %vm543, %v573, 0.0
          %v691 = vsel %vm544, %v577, 0.0
          %v692 = vsel %vm545, %v573, 0.0
          %v693 = vsel %vm546, %v577, 0.0
          %v694 = vsel %vm547, %v573, 0.0
          %v695 = vsel %vm548, %v577, 0.0
          %v696 = vsel %vm549, %v573, 0.0
          %v697 = vsel %vm550, %v577, 0.0
          %v698 = vsel %vm551, %v573, 0.0
          %v699 = vsel %vm552, %v577, 0.0
          %v700 = vsel %vm553, %v573, 0.0
          %v701 = vsel %vm554, %v577, 0.0
          %v702 = vsel %vm555, %v573, 0.0
          %v703 = vsel %vm556, %v577, 0.0
          %v704 = vsel %vm557, %v573, 0.0
          %v705 = vsel %vm558, %v577, 0.0
          %v706 = vlaneseq
          %v707 = vshrl.u32 %v706, 7
          %v708 = vsub.s32 2, %v707
          %v709 = vrot.slane %v248, %v708
          %v710 = vlaneseq
          %v711 = vshrl.u32 %v710, 7
          %v712 = vsub.s32 6, %v711
          %v713 = vrot.slane %v248, %v712
          %v714 = vlaneseq
          %v715 = vshrl.u32 %v714, 7
          %v716 = vsub.s32 2, %v715
          %v717 = vrot.slane %v709, %v716
          %v718 = vlaneseq
          %v719 = vshrl.u32 %v718, 7
          %v720 = vsub.s32 2, %v719
          %v721 = vrot.slane %v713, %v720
          %vm722 = vcmp.eq.s32.totalorder %v351, %v717
          %vm723 = vcmp.eq.s32.totalorder %v351, %v721
          %vm724 = vcmp.eq.s32.totalorder %v352, %v717
          %vm725 = vcmp.eq.s32.totalorder %v352, %v721
          %vm726 = vcmp.eq.s32.totalorder %v353, %v717
          %vm727 = vcmp.eq.s32.totalorder %v353, %v721
          %vm728 = vcmp.eq.s32.totalorder %v354, %v717
          %vm729 = vcmp.eq.s32.totalorder %v354, %v721
          %vm730 = vcmp.eq.s32.totalorder %v355, %v717
          %vm731 = vcmp.eq.s32.totalorder %v355, %v721
          %vm732 = vcmp.eq.s32.totalorder %v356, %v717
          %vm733 = vcmp.eq.s32.totalorder %v356, %v721
          %vm734 = vcmp.eq.s32.totalorder %v357, %v717
          %vm735 = vcmp.eq.s32.totalorder %v357, %v721
          %vm736 = vcmp.eq.s32.totalorder %v358, %v717
          %vm737 = vcmp.eq.s32.totalorder %v358, %v721
          %vm738 = vcmp.eq.s32.totalorder %v359, %v717
          %vm739 = vcmp.eq.s32.totalorder %v359, %v721
          %vm740 = vcmp.eq.s32.totalorder %v360, %v717
          %vm741 = vcmp.eq.s32.totalorder %v360, %v721
          %vm742 = vcmp.eq.s32.totalorder %v361, %v717
          %vm743 = vcmp.eq.s32.totalorder %v361, %v721
          %vm744 = vcmp.eq.s32.totalorder %v362, %v717
          %vm745 = vcmp.eq.s32.totalorder %v362, %v721
          %vm746 = vcmp.eq.s32.totalorder %v363, %v717
          %vm747 = vcmp.eq.s32.totalorder %v363, %v721
          %vm748 = vcmp.eq.s32.totalorder %v364, %v717
          %vm749 = vcmp.eq.s32.totalorder %v364, %v721
          %vm750 = vcmp.eq.s32.totalorder %v365, %v717
          %vm751 = vcmp.eq.s32.totalorder %v365, %v721
          %vm752 = vcmp.eq.s32.totalorder %v366, %v717
          %vm753 = vcmp.eq.s32.totalorder %v366, %v721
          %vm754 = vcmp.eq.s32.totalorder %v367, %v717
          %vm755 = vcmp.eq.s32.totalorder %v367, %v721
          %vm756 = vcmp.eq.s32.totalorder %v368, %v717
          %vm757 = vcmp.eq.s32.totalorder %v368, %v721
          %vm758 = vcmp.eq.s32.totalorder %v369, %v717
          %vm759 = vcmp.eq.s32.totalorder %v369, %v721
          %vm760 = vcmp.eq.s32.totalorder %v370, %v717
          %vm761 = vcmp.eq.s32.totalorder %v370, %v721
          %vm762 = vcmp.eq.s32.totalorder %v371, %v717
          %vm763 = vcmp.eq.s32.totalorder %v371, %v721
          %vm764 = vcmp.eq.s32.totalorder %v372, %v717
          %vm765 = vcmp.eq.s32.totalorder %v372, %v721
          %vm766 = vcmp.eq.s32.totalorder %v373, %v717
          %vm767 = vcmp.eq.s32.totalorder %v373, %v721
          %vm768 = vcmp.eq.s32.totalorder %v374, %v717
          %vm769 = vcmp.eq.s32.totalorder %v374, %v721
          %vm770 = vcmp.eq.s32.totalorder %v375, %v717
          %vm771 = vcmp.eq.s32.totalorder %v375, %v721
          %vm772 = vcmp.eq.s32.totalorder %v376, %v717
          %vm773 = vcmp.eq.s32.totalorder %v376, %v721
          %vm774 = vcmp.eq.s32.totalorder %v377, %v717
          %vm775 = vcmp.eq.s32.totalorder %v377, %v721
          %vm776 = vcmp.eq.s32.totalorder %v378, %v717
          %vm777 = vcmp.eq.s32.totalorder %v378, %v721
          %vm778 = vcmp.eq.s32.totalorder %v379, %v717
          %vm779 = vcmp.eq.s32.totalorder %v379, %v721
          %vm780 = vcmp.eq.s32.totalorder %v380, %v717
          %vm781 = vcmp.eq.s32.totalorder %v380, %v721
          %vm782 = vcmp.eq.s32.totalorder %v381, %v717
          %vm783 = vcmp.eq.s32.totalorder %v381, %v721
          %vm784 = vcmp.eq.s32.totalorder %v382, %v717
          %vm785 = vcmp.eq.s32.totalorder %v382, %v721
          %vm786 = vcmp.eq.s32.totalorder %v383, %v717
          %vm787 = vcmp.eq.s32.totalorder %v383, %v721
          %vm788 = vcmp.eq.s32.totalorder %v384, %v717
          %vm789 = vcmp.eq.s32.totalorder %v384, %v721
          %vm790 = vcmp.eq.s32.totalorder %v385, %v717
          %vm791 = vcmp.eq.s32.totalorder %v385, %v721
          %vm792 = vcmp.eq.s32.totalorder %v386, %v717
          %vm793 = vcmp.eq.s32.totalorder %v386, %v721
          %vm794 = vcmp.eq.s32.totalorder %v387, %v717
          %vm795 = vcmp.eq.s32.totalorder %v387, %v721
          %vm796 = vcmp.eq.s32.totalorder %v388, %v717
          %vm797 = vcmp.eq.s32.totalorder %v388, %v721
          %vm798 = vcmp.eq.s32.totalorder %v389, %v717
          %vm799 = vcmp.eq.s32.totalorder %v389, %v721
          %vm800 = vcmp.eq.s32.totalorder %v390, %v717
          %vm801 = vcmp.eq.s32.totalorder %v390, %v721
          %vm802 = vcmp.eq.s32.totalorder %v391, %v717
          %vm803 = vcmp.eq.s32.totalorder %v391, %v721
          %vm804 = vcmp.eq.s32.totalorder %v392, %v717
          %vm805 = vcmp.eq.s32.totalorder %v392, %v721
          %vm806 = vcmp.eq.s32.totalorder %v393, %v717
          %vm807 = vcmp.eq.s32.totalorder %v393, %v721
          %vm808 = vcmp.eq.s32.totalorder %v394, %v717
          %vm809 = vcmp.eq.s32.totalorder %v394, %v721
          %vm810 = vcmp.eq.s32.totalorder %v395, %v717
          %vm811 = vcmp.eq.s32.totalorder %v395, %v721
          %vm812 = vcmp.eq.s32.totalorder %v396, %v717
          %vm813 = vcmp.eq.s32.totalorder %v396, %v721
          %vm814 = vcmp.eq.s32.totalorder %v397, %v717
          %vm815 = vcmp.eq.s32.totalorder %v397, %v721
          %vm816 = vcmp.eq.s32.totalorder %v398, %v717
          %vm817 = vcmp.eq.s32.totalorder %v398, %v721
          %vm818 = vcmp.eq.s32.totalorder %v399, %v717
          %vm819 = vcmp.eq.s32.totalorder %v399, %v721
          %vm820 = vcmp.eq.s32.totalorder %v400, %v717
          %vm821 = vcmp.eq.s32.totalorder %v400, %v721
          %vm822 = vcmp.eq.s32.totalorder %v401, %v717
          %vm823 = vcmp.eq.s32.totalorder %v401, %v721
          %vm824 = vcmp.eq.s32.totalorder %v402, %v717
          %vm825 = vcmp.eq.s32.totalorder %v402, %v721
          %vm826 = vcmp.eq.s32.totalorder %v403, %v717
          %vm827 = vcmp.eq.s32.totalorder %v403, %v721
          %vm828 = vcmp.eq.s32.totalorder %v404, %v717
          %vm829 = vcmp.eq.s32.totalorder %v404, %v721
          %vm830 = vcmp.eq.s32.totalorder %v405, %v717
          %vm831 = vcmp.eq.s32.totalorder %v405, %v721
          %vm832 = vcmp.eq.s32.totalorder %v406, %v717
          %vm833 = vcmp.eq.s32.totalorder %v406, %v721
          %vm834 = vcmp.eq.s32.totalorder %v407, %v717
          %vm835 = vcmp.eq.s32.totalorder %v407, %v721
          %vm836 = vcmp.eq.s32.totalorder %v408, %v717
          %vm837 = vcmp.eq.s32.totalorder %v408, %v721
          %vm838 = vcmp.eq.s32.totalorder %v409, %v717
          %vm839 = vcmp.eq.s32.totalorder %v409, %v721
          %vm840 = vcmp.eq.s32.totalorder %v410, %v717
          %vm841 = vcmp.eq.s32.totalorder %v410, %v721
          %vm842 = vcmp.eq.s32.totalorder %v411, %v717
          %vm843 = vcmp.eq.s32.totalorder %v411, %v721
          %vm844 = vcmp.eq.s32.totalorder %v412, %v717
          %vm845 = vcmp.eq.s32.totalorder %v412, %v721
          %vm846 = vcmp.eq.s32.totalorder %v413, %v717
          %vm847 = vcmp.eq.s32.totalorder %v413, %v721
          %vm848 = vcmp.eq.s32.totalorder %v414, %v717
          %vm849 = vcmp.eq.s32.totalorder %v414, %v721
          %v851 = vlaneseq
          %v852 = vshrl.u32 %v851, 7
          %v853 = vsub.s32 2, %v852
          %v854 = vrot.slane %v252, %v853
          %v855 = vlaneseq
          %v856 = vshrl.u32 %v855, 7
          %v857 = vsub.s32 6, %v856
          %v858 = vrot.slane %v252, %v857
          %v861 = vlaneseq
          %v862 = vshrl.u32 %v861, 7
          %v863 = vsub.s32 2, %v862
          %v864 = vrot.slane %v854, %v863
          %v865 = vlaneseq
          %v866 = vshrl.u32 %v865, 7
          %v867 = vsub.s32 2, %v866
          %v868 = vrot.slane %v858, %v867
          %v869 = vsel %vm722, %v864, 0.0
          %v870 = vsel %vm723, %v868, 0.0
          %v871 = vsel %vm724, %v864, 0.0
          %v872 = vsel %vm725, %v868, 0.0
          %v873 = vsel %vm726, %v864, 0.0
          %v874 = vsel %vm727, %v868, 0.0
          %v875 = vsel %vm728, %v864, 0.0
          %v876 = vsel %vm729, %v868, 0.0
          %v877 = vsel %vm730, %v864, 0.0
          %v878 = vsel %vm731, %v868, 0.0
          %v879 = vsel %vm732, %v864, 0.0
          %v880 = vsel %vm733, %v868, 0.0
          %v881 = vsel %vm734, %v864, 0.0
          %v882 = vsel %vm735, %v868, 0.0
          %v883 = vsel %vm736, %v864, 0.0
          %v884 = vsel %vm737, %v868, 0.0
          %v885 = vsel %vm738, %v864, 0.0
          %v886 = vsel %vm739, %v868, 0.0
          %v887 = vsel %vm740, %v864, 0.0
          %v888 = vsel %vm741, %v868, 0.0
          %v889 = vsel %vm742, %v864, 0.0
          %v890 = vsel %vm743, %v868, 0.0
          %v891 = vsel %vm744, %v864, 0.0
          %v892 = vsel %vm745, %v868, 0.0
          %v893 = vsel %vm746, %v864, 0.0
          %v894 = vsel %vm747, %v868, 0.0
          %v895 = vsel %vm748, %v864, 0.0
          %v896 = vsel %vm749, %v868, 0.0
          %v897 = vsel %vm750, %v864, 0.0
          %v898 = vsel %vm751, %v868, 0.0
          %v899 = vsel %vm752, %v864, 0.0
          %v900 = vsel %vm753, %v868, 0.0
          %v901 = vsel %vm754, %v864, 0.0
          %v902 = vsel %vm755, %v868, 0.0
          %v903 = vsel %vm756, %v864, 0.0
          %v904 = vsel %vm757, %v868, 0.0
          %v905 = vsel %vm758, %v864, 0.0
          %v906 = vsel %vm759, %v868, 0.0
          %v907 = vsel %vm760, %v864, 0.0
          %v908 = vsel %vm761, %v868, 0.0
          %v909 = vsel %vm762, %v864, 0.0
          %v910 = vsel %vm763, %v868, 0.0
          %v911 = vsel %vm764, %v864, 0.0
          %v912 = vsel %vm765, %v868, 0.0
          %v913 = vsel %vm766, %v864, 0.0
          %v914 = vsel %vm767, %v868, 0.0
          %v915 = vsel %vm768, %v864, 0.0
          %v916 = vsel %vm769, %v868, 0.0
          %v917 = vsel %vm770, %v864, 0.0
          %v918 = vsel %vm771, %v868, 0.0
          %v919 = vsel %vm772, %v864, 0.0
          %v920 = vsel %vm773, %v868, 0.0
          %v921 = vsel %vm774, %v864, 0.0
          %v922 = vsel %vm775, %v868, 0.0
          %v923 = vsel %vm776, %v864, 0.0
          %v924 = vsel %vm777, %v868, 0.0
          %v925 = vsel %vm778, %v864, 0.0
          %v926 = vsel %vm779, %v868, 0.0
          %v927 = vsel %vm780, %v864, 0.0
          %v928 = vsel %vm781, %v868, 0.0
          %v929 = vsel %vm782, %v864, 0.0
          %v930 = vsel %vm783, %v868, 0.0
          %v931 = vsel %vm784, %v864, 0.0
          %v932 = vsel %vm785, %v868, 0.0
          %v933 = vsel %vm786, %v864, 0.0
          %v934 = vsel %vm787, %v868, 0.0
          %v935 = vsel %vm788, %v864, 0.0
          %v936 = vsel %vm789, %v868, 0.0
          %v937 = vsel %vm790, %v864, 0.0
          %v938 = vsel %vm791, %v868, 0.0
          %v939 = vsel %vm792, %v864, 0.0
          %v940 = vsel %vm793, %v868, 0.0
          %v941 = vsel %vm794, %v864, 0.0
          %v942 = vsel %vm795, %v868, 0.0
          %v943 = vsel %vm796, %v864, 0.0
          %v944 = vsel %vm797, %v868, 0.0
          %v945 = vsel %vm798, %v864, 0.0
          %v946 = vsel %vm799, %v868, 0.0
          %v947 = vsel %vm800, %v864, 0.0
          %v948 = vsel %vm801, %v868, 0.0
          %v949 = vsel %vm802, %v864, 0.0
          %v950 = vsel %vm803, %v868, 0.0
          %v951 = vsel %vm804, %v864, 0.0
          %v952 = vsel %vm805, %v868, 0.0
          %v953 = vsel %vm806, %v864, 0.0
          %v954 = vsel %vm807, %v868, 0.0
          %v955 = vsel %vm808, %v864, 0.0
          %v956 = vsel %vm809, %v868, 0.0
          %v957 = vsel %vm810, %v864, 0.0
          %v958 = vsel %vm811, %v868, 0.0
          %v959 = vsel %vm812, %v864, 0.0
          %v960 = vsel %vm813, %v868, 0.0
          %v961 = vsel %vm814, %v864, 0.0
          %v962 = vsel %vm815, %v868, 0.0
          %v963 = vsel %vm816, %v864, 0.0
          %v964 = vsel %vm817, %v868, 0.0
          %v965 = vsel %vm818, %v864, 0.0
          %v966 = vsel %vm819, %v868, 0.0
          %v967 = vsel %vm820, %v864, 0.0
          %v968 = vsel %vm821, %v868, 0.0
          %v969 = vsel %vm822, %v864, 0.0
          %v970 = vsel %vm823, %v868, 0.0
          %v971 = vsel %vm824, %v864, 0.0
          %v972 = vsel %vm825, %v868, 0.0
          %v973 = vsel %vm826, %v864, 0.0
          %v974 = vsel %vm827, %v868, 0.0
          %v975 = vsel %vm828, %v864, 0.0
          %v976 = vsel %vm829, %v868, 0.0
          %v977 = vsel %vm830, %v864, 0.0
          %v978 = vsel %vm831, %v868, 0.0
          %v979 = vsel %vm832, %v864, 0.0
          %v980 = vsel %vm833, %v868, 0.0
          %v981 = vsel %vm834, %v864, 0.0
          %v982 = vsel %vm835, %v868, 0.0
          %v983 = vsel %vm836, %v864, 0.0
          %v984 = vsel %vm837, %v868, 0.0
          %v985 = vsel %vm838, %v864, 0.0
          %v986 = vsel %vm839, %v868, 0.0
          %v987 = vsel %vm840, %v864, 0.0
          %v988 = vsel %vm841, %v868, 0.0
          %v989 = vsel %vm842, %v864, 0.0
          %v990 = vsel %vm843, %v868, 0.0
          %v991 = vsel %vm844, %v864, 0.0
          %v992 = vsel %vm845, %v868, 0.0
          %v993 = vsel %vm846, %v864, 0.0
          %v994 = vsel %vm847, %v868, 0.0
          %v995 = vsel %vm848, %v864, 0.0
          %v996 = vsel %vm849, %v868, 0.0
          %v997 = vadd.f32 %v578, %v869
          %v998 = vadd.f32 %v579, %v870
          %v999 = vadd.f32 %v580, %v871
          %v1000 = vadd.f32 %v581, %v872
          %v1001 = vadd.f32 %v582, %v873
          %v1002 = vadd.f32 %v583, %v874
          %v1003 = vadd.f32 %v584, %v875
          %v1004 = vadd.f32 %v585, %v876
          %v1005 = vadd.f32 %v586, %v877
          %v1006 = vadd.f32 %v587, %v878
          %v1007 = vadd.f32 %v588, %v879
          %v1008 = vadd.f32 %v589, %v880
          %v1009 = vadd.f32 %v590, %v881
          %v1010 = vadd.f32 %v591, %v882
          %v1011 = vadd.f32 %v592, %v883
          %v1012 = vadd.f32 %v593, %v884
          %v1013 = vadd.f32 %v594, %v885
          %v1014 = vadd.f32 %v595, %v886
          %v1015 = vadd.f32 %v596, %v887
          %v1016 = vadd.f32 %v597, %v888
          %v1017 = vadd.f32 %v598, %v889
          %v1018 = vadd.f32 %v599, %v890
          %v1019 = vadd.f32 %v600, %v891
          %v1020 = vadd.f32 %v601, %v892
          %v1021 = vadd.f32 %v602, %v893
          %v1022 = vadd.f32 %v603, %v894
          %v1023 = vadd.f32 %v604, %v895
          %v1024 = vadd.f32 %v605, %v896
          %v1025 = vadd.f32 %v606, %v897
          %v1026 = vadd.f32 %v607, %v898
          %v1027 = vadd.f32 %v608, %v899
          %v1028 = vadd.f32 %v609, %v900
          %v1029 = vadd.f32 %v610, %v901
          %v1030 = vadd.f32 %v611, %v902
          %v1031 = vadd.f32 %v612, %v903
          %v1032 = vadd.f32 %v613, %v904
          %v1033 = vadd.f32 %v614, %v905
          %v1034 = vadd.f32 %v615, %v906
          %v1035 = vadd.f32 %v616, %v907
          %v1036 = vadd.f32 %v617, %v908
          %v1037 = vadd.f32 %v618, %v909
          %v1038 = vadd.f32 %v619, %v910
          %v1039 = vadd.f32 %v620, %v911
          %v1040 = vadd.f32 %v621, %v912
          %v1041 = vadd.f32 %v622, %v913
          %v1042 = vadd.f32 %v623, %v914
          %v1043 = vadd.f32 %v624, %v915
          %v1044 = vadd.f32 %v625, %v916
          %v1045 = vadd.f32 %v626, %v917
          %v1046 = vadd.f32 %v627, %v918
          %v1047 = vadd.f32 %v628, %v919
          %v1048 = vadd.f32 %v629, %v920
          %v1049 = vadd.f32 %v630, %v921
          %v1050 = vadd.f32 %v631, %v922
          %v1051 = vadd.f32 %v632, %v923
          %v1052 = vadd.f32 %v633, %v924
          %v1053 = vadd.f32 %v634, %v925
          %v1054 = vadd.f32 %v635, %v926
          %v1055 = vadd.f32 %v636, %v927
          %v1056 = vadd.f32 %v637, %v928
          %v1057 = vadd.f32 %v638, %v929
          %v1058 = vadd.f32 %v639, %v930
          %v1059 = vadd.f32 %v640, %v931
          %v1060 = vadd.f32 %v641, %v932
          %v1061 = vadd.f32 %v642, %v933
          %v1062 = vadd.f32 %v643, %v934
          %v1063 = vadd.f32 %v644, %v935
          %v1064 = vadd.f32 %v645, %v936
          %v1065 = vadd.f32 %v646, %v937
          %v1066 = vadd.f32 %v647, %v938
          %v1067 = vadd.f32 %v648, %v939
          %v1068 = vadd.f32 %v649, %v940
          %v1069 = vadd.f32 %v650, %v941
          %v1070 = vadd.f32 %v651, %v942
          %v1071 = vadd.f32 %v652, %v943
          %v1072 = vadd.f32 %v653, %v944
          %v1073 = vadd.f32 %v654, %v945
          %v1074 = vadd.f32 %v655, %v946
          %v1075 = vadd.f32 %v656, %v947
          %v1076 = vadd.f32 %v657, %v948
          %v1077 = vadd.f32 %v658, %v949
          %v1078 = vadd.f32 %v659, %v950
          %v1079 = vadd.f32 %v660, %v951
          %v1080 = vadd.f32 %v661, %v952
          %v1081 = vadd.f32 %v662, %v953
          %v1082 = vadd.f32 %v663, %v954
          %v1083 = vadd.f32 %v664, %v955
          %v1084 = vadd.f32 %v665, %v956
          %v1085 = vadd.f32 %v666, %v957
          %v1086 = vadd.f32 %v667, %v958
          %v1087 = vadd.f32 %v668, %v959
          %v1088 = vadd.f32 %v669, %v960
          %v1089 = vadd.f32 %v670, %v961
          %v1090 = vadd.f32 %v671, %v962
          %v1091 = vadd.f32 %v672, %v963
          %v1092 = vadd.f32 %v673, %v964
          %v1093 = vadd.f32 %v674, %v965
          %v1094 = vadd.f32 %v675, %v966
          %v1095 = vadd.f32 %v676, %v967
          %v1096 = vadd.f32 %v677, %v968
          %v1097 = vadd.f32 %v678, %v969
          %v1098 = vadd.f32 %v679, %v970
          %v1099 = vadd.f32 %v680, %v971
          %v1100 = vadd.f32 %v681, %v972
          %v1101 = vadd.f32 %v682, %v973
          %v1102 = vadd.f32 %v683, %v974
          %v1103 = vadd.f32 %v684, %v975
          %v1104 = vadd.f32 %v685, %v976
          %v1105 = vadd.f32 %v686, %v977
          %v1106 = vadd.f32 %v687, %v978
          %v1107 = vadd.f32 %v688, %v979
          %v1108 = vadd.f32 %v689, %v980
          %v1109 = vadd.f32 %v690, %v981
          %v1110 = vadd.f32 %v691, %v982
          %v1111 = vadd.f32 %v692, %v983
          %v1112 = vadd.f32 %v693, %v984
          %v1113 = vadd.f32 %v694, %v985
          %v1114 = vadd.f32 %v695, %v986
          %v1115 = vadd.f32 %v696, %v987
          %v1116 = vadd.f32 %v697, %v988
          %v1117 = vadd.f32 %v698, %v989
          %v1118 = vadd.f32 %v699, %v990
          %v1119 = vadd.f32 %v700, %v991
          %v1120 = vadd.f32 %v701, %v992
          %v1121 = vadd.f32 %v702, %v993
          %v1122 = vadd.f32 %v703, %v994
          %v1123 = vadd.f32 %v704, %v995
          %v1124 = vadd.f32 %v705, %v996
          %v1125 = vlaneseq
          %v1126 = vshrl.u32 %v1125, 7
          %v1127 = vsub.s32 2, %v1126
          %v1128 = vrot.slane %v256, %v1127
          %v1129 = vlaneseq
          %v1130 = vshrl.u32 %v1129, 7
          %v1131 = vsub.s32 6, %v1130
          %v1132 = vrot.slane %v256, %v1131
          %v1133 = vlaneseq
          %v1134 = vshrl.u32 %v1133, 7
          %v1135 = vsub.s32 2, %v1134
          %v1136 = vrot.slane %v1128, %v1135
          %v1137 = vlaneseq
          %v1138 = vshrl.u32 %v1137, 7
          %v1139 = vsub.s32 2, %v1138
          %v1140 = vrot.slane %v1132, %v1139
          %vm1141 = vcmp.eq.s32.totalorder %v351, %v1136
          %vm1142 = vcmp.eq.s32.totalorder %v351, %v1140
          %vm1143 = vcmp.eq.s32.totalorder %v352, %v1136
          %vm1144 = vcmp.eq.s32.totalorder %v352, %v1140
          %vm1145 = vcmp.eq.s32.totalorder %v353, %v1136
          %vm1146 = vcmp.eq.s32.totalorder %v353, %v1140
          %vm1147 = vcmp.eq.s32.totalorder %v354, %v1136
          %vm1148 = vcmp.eq.s32.totalorder %v354, %v1140
          %vm1149 = vcmp.eq.s32.totalorder %v355, %v1136
          %vm1150 = vcmp.eq.s32.totalorder %v355, %v1140
          %vm1151 = vcmp.eq.s32.totalorder %v356, %v1136
          %vm1152 = vcmp.eq.s32.totalorder %v356, %v1140
          %vm1153 = vcmp.eq.s32.totalorder %v357, %v1136
          %vm1154 = vcmp.eq.s32.totalorder %v357, %v1140
          %vm1155 = vcmp.eq.s32.totalorder %v358, %v1136
          %vm1156 = vcmp.eq.s32.totalorder %v358, %v1140
          %vm1157 = vcmp.eq.s32.totalorder %v359, %v1136
          %vm1158 = vcmp.eq.s32.totalorder %v359, %v1140
          %vm1159 = vcmp.eq.s32.totalorder %v360, %v1136
          %vm1160 = vcmp.eq.s32.totalorder %v360, %v1140
          %vm1161 = vcmp.eq.s32.totalorder %v361, %v1136
          %vm1162 = vcmp.eq.s32.totalorder %v361, %v1140
          %vm1163 = vcmp.eq.s32.totalorder %v362, %v1136
          %vm1164 = vcmp.eq.s32.totalorder %v362, %v1140
          %vm1165 = vcmp.eq.s32.totalorder %v363, %v1136
          %vm1166 = vcmp.eq.s32.totalorder %v363, %v1140
          %vm1167 = vcmp.eq.s32.totalorder %v364, %v1136
          %vm1168 = vcmp.eq.s32.totalorder %v364, %v1140
          %vm1169 = vcmp.eq.s32.totalorder %v365, %v1136
          %vm1170 = vcmp.eq.s32.totalorder %v365, %v1140
          %vm1171 = vcmp.eq.s32.totalorder %v366, %v1136
          %vm1172 = vcmp.eq.s32.totalorder %v366, %v1140
          %vm1173 = vcmp.eq.s32.totalorder %v367, %v1136
          %vm1174 = vcmp.eq.s32.totalorder %v367, %v1140
          %vm1175 = vcmp.eq.s32.totalorder %v368, %v1136
          %vm1176 = vcmp.eq.s32.totalorder %v368, %v1140
          %vm1177 = vcmp.eq.s32.totalorder %v369, %v1136
          %vm1178 = vcmp.eq.s32.totalorder %v369, %v1140
          %vm1179 = vcmp.eq.s32.totalorder %v370, %v1136
          %vm1180 = vcmp.eq.s32.totalorder %v370, %v1140
          %vm1181 = vcmp.eq.s32.totalorder %v371, %v1136
          %vm1182 = vcmp.eq.s32.totalorder %v371, %v1140
          %vm1183 = vcmp.eq.s32.totalorder %v372, %v1136
          %vm1184 = vcmp.eq.s32.totalorder %v372, %v1140
          %vm1185 = vcmp.eq.s32.totalorder %v373, %v1136
          %vm1186 = vcmp.eq.s32.totalorder %v373, %v1140
          %vm1187 = vcmp.eq.s32.totalorder %v374, %v1136
          %vm1188 = vcmp.eq.s32.totalorder %v374, %v1140
          %vm1189 = vcmp.eq.s32.totalorder %v375, %v1136
          %vm1190 = vcmp.eq.s32.totalorder %v375, %v1140
          %vm1191 = vcmp.eq.s32.totalorder %v376, %v1136
          %vm1192 = vcmp.eq.s32.totalorder %v376, %v1140
          %vm1193 = vcmp.eq.s32.totalorder %v377, %v1136
          %vm1194 = vcmp.eq.s32.totalorder %v377, %v1140
          %vm1195 = vcmp.eq.s32.totalorder %v378, %v1136
          %vm1196 = vcmp.eq.s32.totalorder %v378, %v1140
          %vm1197 = vcmp.eq.s32.totalorder %v379, %v1136
          %vm1198 = vcmp.eq.s32.totalorder %v379, %v1140
          %vm1199 = vcmp.eq.s32.totalorder %v380, %v1136
          %vm1200 = vcmp.eq.s32.totalorder %v380, %v1140
          %vm1201 = vcmp.eq.s32.totalorder %v381, %v1136
          %vm1202 = vcmp.eq.s32.totalorder %v381, %v1140
          %vm1203 = vcmp.eq.s32.totalorder %v382, %v1136
          %vm1204 = vcmp.eq.s32.totalorder %v382, %v1140
          %vm1205 = vcmp.eq.s32.totalorder %v383, %v1136
          %vm1206 = vcmp.eq.s32.totalorder %v383, %v1140
          %vm1207 = vcmp.eq.s32.totalorder %v384, %v1136
          %vm1208 = vcmp.eq.s32.totalorder %v384, %v1140
          %vm1209 = vcmp.eq.s32.totalorder %v385, %v1136
          %vm1210 = vcmp.eq.s32.totalorder %v385, %v1140
          %vm1211 = vcmp.eq.s32.totalorder %v386, %v1136
          %vm1212 = vcmp.eq.s32.totalorder %v386, %v1140
          %vm1213 = vcmp.eq.s32.totalorder %v387, %v1136
          %vm1214 = vcmp.eq.s32.totalorder %v387, %v1140
          %vm1215 = vcmp.eq.s32.totalorder %v388, %v1136
          %vm1216 = vcmp.eq.s32.totalorder %v388, %v1140
          %vm1217 = vcmp.eq.s32.totalorder %v389, %v1136
          %vm1218 = vcmp.eq.s32.totalorder %v389, %v1140
          %vm1219 = vcmp.eq.s32.totalorder %v390, %v1136
          %vm1220 = vcmp.eq.s32.totalorder %v390, %v1140
          %vm1221 = vcmp.eq.s32.totalorder %v391, %v1136
          %vm1222 = vcmp.eq.s32.totalorder %v391, %v1140
          %vm1223 = vcmp.eq.s32.totalorder %v392, %v1136
          %vm1224 = vcmp.eq.s32.totalorder %v392, %v1140
          %vm1225 = vcmp.eq.s32.totalorder %v393, %v1136
          %vm1226 = vcmp.eq.s32.totalorder %v393, %v1140
          %vm1227 = vcmp.eq.s32.totalorder %v394, %v1136
          %vm1228 = vcmp.eq.s32.totalorder %v394, %v1140
          %vm1229 = vcmp.eq.s32.totalorder %v395, %v1136
          %vm1230 = vcmp.eq.s32.totalorder %v395, %v1140
          %vm1231 = vcmp.eq.s32.totalorder %v396, %v1136
          %vm1232 = vcmp.eq.s32.totalorder %v396, %v1140
          %vm1233 = vcmp.eq.s32.totalorder %v397, %v1136
          %vm1234 = vcmp.eq.s32.totalorder %v397, %v1140
          %vm1235 = vcmp.eq.s32.totalorder %v398, %v1136
          %vm1236 = vcmp.eq.s32.totalorder %v398, %v1140
          %vm1237 = vcmp.eq.s32.totalorder %v399, %v1136
          %vm1238 = vcmp.eq.s32.totalorder %v399, %v1140
          %vm1239 = vcmp.eq.s32.totalorder %v400, %v1136
          %vm1240 = vcmp.eq.s32.totalorder %v400, %v1140
          %vm1241 = vcmp.eq.s32.totalorder %v401, %v1136
          %vm1242 = vcmp.eq.s32.totalorder %v401, %v1140
          %vm1243 = vcmp.eq.s32.totalorder %v402, %v1136
          %vm1244 = vcmp.eq.s32.totalorder %v402, %v1140
          %vm1245 = vcmp.eq.s32.totalorder %v403, %v1136
          %vm1246 = vcmp.eq.s32.totalorder %v403, %v1140
          %vm1247 = vcmp.eq.s32.totalorder %v404, %v1136
          %vm1248 = vcmp.eq.s32.totalorder %v404, %v1140
          %vm1249 = vcmp.eq.s32.totalorder %v405, %v1136
          %vm1250 = vcmp.eq.s32.totalorder %v405, %v1140
          %vm1251 = vcmp.eq.s32.totalorder %v406, %v1136
          %vm1252 = vcmp.eq.s32.totalorder %v406, %v1140
          %vm1253 = vcmp.eq.s32.totalorder %v407, %v1136
          %vm1254 = vcmp.eq.s32.totalorder %v407, %v1140
          %vm1255 = vcmp.eq.s32.totalorder %v408, %v1136
          %vm1256 = vcmp.eq.s32.totalorder %v408, %v1140
          %vm1257 = vcmp.eq.s32.totalorder %v409, %v1136
          %vm1258 = vcmp.eq.s32.totalorder %v409, %v1140
          %vm1259 = vcmp.eq.s32.totalorder %v410, %v1136
          %vm1260 = vcmp.eq.s32.totalorder %v410, %v1140
          %vm1261 = vcmp.eq.s32.totalorder %v411, %v1136
          %vm1262 = vcmp.eq.s32.totalorder %v411, %v1140
          %vm1263 = vcmp.eq.s32.totalorder %v412, %v1136
          %vm1264 = vcmp.eq.s32.totalorder %v412, %v1140
          %vm1265 = vcmp.eq.s32.totalorder %v413, %v1136
          %vm1266 = vcmp.eq.s32.totalorder %v413, %v1140
          %vm1267 = vcmp.eq.s32.totalorder %v414, %v1136
          %vm1268 = vcmp.eq.s32.totalorder %v414, %v1140
          %v1270 = vlaneseq
          %v1271 = vshrl.u32 %v1270, 7
          %v1272 = vsub.s32 2, %v1271
          %v1273 = vrot.slane %v260, %v1272
          %v1274 = vlaneseq
          %v1275 = vshrl.u32 %v1274, 7
          %v1276 = vsub.s32 6, %v1275
          %v1277 = vrot.slane %v260, %v1276
          %v1280 = vlaneseq
          %v1281 = vshrl.u32 %v1280, 7
          %v1282 = vsub.s32 2, %v1281
          %v1283 = vrot.slane %v1273, %v1282
          %v1284 = vlaneseq
          %v1285 = vshrl.u32 %v1284, 7
          %v1286 = vsub.s32 2, %v1285
          %v1287 = vrot.slane %v1277, %v1286
          %v1288 = vsel %vm1141, %v1283, 0.0
          %v1289 = vsel %vm1142, %v1287, 0.0
          %v1290 = vsel %vm1143, %v1283, 0.0
          %v1291 = vsel %vm1144, %v1287, 0.0
          %v1292 = vsel %vm1145, %v1283, 0.0
          %v1293 = vsel %vm1146, %v1287, 0.0
          %v1294 = vsel %vm1147, %v1283, 0.0
          %v1295 = vsel %vm1148, %v1287, 0.0
          %v1296 = vsel %vm1149, %v1283, 0.0
          %v1297 = vsel %vm1150, %v1287, 0.0
          %v1298 = vsel %vm1151, %v1283, 0.0
          %v1299 = vsel %vm1152, %v1287, 0.0
          %v1300 = vsel %vm1153, %v1283, 0.0
          %v1301 = vsel %vm1154, %v1287, 0.0
          %v1302 = vsel %vm1155, %v1283, 0.0
          %v1303 = vsel %vm1156, %v1287, 0.0
          %v1304 = vsel %vm1157, %v1283, 0.0
          %v1305 = vsel %vm1158, %v1287, 0.0
          %v1306 = vsel %vm1159, %v1283, 0.0
          %v1307 = vsel %vm1160, %v1287, 0.0
          %v1308 = vsel %vm1161, %v1283, 0.0
          %v1309 = vsel %vm1162, %v1287, 0.0
          %v1310 = vsel %vm1163, %v1283, 0.0
          %v1311 = vsel %vm1164, %v1287, 0.0
          %v1312 = vsel %vm1165, %v1283, 0.0
          %v1313 = vsel %vm1166, %v1287, 0.0
          %v1314 = vsel %vm1167, %v1283, 0.0
          %v1315 = vsel %vm1168, %v1287, 0.0
          %v1316 = vsel %vm1169, %v1283, 0.0
          %v1317 = vsel %vm1170, %v1287, 0.0
          %v1318 = vsel %vm1171, %v1283, 0.0
          %v1319 = vsel %vm1172, %v1287, 0.0
          %v1320 = vsel %vm1173, %v1283, 0.0
          %v1321 = vsel %vm1174, %v1287, 0.0
          %v1322 = vsel %vm1175, %v1283, 0.0
          %v1323 = vsel %vm1176, %v1287, 0.0
          %v1324 = vsel %vm1177, %v1283, 0.0
          %v1325 = vsel %vm1178, %v1287, 0.0
          %v1326 = vsel %vm1179, %v1283, 0.0
          %v1327 = vsel %vm1180, %v1287, 0.0
          %v1328 = vsel %vm1181, %v1283, 0.0
          %v1329 = vsel %vm1182, %v1287, 0.0
          %v1330 = vsel %vm1183, %v1283, 0.0
          %v1331 = vsel %vm1184, %v1287, 0.0
          %v1332 = vsel %vm1185, %v1283, 0.0
          %v1333 = vsel %vm1186, %v1287, 0.0
          %v1334 = vsel %vm1187, %v1283, 0.0
          %v1335 = vsel %vm1188, %v1287, 0.0
          %v1336 = vsel %vm1189, %v1283, 0.0
          %v1337 = vsel %vm1190, %v1287, 0.0
          %v1338 = vsel %vm1191, %v1283, 0.0
          %v1339 = vsel %vm1192, %v1287, 0.0
          %v1340 = vsel %vm1193, %v1283, 0.0
          %v1341 = vsel %vm1194, %v1287, 0.0
          %v1342 = vsel %vm1195, %v1283, 0.0
          %v1343 = vsel %vm1196, %v1287, 0.0
          %v1344 = vsel %vm1197, %v1283, 0.0
          %v1345 = vsel %vm1198, %v1287, 0.0
          %v1346 = vsel %vm1199, %v1283, 0.0
          %v1347 = vsel %vm1200, %v1287, 0.0
          %v1348 = vsel %vm1201, %v1283, 0.0
          %v1349 = vsel %vm1202, %v1287, 0.0
          %v1350 = vsel %vm1203, %v1283, 0.0
          %v1351 = vsel %vm1204, %v1287, 0.0
          %v1352 = vsel %vm1205, %v1283, 0.0
          %v1353 = vsel %vm1206, %v1287, 0.0
          %v1354 = vsel %vm1207, %v1283, 0.0
          %v1355 = vsel %vm1208, %v1287, 0.0
          %v1356 = vsel %vm1209, %v1283, 0.0
          %v1357 = vsel %vm1210, %v1287, 0.0
          %v1358 = vsel %vm1211, %v1283, 0.0
          %v1359 = vsel %vm1212, %v1287, 0.0
          %v1360 = vsel %vm1213, %v1283, 0.0
          %v1361 = vsel %vm1214, %v1287, 0.0
          %v1362 = vsel %vm1215, %v1283, 0.0
          %v1363 = vsel %vm1216, %v1287, 0.0
          %v1364 = vsel %vm1217, %v1283, 0.0
          %v1365 = vsel %vm1218, %v1287, 0.0
          %v1366 = vsel %vm1219, %v1283, 0.0
          %v1367 = vsel %vm1220, %v1287, 0.0
          %v1368 = vsel %vm1221, %v1283, 0.0
          %v1369 = vsel %vm1222, %v1287, 0.0
          %v1370 = vsel %vm1223, %v1283, 0.0
          %v1371 = vsel %vm1224, %v1287, 0.0
          %v1372 = vsel %vm1225, %v1283, 0.0
          %v1373 = vsel %vm1226, %v1287, 0.0
          %v1374 = vsel %vm1227, %v1283, 0.0
          %v1375 = vsel %vm1228, %v1287, 0.0
          %v1376 = vsel %vm1229, %v1283, 0.0
          %v1377 = vsel %vm1230, %v1287, 0.0
          %v1378 = vsel %vm1231, %v1283, 0.0
          %v1379 = vsel %vm1232, %v1287, 0.0
          %v1380 = vsel %vm1233, %v1283, 0.0
          %v1381 = vsel %vm1234, %v1287, 0.0
          %v1382 = vsel %vm1235, %v1283, 0.0
          %v1383 = vsel %vm1236, %v1287, 0.0
          %v1384 = vsel %vm1237, %v1283, 0.0
          %v1385 = vsel %vm1238, %v1287, 0.0
          %v1386 = vsel %vm1239, %v1283, 0.0
          %v1387 = vsel %vm1240, %v1287, 0.0
          %v1388 = vsel %vm1241, %v1283, 0.0
          %v1389 = vsel %vm1242, %v1287, 0.0
          %v1390 = vsel %vm1243, %v1283, 0.0
          %v1391 = vsel %vm1244, %v1287, 0.0
          %v1392 = vsel %vm1245, %v1283, 0.0
          %v1393 = vsel %vm1246, %v1287, 0.0
          %v1394 = vsel %vm1247, %v1283, 0.0
          %v1395 = vsel %vm1248, %v1287, 0.0
          %v1396 = vsel %vm1249, %v1283, 0.0
          %v1397 = vsel %vm1250, %v1287, 0.0
          %v1398 = vsel %vm1251, %v1283, 0.0
          %v1399 = vsel %vm1252, %v1287, 0.0
          %v1400 = vsel %vm1253, %v1283, 0.0
          %v1401 = vsel %vm1254, %v1287, 0.0
          %v1402 = vsel %vm1255, %v1283, 0.0
          %v1403 = vsel %vm1256, %v1287, 0.0
          %v1404 = vsel %vm1257, %v1283, 0.0
          %v1405 = vsel %vm1258, %v1287, 0.0
          %v1406 = vsel %vm1259, %v1283, 0.0
          %v1407 = vsel %vm1260, %v1287, 0.0
          %v1408 = vsel %vm1261, %v1283, 0.0
          %v1409 = vsel %vm1262, %v1287, 0.0
          %v1410 = vsel %vm1263, %v1283, 0.0
          %v1411 = vsel %vm1264, %v1287, 0.0
          %v1412 = vsel %vm1265, %v1283, 0.0
          %v1413 = vsel %vm1266, %v1287, 0.0
          %v1414 = vsel %vm1267, %v1283, 0.0
          %v1415 = vsel %vm1268, %v1287, 0.0
          %v1416 = vadd.f32 %v997, %v1288
          %v1417 = vadd.f32 %v998, %v1289
          %v1418 = vadd.f32 %v999, %v1290
          %v1419 = vadd.f32 %v1000, %v1291
          %v1420 = vadd.f32 %v1001, %v1292
          %v1421 = vadd.f32 %v1002, %v1293
          %v1422 = vadd.f32 %v1003, %v1294
          %v1423 = vadd.f32 %v1004, %v1295
          %v1424 = vadd.f32 %v1005, %v1296
          %v1425 = vadd.f32 %v1006, %v1297
          %v1426 = vadd.f32 %v1007, %v1298
          %v1427 = vadd.f32 %v1008, %v1299
          %v1428 = vadd.f32 %v1009, %v1300
          %v1429 = vadd.f32 %v1010, %v1301
          %v1430 = vadd.f32 %v1011, %v1302
          %v1431 = vadd.f32 %v1012, %v1303
          %v1432 = vadd.f32 %v1013, %v1304
          %v1433 = vadd.f32 %v1014, %v1305
          %v1434 = vadd.f32 %v1015, %v1306
          %v1435 = vadd.f32 %v1016, %v1307
          %v1436 = vadd.f32 %v1017, %v1308
          %v1437 = vadd.f32 %v1018, %v1309
          %v1438 = vadd.f32 %v1019, %v1310
          %v1439 = vadd.f32 %v1020, %v1311
          %v1440 = vadd.f32 %v1021, %v1312
          %v1441 = vadd.f32 %v1022, %v1313
          %v1442 = vadd.f32 %v1023, %v1314
          %v1443 = vadd.f32 %v1024, %v1315
          %v1444 = vadd.f32 %v1025, %v1316
          %v1445 = vadd.f32 %v1026, %v1317
          %v1446 = vadd.f32 %v1027, %v1318
          %v1447 = vadd.f32 %v1028, %v1319
          %v1448 = vadd.f32 %v1029, %v1320
          %v1449 = vadd.f32 %v1030, %v1321
          %v1450 = vadd.f32 %v1031, %v1322
          %v1451 = vadd.f32 %v1032, %v1323
          %v1452 = vadd.f32 %v1033, %v1324
          %v1453 = vadd.f32 %v1034, %v1325
          %v1454 = vadd.f32 %v1035, %v1326
          %v1455 = vadd.f32 %v1036, %v1327
          %v1456 = vadd.f32 %v1037, %v1328
          %v1457 = vadd.f32 %v1038, %v1329
          %v1458 = vadd.f32 %v1039, %v1330
          %v1459 = vadd.f32 %v1040, %v1331
          %v1460 = vadd.f32 %v1041, %v1332
          %v1461 = vadd.f32 %v1042, %v1333
          %v1462 = vadd.f32 %v1043, %v1334
          %v1463 = vadd.f32 %v1044, %v1335
          %v1464 = vadd.f32 %v1045, %v1336
          %v1465 = vadd.f32 %v1046, %v1337
          %v1466 = vadd.f32 %v1047, %v1338
          %v1467 = vadd.f32 %v1048, %v1339
          %v1468 = vadd.f32 %v1049, %v1340
          %v1469 = vadd.f32 %v1050, %v1341
          %v1470 = vadd.f32 %v1051, %v1342
          %v1471 = vadd.f32 %v1052, %v1343
          %v1472 = vadd.f32 %v1053, %v1344
          %v1473 = vadd.f32 %v1054, %v1345
          %v1474 = vadd.f32 %v1055, %v1346
          %v1475 = vadd.f32 %v1056, %v1347
          %v1476 = vadd.f32 %v1057, %v1348
          %v1477 = vadd.f32 %v1058, %v1349
          %v1478 = vadd.f32 %v1059, %v1350
          %v1479 = vadd.f32 %v1060, %v1351
          %v1480 = vadd.f32 %v1061, %v1352
          %v1481 = vadd.f32 %v1062, %v1353
          %v1482 = vadd.f32 %v1063, %v1354
          %v1483 = vadd.f32 %v1064, %v1355
          %v1484 = vadd.f32 %v1065, %v1356
          %v1485 = vadd.f32 %v1066, %v1357
          %v1486 = vadd.f32 %v1067, %v1358
          %v1487 = vadd.f32 %v1068, %v1359
          %v1488 = vadd.f32 %v1069, %v1360
          %v1489 = vadd.f32 %v1070, %v1361
          %v1490 = vadd.f32 %v1071, %v1362
          %v1491 = vadd.f32 %v1072, %v1363
          %v1492 = vadd.f32 %v1073, %v1364
          %v1493 = vadd.f32 %v1074, %v1365
          %v1494 = vadd.f32 %v1075, %v1366
          %v1495 = vadd.f32 %v1076, %v1367
          %v1496 = vadd.f32 %v1077, %v1368
          %v1497 = vadd.f32 %v1078, %v1369
          %v1498 = vadd.f32 %v1079, %v1370
          %v1499 = vadd.f32 %v1080, %v1371
          %v1500 = vadd.f32 %v1081, %v1372
          %v1501 = vadd.f32 %v1082, %v1373
          %v1502 = vadd.f32 %v1083, %v1374
          %v1503 = vadd.f32 %v1084, %v1375
          %v1504 = vadd.f32 %v1085, %v1376
          %v1505 = vadd.f32 %v1086, %v1377
          %v1506 = vadd.f32 %v1087, %v1378
          %v1507 = vadd.f32 %v1088, %v1379
          %v1508 = vadd.f32 %v1089, %v1380
          %v1509 = vadd.f32 %v1090, %v1381
          %v1510 = vadd.f32 %v1091, %v1382
          %v1511 = vadd.f32 %v1092, %v1383
          %v1512 = vadd.f32 %v1093, %v1384
          %v1513 = vadd.f32 %v1094, %v1385
          %v1514 = vadd.f32 %v1095, %v1386
          %v1515 = vadd.f32 %v1096, %v1387
          %v1516 = vadd.f32 %v1097, %v1388
          %v1517 = vadd.f32 %v1098, %v1389
          %v1518 = vadd.f32 %v1099, %v1390
          %v1519 = vadd.f32 %v1100, %v1391
          %v1520 = vadd.f32 %v1101, %v1392
          %v1521 = vadd.f32 %v1102, %v1393
          %v1522 = vadd.f32 %v1103, %v1394
          %v1523 = vadd.f32 %v1104, %v1395
          %v1524 = vadd.f32 %v1105, %v1396
          %v1525 = vadd.f32 %v1106, %v1397
          %v1526 = vadd.f32 %v1107, %v1398
          %v1527 = vadd.f32 %v1108, %v1399
          %v1528 = vadd.f32 %v1109, %v1400
          %v1529 = vadd.f32 %v1110, %v1401
          %v1530 = vadd.f32 %v1111, %v1402
          %v1531 = vadd.f32 %v1112, %v1403
          %v1532 = vadd.f32 %v1113, %v1404
          %v1533 = vadd.f32 %v1114, %v1405
          %v1534 = vadd.f32 %v1115, %v1406
          %v1535 = vadd.f32 %v1116, %v1407
          %v1536 = vadd.f32 %v1117, %v1408
          %v1537 = vadd.f32 %v1118, %v1409
          %v1538 = vadd.f32 %v1119, %v1410
          %v1539 = vadd.f32 %v1120, %v1411
          %v1540 = vadd.f32 %v1121, %v1412
          %v1541 = vadd.f32 %v1122, %v1413
          %v1542 = vadd.f32 %v1123, %v1414
          %v1543 = vadd.f32 %v1124, %v1415
          %v1544 = vlaneseq
          %v1545 = vshrl.u32 %v1544, 7
          %v1546 = vsub.s32 2, %v1545
          %v1547 = vrot.slane %v261, %v1546
          %v1548 = vlaneseq
          %v1549 = vshrl.u32 %v1548, 7
          %v1550 = vsub.s32 6, %v1549
          %v1551 = vrot.slane %v261, %v1550
          %v1552 = vlaneseq
          %v1553 = vshrl.u32 %v1552, 7
          %v1554 = vsub.s32 2, %v1553
          %v1555 = vrot.slane %v1547, %v1554
          %v1556 = vlaneseq
          %v1557 = vshrl.u32 %v1556, 7
          %v1558 = vsub.s32 2, %v1557
          %v1559 = vrot.slane %v1551, %v1558
          %vm1560 = vcmp.eq.s32.totalorder %v351, %v1555
          %vm1561 = vcmp.eq.s32.totalorder %v351, %v1559
          %vm1562 = vcmp.eq.s32.totalorder %v352, %v1555
          %vm1563 = vcmp.eq.s32.totalorder %v352, %v1559
          %vm1564 = vcmp.eq.s32.totalorder %v353, %v1555
          %vm1565 = vcmp.eq.s32.totalorder %v353, %v1559
          %vm1566 = vcmp.eq.s32.totalorder %v354, %v1555
          %vm1567 = vcmp.eq.s32.totalorder %v354, %v1559
          %vm1568 = vcmp.eq.s32.totalorder %v355, %v1555
          %vm1569 = vcmp.eq.s32.totalorder %v355, %v1559
          %vm1570 = vcmp.eq.s32.totalorder %v356, %v1555
          %vm1571 = vcmp.eq.s32.totalorder %v356, %v1559
          %vm1572 = vcmp.eq.s32.totalorder %v357, %v1555
          %vm1573 = vcmp.eq.s32.totalorder %v357, %v1559
          %vm1574 = vcmp.eq.s32.totalorder %v358, %v1555
          %vm1575 = vcmp.eq.s32.totalorder %v358, %v1559
          %vm1576 = vcmp.eq.s32.totalorder %v359, %v1555
          %vm1577 = vcmp.eq.s32.totalorder %v359, %v1559
          %vm1578 = vcmp.eq.s32.totalorder %v360, %v1555
          %vm1579 = vcmp.eq.s32.totalorder %v360, %v1559
          %vm1580 = vcmp.eq.s32.totalorder %v361, %v1555
          %vm1581 = vcmp.eq.s32.totalorder %v361, %v1559
          %vm1582 = vcmp.eq.s32.totalorder %v362, %v1555
          %vm1583 = vcmp.eq.s32.totalorder %v362, %v1559
          %vm1584 = vcmp.eq.s32.totalorder %v363, %v1555
          %vm1585 = vcmp.eq.s32.totalorder %v363, %v1559
          %vm1586 = vcmp.eq.s32.totalorder %v364, %v1555
          %vm1587 = vcmp.eq.s32.totalorder %v364, %v1559
          %vm1588 = vcmp.eq.s32.totalorder %v365, %v1555
          %vm1589 = vcmp.eq.s32.totalorder %v365, %v1559
          %vm1590 = vcmp.eq.s32.totalorder %v366, %v1555
          %vm1591 = vcmp.eq.s32.totalorder %v366, %v1559
          %vm1592 = vcmp.eq.s32.totalorder %v367, %v1555
          %vm1593 = vcmp.eq.s32.totalorder %v367, %v1559
          %vm1594 = vcmp.eq.s32.totalorder %v368, %v1555
          %vm1595 = vcmp.eq.s32.totalorder %v368, %v1559
          %vm1596 = vcmp.eq.s32.totalorder %v369, %v1555
          %vm1597 = vcmp.eq.s32.totalorder %v369, %v1559
          %vm1598 = vcmp.eq.s32.totalorder %v370, %v1555
          %vm1599 = vcmp.eq.s32.totalorder %v370, %v1559
          %vm1600 = vcmp.eq.s32.totalorder %v371, %v1555
          %vm1601 = vcmp.eq.s32.totalorder %v371, %v1559
          %vm1602 = vcmp.eq.s32.totalorder %v372, %v1555
          %vm1603 = vcmp.eq.s32.totalorder %v372, %v1559
          %vm1604 = vcmp.eq.s32.totalorder %v373, %v1555
          %vm1605 = vcmp.eq.s32.totalorder %v373, %v1559
          %vm1606 = vcmp.eq.s32.totalorder %v374, %v1555
          %vm1607 = vcmp.eq.s32.totalorder %v374, %v1559
          %vm1608 = vcmp.eq.s32.totalorder %v375, %v1555
          %vm1609 = vcmp.eq.s32.totalorder %v375, %v1559
          %vm1610 = vcmp.eq.s32.totalorder %v376, %v1555
          %vm1611 = vcmp.eq.s32.totalorder %v376, %v1559
          %vm1612 = vcmp.eq.s32.totalorder %v377, %v1555
          %vm1613 = vcmp.eq.s32.totalorder %v377, %v1559
          %vm1614 = vcmp.eq.s32.totalorder %v378, %v1555
          %vm1615 = vcmp.eq.s32.totalorder %v378, %v1559
          %vm1616 = vcmp.eq.s32.totalorder %v379, %v1555
          %vm1617 = vcmp.eq.s32.totalorder %v379, %v1559
          %vm1618 = vcmp.eq.s32.totalorder %v380, %v1555
          %vm1619 = vcmp.eq.s32.totalorder %v380, %v1559
          %vm1620 = vcmp.eq.s32.totalorder %v381, %v1555
          %vm1621 = vcmp.eq.s32.totalorder %v381, %v1559
          %vm1622 = vcmp.eq.s32.totalorder %v382, %v1555
          %vm1623 = vcmp.eq.s32.totalorder %v382, %v1559
          %vm1624 = vcmp.eq.s32.totalorder %v383, %v1555
          %vm1625 = vcmp.eq.s32.totalorder %v383, %v1559
          %vm1626 = vcmp.eq.s32.totalorder %v384, %v1555
          %vm1627 = vcmp.eq.s32.totalorder %v384, %v1559
          %vm1628 = vcmp.eq.s32.totalorder %v385, %v1555
          %vm1629 = vcmp.eq.s32.totalorder %v385, %v1559
          %vm1630 = vcmp.eq.s32.totalorder %v386, %v1555
          %vm1631 = vcmp.eq.s32.totalorder %v386, %v1559
          %vm1632 = vcmp.eq.s32.totalorder %v387, %v1555
          %vm1633 = vcmp.eq.s32.totalorder %v387, %v1559
          %vm1634 = vcmp.eq.s32.totalorder %v388, %v1555
          %vm1635 = vcmp.eq.s32.totalorder %v388, %v1559
          %vm1636 = vcmp.eq.s32.totalorder %v389, %v1555
          %vm1637 = vcmp.eq.s32.totalorder %v389, %v1559
          %vm1638 = vcmp.eq.s32.totalorder %v390, %v1555
          %vm1639 = vcmp.eq.s32.totalorder %v390, %v1559
          %vm1640 = vcmp.eq.s32.totalorder %v391, %v1555
          %vm1641 = vcmp.eq.s32.totalorder %v391, %v1559
          %vm1642 = vcmp.eq.s32.totalorder %v392, %v1555
          %vm1643 = vcmp.eq.s32.totalorder %v392, %v1559
          %vm1644 = vcmp.eq.s32.totalorder %v393, %v1555
          %vm1645 = vcmp.eq.s32.totalorder %v393, %v1559
          %vm1646 = vcmp.eq.s32.totalorder %v394, %v1555
          %vm1647 = vcmp.eq.s32.totalorder %v394, %v1559
          %vm1648 = vcmp.eq.s32.totalorder %v395, %v1555
          %vm1649 = vcmp.eq.s32.totalorder %v395, %v1559
          %vm1650 = vcmp.eq.s32.totalorder %v396, %v1555
          %vm1651 = vcmp.eq.s32.totalorder %v396, %v1559
          %vm1652 = vcmp.eq.s32.totalorder %v397, %v1555
          %vm1653 = vcmp.eq.s32.totalorder %v397, %v1559
          %vm1654 = vcmp.eq.s32.totalorder %v398, %v1555
          %vm1655 = vcmp.eq.s32.totalorder %v398, %v1559
          %vm1656 = vcmp.eq.s32.totalorder %v399, %v1555
          %vm1657 = vcmp.eq.s32.totalorder %v399, %v1559
          %vm1658 = vcmp.eq.s32.totalorder %v400, %v1555
          %vm1659 = vcmp.eq.s32.totalorder %v400, %v1559
          %vm1660 = vcmp.eq.s32.totalorder %v401, %v1555
          %vm1661 = vcmp.eq.s32.totalorder %v401, %v1559
          %vm1662 = vcmp.eq.s32.totalorder %v402, %v1555
          %vm1663 = vcmp.eq.s32.totalorder %v402, %v1559
          %vm1664 = vcmp.eq.s32.totalorder %v403, %v1555
          %vm1665 = vcmp.eq.s32.totalorder %v403, %v1559
          %vm1666 = vcmp.eq.s32.totalorder %v404, %v1555
          %vm1667 = vcmp.eq.s32.totalorder %v404, %v1559
          %vm1668 = vcmp.eq.s32.totalorder %v405, %v1555
          %vm1669 = vcmp.eq.s32.totalorder %v405, %v1559
          %vm1670 = vcmp.eq.s32.totalorder %v406, %v1555
          %vm1671 = vcmp.eq.s32.totalorder %v406, %v1559
          %vm1672 = vcmp.eq.s32.totalorder %v407, %v1555
          %vm1673 = vcmp.eq.s32.totalorder %v407, %v1559
          %vm1674 = vcmp.eq.s32.totalorder %v408, %v1555
          %vm1675 = vcmp.eq.s32.totalorder %v408, %v1559
          %vm1676 = vcmp.eq.s32.totalorder %v409, %v1555
          %vm1677 = vcmp.eq.s32.totalorder %v409, %v1559
          %vm1678 = vcmp.eq.s32.totalorder %v410, %v1555
          %vm1679 = vcmp.eq.s32.totalorder %v410, %v1559
          %vm1680 = vcmp.eq.s32.totalorder %v411, %v1555
          %vm1681 = vcmp.eq.s32.totalorder %v411, %v1559
          %vm1682 = vcmp.eq.s32.totalorder %v412, %v1555
          %vm1683 = vcmp.eq.s32.totalorder %v412, %v1559
          %vm1684 = vcmp.eq.s32.totalorder %v413, %v1555
          %vm1685 = vcmp.eq.s32.totalorder %v413, %v1559
          %vm1686 = vcmp.eq.s32.totalorder %v414, %v1555
          %vm1687 = vcmp.eq.s32.totalorder %v414, %v1559
          %v1689 = vlaneseq
          %v1690 = vshrl.u32 %v1689, 7
          %v1691 = vsub.s32 2, %v1690
          %v1692 = vrot.slane %v262, %v1691
          %v1693 = vlaneseq
          %v1694 = vshrl.u32 %v1693, 7
          %v1695 = vsub.s32 6, %v1694
          %v1696 = vrot.slane %v262, %v1695
          %v1699 = vlaneseq
          %v1700 = vshrl.u32 %v1699, 7
          %v1701 = vsub.s32 2, %v1700
          %v1702 = vrot.slane %v1692, %v1701
          %v1703 = vlaneseq
          %v1704 = vshrl.u32 %v1703, 7
          %v1705 = vsub.s32 2, %v1704
          %v1706 = vrot.slane %v1696, %v1705
          %v1707 = vsel %vm1560, %v1702, 0.0
          %v1708 = vsel %vm1561, %v1706, 0.0
          %v1709 = vsel %vm1562, %v1702, 0.0
          %v1710 = vsel %vm1563, %v1706, 0.0
          %v1711 = vsel %vm1564, %v1702, 0.0
          %v1712 = vsel %vm1565, %v1706, 0.0
          %v1713 = vsel %vm1566, %v1702, 0.0
          %v1714 = vsel %vm1567, %v1706, 0.0
          %v1715 = vsel %vm1568, %v1702, 0.0
          %v1716 = vsel %vm1569, %v1706, 0.0
          %v1717 = vsel %vm1570, %v1702, 0.0
          %v1718 = vsel %vm1571, %v1706, 0.0
          %v1719 = vsel %vm1572, %v1702, 0.0
          %v1720 = vsel %vm1573, %v1706, 0.0
          %v1721 = vsel %vm1574, %v1702, 0.0
          %v1722 = vsel %vm1575, %v1706, 0.0
          %v1723 = vsel %vm1576, %v1702, 0.0
          %v1724 = vsel %vm1577, %v1706, 0.0
          %v1725 = vsel %vm1578, %v1702, 0.0
          %v1726 = vsel %vm1579, %v1706, 0.0
          %v1727 = vsel %vm1580, %v1702, 0.0
          %v1728 = vsel %vm1581, %v1706, 0.0
          %v1729 = vsel %vm1582, %v1702, 0.0
          %v1730 = vsel %vm1583, %v1706, 0.0
          %v1731 = vsel %vm1584, %v1702, 0.0
          %v1732 = vsel %vm1585, %v1706, 0.0
          %v1733 = vsel %vm1586, %v1702, 0.0
          %v1734 = vsel %vm1587, %v1706, 0.0
          %v1735 = vsel %vm1588, %v1702, 0.0
          %v1736 = vsel %vm1589, %v1706, 0.0
          %v1737 = vsel %vm1590, %v1702, 0.0
          %v1738 = vsel %vm1591, %v1706, 0.0
          %v1739 = vsel %vm1592, %v1702, 0.0
          %v1740 = vsel %vm1593, %v1706, 0.0
          %v1741 = vsel %vm1594, %v1702, 0.0
          %v1742 = vsel %vm1595, %v1706, 0.0
          %v1743 = vsel %vm1596, %v1702, 0.0
          %v1744 = vsel %vm1597, %v1706, 0.0
          %v1745 = vsel %vm1598, %v1702, 0.0
          %v1746 = vsel %vm1599, %v1706, 0.0
          %v1747 = vsel %vm1600, %v1702, 0.0
          %v1748 = vsel %vm1601, %v1706, 0.0
          %v1749 = vsel %vm1602, %v1702, 0.0
          %v1750 = vsel %vm1603, %v1706, 0.0
          %v1751 = vsel %vm1604, %v1702, 0.0
          %v1752 = vsel %vm1605, %v1706, 0.0
          %v1753 = vsel %vm1606, %v1702, 0.0
          %v1754 = vsel %vm1607, %v1706, 0.0
          %v1755 = vsel %vm1608, %v1702, 0.0
          %v1756 = vsel %vm1609, %v1706, 0.0
          %v1757 = vsel %vm1610, %v1702, 0.0
          %v1758 = vsel %vm1611, %v1706, 0.0
          %v1759 = vsel %vm1612, %v1702, 0.0
          %v1760 = vsel %vm1613, %v1706, 0.0
          %v1761 = vsel %vm1614, %v1702, 0.0
          %v1762 = vsel %vm1615, %v1706, 0.0
          %v1763 = vsel %vm1616, %v1702, 0.0
          %v1764 = vsel %vm1617, %v1706, 0.0
          %v1765 = vsel %vm1618, %v1702, 0.0
          %v1766 = vsel %vm1619, %v1706, 0.0
          %v1767 = vsel %vm1620, %v1702, 0.0
          %v1768 = vsel %vm1621, %v1706, 0.0
          %v1769 = vsel %vm1622, %v1702, 0.0
          %v1770 = vsel %vm1623, %v1706, 0.0
          %v1771 = vsel %vm1624, %v1702, 0.0
          %v1772 = vsel %vm1625, %v1706, 0.0
          %v1773 = vsel %vm1626, %v1702, 0.0
          %v1774 = vsel %vm1627, %v1706, 0.0
          %v1775 = vsel %vm1628, %v1702, 0.0
          %v1776 = vsel %vm1629, %v1706, 0.0
          %v1777 = vsel %vm1630, %v1702, 0.0
          %v1778 = vsel %vm1631, %v1706, 0.0
          %v1779 = vsel %vm1632, %v1702, 0.0
          %v1780 = vsel %vm1633, %v1706, 0.0
          %v1781 = vsel %vm1634, %v1702, 0.0
          %v1782 = vsel %vm1635, %v1706, 0.0
          %v1783 = vsel %vm1636, %v1702, 0.0
          %v1784 = vsel %vm1637, %v1706, 0.0
          %v1785 = vsel %vm1638, %v1702, 0.0
          %v1786 = vsel %vm1639, %v1706, 0.0
          %v1787 = vsel %vm1640, %v1702, 0.0
          %v1788 = vsel %vm1641, %v1706, 0.0
          %v1789 = vsel %vm1642, %v1702, 0.0
          %v1790 = vsel %vm1643, %v1706, 0.0
          %v1791 = vsel %vm1644, %v1702, 0.0
          %v1792 = vsel %vm1645, %v1706, 0.0
          %v1793 = vsel %vm1646, %v1702, 0.0
          %v1794 = vsel %vm1647, %v1706, 0.0
          %v1795 = vsel %vm1648, %v1702, 0.0
          %v1796 = vsel %vm1649, %v1706, 0.0
          %v1797 = vsel %vm1650, %v1702, 0.0
          %v1798 = vsel %vm1651, %v1706, 0.0
          %v1799 = vsel %vm1652, %v1702, 0.0
          %v1800 = vsel %vm1653, %v1706, 0.0
          %v1801 = vsel %vm1654, %v1702, 0.0
          %v1802 = vsel %vm1655, %v1706, 0.0
          %v1803 = vsel %vm1656, %v1702, 0.0
          %v1804 = vsel %vm1657, %v1706, 0.0
          %v1805 = vsel %vm1658, %v1702, 0.0
          %v1806 = vsel %vm1659, %v1706, 0.0
          %v1807 = vsel %vm1660, %v1702, 0.0
          %v1808 = vsel %vm1661, %v1706, 0.0
          %v1809 = vsel %vm1662, %v1702, 0.0
          %v1810 = vsel %vm1663, %v1706, 0.0
          %v1811 = vsel %vm1664, %v1702, 0.0
          %v1812 = vsel %vm1665, %v1706, 0.0
          %v1813 = vsel %vm1666, %v1702, 0.0
          %v1814 = vsel %vm1667, %v1706, 0.0
          %v1815 = vsel %vm1668, %v1702, 0.0
          %v1816 = vsel %vm1669, %v1706, 0.0
          %v1817 = vsel %vm1670, %v1702, 0.0
          %v1818 = vsel %vm1671, %v1706, 0.0
          %v1819 = vsel %vm1672, %v1702, 0.0
          %v1820 = vsel %vm1673, %v1706, 0.0
          %v1821 = vsel %vm1674, %v1702, 0.0
          %v1822 = vsel %vm1675, %v1706, 0.0
          %v1823 = vsel %vm1676, %v1702, 0.0
          %v1824 = vsel %vm1677, %v1706, 0.0
          %v1825 = vsel %vm1678, %v1702, 0.0
          %v1826 = vsel %vm1679, %v1706, 0.0
          %v1827 = vsel %vm1680, %v1702, 0.0
          %v1828 = vsel %vm1681, %v1706, 0.0
          %v1829 = vsel %vm1682, %v1702, 0.0
          %v1830 = vsel %vm1683, %v1706, 0.0
          %v1831 = vsel %vm1684, %v1702, 0.0
          %v1832 = vsel %vm1685, %v1706, 0.0
          %v1833 = vsel %vm1686, %v1702, 0.0
          %v1834 = vsel %vm1687, %v1706, 0.0
          %v1835 = vadd.f32 %v1416, %v1707
          %v1836 = vadd.f32 %v1417, %v1708
          %v1837 = vadd.f32 %v1418, %v1709
          %v1838 = vadd.f32 %v1419, %v1710
          %v1839 = vadd.f32 %v1420, %v1711
          %v1840 = vadd.f32 %v1421, %v1712
          %v1841 = vadd.f32 %v1422, %v1713
          %v1842 = vadd.f32 %v1423, %v1714
          %v1843 = vadd.f32 %v1424, %v1715
          %v1844 = vadd.f32 %v1425, %v1716
          %v1845 = vadd.f32 %v1426, %v1717
          %v1846 = vadd.f32 %v1427, %v1718
          %v1847 = vadd.f32 %v1428, %v1719
          %v1848 = vadd.f32 %v1429, %v1720
          %v1849 = vadd.f32 %v1430, %v1721
          %v1850 = vadd.f32 %v1431, %v1722
          %v1851 = vadd.f32 %v1432, %v1723
          %v1852 = vadd.f32 %v1433, %v1724
          %v1853 = vadd.f32 %v1434, %v1725
          %v1854 = vadd.f32 %v1435, %v1726
          %v1855 = vadd.f32 %v1436, %v1727
          %v1856 = vadd.f32 %v1437, %v1728
          %v1857 = vadd.f32 %v1438, %v1729
          %v1858 = vadd.f32 %v1439, %v1730
          %v1859 = vadd.f32 %v1440, %v1731
          %v1860 = vadd.f32 %v1441, %v1732
          %v1861 = vadd.f32 %v1442, %v1733
          %v1862 = vadd.f32 %v1443, %v1734
          %v1863 = vadd.f32 %v1444, %v1735
          %v1864 = vadd.f32 %v1445, %v1736
          %v1865 = vadd.f32 %v1446, %v1737
          %v1866 = vadd.f32 %v1447, %v1738
          %v1867 = vadd.f32 %v1448, %v1739
          %v1868 = vadd.f32 %v1449, %v1740
          %v1869 = vadd.f32 %v1450, %v1741
          %v1870 = vadd.f32 %v1451, %v1742
          %v1871 = vadd.f32 %v1452, %v1743
          %v1872 = vadd.f32 %v1453, %v1744
          %v1873 = vadd.f32 %v1454, %v1745
          %v1874 = vadd.f32 %v1455, %v1746
          %v1875 = vadd.f32 %v1456, %v1747
          %v1876 = vadd.f32 %v1457, %v1748
          %v1877 = vadd.f32 %v1458, %v1749
          %v1878 = vadd.f32 %v1459, %v1750
          %v1879 = vadd.f32 %v1460, %v1751
          %v1880 = vadd.f32 %v1461, %v1752
          %v1881 = vadd.f32 %v1462, %v1753
          %v1882 = vadd.f32 %v1463, %v1754
          %v1883 = vadd.f32 %v1464, %v1755
          %v1884 = vadd.f32 %v1465, %v1756
          %v1885 = vadd.f32 %v1466, %v1757
          %v1886 = vadd.f32 %v1467, %v1758
          %v1887 = vadd.f32 %v1468, %v1759
          %v1888 = vadd.f32 %v1469, %v1760
          %v1889 = vadd.f32 %v1470, %v1761
          %v1890 = vadd.f32 %v1471, %v1762
          %v1891 = vadd.f32 %v1472, %v1763
          %v1892 = vadd.f32 %v1473, %v1764
          %v1893 = vadd.f32 %v1474, %v1765
          %v1894 = vadd.f32 %v1475, %v1766
          %v1895 = vadd.f32 %v1476, %v1767
          %v1896 = vadd.f32 %v1477, %v1768
          %v1897 = vadd.f32 %v1478, %v1769
          %v1898 = vadd.f32 %v1479, %v1770
          %v1899 = vadd.f32 %v1480, %v1771
          %v1900 = vadd.f32 %v1481, %v1772
          %v1901 = vadd.f32 %v1482, %v1773
          %v1902 = vadd.f32 %v1483, %v1774
          %v1903 = vadd.f32 %v1484, %v1775
          %v1904 = vadd.f32 %v1485, %v1776
          %v1905 = vadd.f32 %v1486, %v1777
          %v1906 = vadd.f32 %v1487, %v1778
          %v1907 = vadd.f32 %v1488, %v1779
          %v1908 = vadd.f32 %v1489, %v1780
          %v1909 = vadd.f32 %v1490, %v1781
          %v1910 = vadd.f32 %v1491, %v1782
          %v1911 = vadd.f32 %v1492, %v1783
          %v1912 = vadd.f32 %v1493, %v1784
          %v1913 = vadd.f32 %v1494, %v1785
          %v1914 = vadd.f32 %v1495, %v1786
          %v1915 = vadd.f32 %v1496, %v1787
          %v1916 = vadd.f32 %v1497, %v1788
          %v1917 = vadd.f32 %v1498, %v1789
          %v1918 = vadd.f32 %v1499, %v1790
          %v1919 = vadd.f32 %v1500, %v1791
          %v1920 = vadd.f32 %v1501, %v1792
          %v1921 = vadd.f32 %v1502, %v1793
          %v1922 = vadd.f32 %v1503, %v1794
          %v1923 = vadd.f32 %v1504, %v1795
          %v1924 = vadd.f32 %v1505, %v1796
          %v1925 = vadd.f32 %v1506, %v1797
          %v1926 = vadd.f32 %v1507, %v1798
          %v1927 = vadd.f32 %v1508, %v1799
          %v1928 = vadd.f32 %v1509, %v1800
          %v1929 = vadd.f32 %v1510, %v1801
          %v1930 = vadd.f32 %v1511, %v1802
          %v1931 = vadd.f32 %v1512, %v1803
          %v1932 = vadd.f32 %v1513, %v1804
          %v1933 = vadd.f32 %v1514, %v1805
          %v1934 = vadd.f32 %v1515, %v1806
          %v1935 = vadd.f32 %v1516, %v1807
          %v1936 = vadd.f32 %v1517, %v1808
          %v1937 = vadd.f32 %v1518, %v1809
          %v1938 = vadd.f32 %v1519, %v1810
          %v1939 = vadd.f32 %v1520, %v1811
          %v1940 = vadd.f32 %v1521, %v1812
          %v1941 = vadd.f32 %v1522, %v1813
          %v1942 = vadd.f32 %v1523, %v1814
          %v1943 = vadd.f32 %v1524, %v1815
          %v1944 = vadd.f32 %v1525, %v1816
          %v1945 = vadd.f32 %v1526, %v1817
          %v1946 = vadd.f32 %v1527, %v1818
          %v1947 = vadd.f32 %v1528, %v1819
          %v1948 = vadd.f32 %v1529, %v1820
          %v1949 = vadd.f32 %v1530, %v1821
          %v1950 = vadd.f32 %v1531, %v1822
          %v1951 = vadd.f32 %v1532, %v1823
          %v1952 = vadd.f32 %v1533, %v1824
          %v1953 = vadd.f32 %v1534, %v1825
          %v1954 = vadd.f32 %v1535, %v1826
          %v1955 = vadd.f32 %v1536, %v1827
          %v1956 = vadd.f32 %v1537, %v1828
          %v1957 = vadd.f32 %v1538, %v1829
          %v1958 = vadd.f32 %v1539, %v1830
          %v1959 = vadd.f32 %v1540, %v1831
          %v1960 = vadd.f32 %v1541, %v1832
          %v1961 = vadd.f32 %v1542, %v1833
          %v1962 = vadd.f32 %v1543, %v1834
          %v1963 = vlaneseq
          %v1964 = vshrl.u32 %v1963, 7
          %v1965 = vsub.s32 2, %v1964
          %v1966 = vrot.slane %v265, %v1965
          %v1967 = vlaneseq
          %v1968 = vshrl.u32 %v1967, 7
          %v1969 = vsub.s32 6, %v1968
          %v1970 = vrot.slane %v265, %v1969
          %v1971 = vlaneseq
          %v1972 = vshrl.u32 %v1971, 7
          %v1973 = vsub.s32 2, %v1972
          %v1974 = vrot.slane %v1966, %v1973
          %v1975 = vlaneseq
          %v1976 = vshrl.u32 %v1975, 7
          %v1977 = vsub.s32 2, %v1976
          %v1978 = vrot.slane %v1970, %v1977
          %vm1979 = vcmp.eq.s32.totalorder %v351, %v1974
          %vm1980 = vcmp.eq.s32.totalorder %v351, %v1978
          %vm1981 = vcmp.eq.s32.totalorder %v352, %v1974
          %vm1982 = vcmp.eq.s32.totalorder %v352, %v1978
          %vm1983 = vcmp.eq.s32.totalorder %v353, %v1974
          %vm1984 = vcmp.eq.s32.totalorder %v353, %v1978
          %vm1985 = vcmp.eq.s32.totalorder %v354, %v1974
          %vm1986 = vcmp.eq.s32.totalorder %v354, %v1978
          %vm1987 = vcmp.eq.s32.totalorder %v355, %v1974
          %vm1988 = vcmp.eq.s32.totalorder %v355, %v1978
          %vm1989 = vcmp.eq.s32.totalorder %v356, %v1974
          %vm1990 = vcmp.eq.s32.totalorder %v356, %v1978
          %vm1991 = vcmp.eq.s32.totalorder %v357, %v1974
          %vm1992 = vcmp.eq.s32.totalorder %v357, %v1978
          %vm1993 = vcmp.eq.s32.totalorder %v358, %v1974
          %vm1994 = vcmp.eq.s32.totalorder %v358, %v1978
          %vm1995 = vcmp.eq.s32.totalorder %v359, %v1974
          %vm1996 = vcmp.eq.s32.totalorder %v359, %v1978
          %vm1997 = vcmp.eq.s32.totalorder %v360, %v1974
          %vm1998 = vcmp.eq.s32.totalorder %v360, %v1978
          %vm1999 = vcmp.eq.s32.totalorder %v361, %v1974
          %vm2000 = vcmp.eq.s32.totalorder %v361, %v1978
          %vm2001 = vcmp.eq.s32.totalorder %v362, %v1974
          %vm2002 = vcmp.eq.s32.totalorder %v362, %v1978
          %vm2003 = vcmp.eq.s32.totalorder %v363, %v1974
          %vm2004 = vcmp.eq.s32.totalorder %v363, %v1978
          %vm2005 = vcmp.eq.s32.totalorder %v364, %v1974
          %vm2006 = vcmp.eq.s32.totalorder %v364, %v1978
          %vm2007 = vcmp.eq.s32.totalorder %v365, %v1974
          %vm2008 = vcmp.eq.s32.totalorder %v365, %v1978
          %vm2009 = vcmp.eq.s32.totalorder %v366, %v1974
          %vm2010 = vcmp.eq.s32.totalorder %v366, %v1978
          %vm2011 = vcmp.eq.s32.totalorder %v367, %v1974
          %vm2012 = vcmp.eq.s32.totalorder %v367, %v1978
          %vm2013 = vcmp.eq.s32.totalorder %v368, %v1974
          %vm2014 = vcmp.eq.s32.totalorder %v368, %v1978
          %vm2015 = vcmp.eq.s32.totalorder %v369, %v1974
          %vm2016 = vcmp.eq.s32.totalorder %v369, %v1978
          %vm2017 = vcmp.eq.s32.totalorder %v370, %v1974
          %vm2018 = vcmp.eq.s32.totalorder %v370, %v1978
          %vm2019 = vcmp.eq.s32.totalorder %v371, %v1974
          %vm2020 = vcmp.eq.s32.totalorder %v371, %v1978
          %vm2021 = vcmp.eq.s32.totalorder %v372, %v1974
          %vm2022 = vcmp.eq.s32.totalorder %v372, %v1978
          %vm2023 = vcmp.eq.s32.totalorder %v373, %v1974
          %vm2024 = vcmp.eq.s32.totalorder %v373, %v1978
          %vm2025 = vcmp.eq.s32.totalorder %v374, %v1974
          %vm2026 = vcmp.eq.s32.totalorder %v374, %v1978
          %vm2027 = vcmp.eq.s32.totalorder %v375, %v1974
          %vm2028 = vcmp.eq.s32.totalorder %v375, %v1978
          %vm2029 = vcmp.eq.s32.totalorder %v376, %v1974
          %vm2030 = vcmp.eq.s32.totalorder %v376, %v1978
          %vm2031 = vcmp.eq.s32.totalorder %v377, %v1974
          %vm2032 = vcmp.eq.s32.totalorder %v377, %v1978
          %vm2033 = vcmp.eq.s32.totalorder %v378, %v1974
          %vm2034 = vcmp.eq.s32.totalorder %v378, %v1978
          %vm2035 = vcmp.eq.s32.totalorder %v379, %v1974
          %vm2036 = vcmp.eq.s32.totalorder %v379, %v1978
          %vm2037 = vcmp.eq.s32.totalorder %v380, %v1974
          %vm2038 = vcmp.eq.s32.totalorder %v380, %v1978
          %vm2039 = vcmp.eq.s32.totalorder %v381, %v1974
          %vm2040 = vcmp.eq.s32.totalorder %v381, %v1978
          %vm2041 = vcmp.eq.s32.totalorder %v382, %v1974
          %vm2042 = vcmp.eq.s32.totalorder %v382, %v1978
          %vm2043 = vcmp.eq.s32.totalorder %v383, %v1974
          %vm2044 = vcmp.eq.s32.totalorder %v383, %v1978
          %vm2045 = vcmp.eq.s32.totalorder %v384, %v1974
          %vm2046 = vcmp.eq.s32.totalorder %v384, %v1978
          %vm2047 = vcmp.eq.s32.totalorder %v385, %v1974
          %vm2048 = vcmp.eq.s32.totalorder %v385, %v1978
          %vm2049 = vcmp.eq.s32.totalorder %v386, %v1974
          %vm2050 = vcmp.eq.s32.totalorder %v386, %v1978
          %vm2051 = vcmp.eq.s32.totalorder %v387, %v1974
          %vm2052 = vcmp.eq.s32.totalorder %v387, %v1978
          %vm2053 = vcmp.eq.s32.totalorder %v388, %v1974
          %vm2054 = vcmp.eq.s32.totalorder %v388, %v1978
          %vm2055 = vcmp.eq.s32.totalorder %v389, %v1974
          %vm2056 = vcmp.eq.s32.totalorder %v389, %v1978
          %vm2057 = vcmp.eq.s32.totalorder %v390, %v1974
          %vm2058 = vcmp.eq.s32.totalorder %v390, %v1978
          %vm2059 = vcmp.eq.s32.totalorder %v391, %v1974
          %vm2060 = vcmp.eq.s32.totalorder %v391, %v1978
          %vm2061 = vcmp.eq.s32.totalorder %v392, %v1974
          %vm2062 = vcmp.eq.s32.totalorder %v392, %v1978
          %vm2063 = vcmp.eq.s32.totalorder %v393, %v1974
          %vm2064 = vcmp.eq.s32.totalorder %v393, %v1978
          %vm2065 = vcmp.eq.s32.totalorder %v394, %v1974
          %vm2066 = vcmp.eq.s32.totalorder %v394, %v1978
          %vm2067 = vcmp.eq.s32.totalorder %v395, %v1974
          %vm2068 = vcmp.eq.s32.totalorder %v395, %v1978
          %vm2069 = vcmp.eq.s32.totalorder %v396, %v1974
          %vm2070 = vcmp.eq.s32.totalorder %v396, %v1978
          %vm2071 = vcmp.eq.s32.totalorder %v397, %v1974
          %vm2072 = vcmp.eq.s32.totalorder %v397, %v1978
          %vm2073 = vcmp.eq.s32.totalorder %v398, %v1974
          %vm2074 = vcmp.eq.s32.totalorder %v398, %v1978
          %vm2075 = vcmp.eq.s32.totalorder %v399, %v1974
          %vm2076 = vcmp.eq.s32.totalorder %v399, %v1978
          %vm2077 = vcmp.eq.s32.totalorder %v400, %v1974
          %vm2078 = vcmp.eq.s32.totalorder %v400, %v1978
          %vm2079 = vcmp.eq.s32.totalorder %v401, %v1974
          %vm2080 = vcmp.eq.s32.totalorder %v401, %v1978
          %vm2081 = vcmp.eq.s32.totalorder %v402, %v1974
          %vm2082 = vcmp.eq.s32.totalorder %v402, %v1978
          %vm2083 = vcmp.eq.s32.totalorder %v403, %v1974
          %vm2084 = vcmp.eq.s32.totalorder %v403, %v1978
          %vm2085 = vcmp.eq.s32.totalorder %v404, %v1974
          %vm2086 = vcmp.eq.s32.totalorder %v404, %v1978
          %vm2087 = vcmp.eq.s32.totalorder %v405, %v1974
          %vm2088 = vcmp.eq.s32.totalorder %v405, %v1978
          %vm2089 = vcmp.eq.s32.totalorder %v406, %v1974
          %vm2090 = vcmp.eq.s32.totalorder %v406, %v1978
          %vm2091 = vcmp.eq.s32.totalorder %v407, %v1974
          %vm2092 = vcmp.eq.s32.totalorder %v407, %v1978
          %vm2093 = vcmp.eq.s32.totalorder %v408, %v1974
          %vm2094 = vcmp.eq.s32.totalorder %v408, %v1978
          %vm2095 = vcmp.eq.s32.totalorder %v409, %v1974
          %vm2096 = vcmp.eq.s32.totalorder %v409, %v1978
          %vm2097 = vcmp.eq.s32.totalorder %v410, %v1974
          %vm2098 = vcmp.eq.s32.totalorder %v410, %v1978
          %vm2099 = vcmp.eq.s32.totalorder %v411, %v1974
          %vm2100 = vcmp.eq.s32.totalorder %v411, %v1978
          %vm2101 = vcmp.eq.s32.totalorder %v412, %v1974
          %vm2102 = vcmp.eq.s32.totalorder %v412, %v1978
          %vm2103 = vcmp.eq.s32.totalorder %v413, %v1974
          %vm2104 = vcmp.eq.s32.totalorder %v413, %v1978
          %vm2105 = vcmp.eq.s32.totalorder %v414, %v1974
          %vm2106 = vcmp.eq.s32.totalorder %v414, %v1978
          %v2108 = vlaneseq
          %v2109 = vshrl.u32 %v2108, 7
          %v2110 = vsub.s32 2, %v2109
          %v2111 = vrot.slane %v267, %v2110
          %v2112 = vlaneseq
          %v2113 = vshrl.u32 %v2112, 7
          %v2114 = vsub.s32 6, %v2113
          %v2115 = vrot.slane %v267, %v2114
          %v2118 = vlaneseq
          %v2119 = vshrl.u32 %v2118, 7
          %v2120 = vsub.s32 2, %v2119
          %v2121 = vrot.slane %v2111, %v2120
          %v2122 = vlaneseq
          %v2123 = vshrl.u32 %v2122, 7
          %v2124 = vsub.s32 2, %v2123
          %v2125 = vrot.slane %v2115, %v2124
          %v2126 = vsel %vm1979, %v2121, 0.0
          %v2127 = vsel %vm1980, %v2125, 0.0
          %v2128 = vsel %vm1981, %v2121, 0.0
          %v2129 = vsel %vm1982, %v2125, 0.0
          %v2130 = vsel %vm1983, %v2121, 0.0
          %v2131 = vsel %vm1984, %v2125, 0.0
          %v2132 = vsel %vm1985, %v2121, 0.0
          %v2133 = vsel %vm1986, %v2125, 0.0
          %v2134 = vsel %vm1987, %v2121, 0.0
          %v2135 = vsel %vm1988, %v2125, 0.0
          %v2136 = vsel %vm1989, %v2121, 0.0
          %v2137 = vsel %vm1990, %v2125, 0.0
          %v2138 = vsel %vm1991, %v2121, 0.0
          %v2139 = vsel %vm1992, %v2125, 0.0
          %v2140 = vsel %vm1993, %v2121, 0.0
          %v2141 = vsel %vm1994, %v2125, 0.0
          %v2142 = vsel %vm1995, %v2121, 0.0
          %v2143 = vsel %vm1996, %v2125, 0.0
          %v2144 = vsel %vm1997, %v2121, 0.0
          %v2145 = vsel %vm1998, %v2125, 0.0
          %v2146 = vsel %vm1999, %v2121, 0.0
          %v2147 = vsel %vm2000, %v2125, 0.0
          %v2148 = vsel %vm2001, %v2121, 0.0
          %v2149 = vsel %vm2002, %v2125, 0.0
          %v2150 = vsel %vm2003, %v2121, 0.0
          %v2151 = vsel %vm2004, %v2125, 0.0
          %v2152 = vsel %vm2005, %v2121, 0.0
          %v2153 = vsel %vm2006, %v2125, 0.0
          %v2154 = vsel %vm2007, %v2121, 0.0
          %v2155 = vsel %vm2008, %v2125, 0.0
          %v2156 = vsel %vm2009, %v2121, 0.0
          %v2157 = vsel %vm2010, %v2125, 0.0
          %v2158 = vsel %vm2011, %v2121, 0.0
          %v2159 = vsel %vm2012, %v2125, 0.0
          %v2160 = vsel %vm2013, %v2121, 0.0
          %v2161 = vsel %vm2014, %v2125, 0.0
          %v2162 = vsel %vm2015, %v2121, 0.0
          %v2163 = vsel %vm2016, %v2125, 0.0
          %v2164 = vsel %vm2017, %v2121, 0.0
          %v2165 = vsel %vm2018, %v2125, 0.0
          %v2166 = vsel %vm2019, %v2121, 0.0
          %v2167 = vsel %vm2020, %v2125, 0.0
          %v2168 = vsel %vm2021, %v2121, 0.0
          %v2169 = vsel %vm2022, %v2125, 0.0
          %v2170 = vsel %vm2023, %v2121, 0.0
          %v2171 = vsel %vm2024, %v2125, 0.0
          %v2172 = vsel %vm2025, %v2121, 0.0
          %v2173 = vsel %vm2026, %v2125, 0.0
          %v2174 = vsel %vm2027, %v2121, 0.0
          %v2175 = vsel %vm2028, %v2125, 0.0
          %v2176 = vsel %vm2029, %v2121, 0.0
          %v2177 = vsel %vm2030, %v2125, 0.0
          %v2178 = vsel %vm2031, %v2121, 0.0
          %v2179 = vsel %vm2032, %v2125, 0.0
          %v2180 = vsel %vm2033, %v2121, 0.0
          %v2181 = vsel %vm2034, %v2125, 0.0
          %v2182 = vsel %vm2035, %v2121, 0.0
          %v2183 = vsel %vm2036, %v2125, 0.0
          %v2184 = vsel %vm2037, %v2121, 0.0
          %v2185 = vsel %vm2038, %v2125, 0.0
          %v2186 = vsel %vm2039, %v2121, 0.0
          %v2187 = vsel %vm2040, %v2125, 0.0
          %v2188 = vsel %vm2041, %v2121, 0.0
          %v2189 = vsel %vm2042, %v2125, 0.0
          %v2190 = vsel %vm2043, %v2121, 0.0
          %v2191 = vsel %vm2044, %v2125, 0.0
          %v2192 = vsel %vm2045, %v2121, 0.0
          %v2193 = vsel %vm2046, %v2125, 0.0
          %v2194 = vsel %vm2047, %v2121, 0.0
          %v2195 = vsel %vm2048, %v2125, 0.0
          %v2196 = vsel %vm2049, %v2121, 0.0
          %v2197 = vsel %vm2050, %v2125, 0.0
          %v2198 = vsel %vm2051, %v2121, 0.0
          %v2199 = vsel %vm2052, %v2125, 0.0
          %v2200 = vsel %vm2053, %v2121, 0.0
          %v2201 = vsel %vm2054, %v2125, 0.0
          %v2202 = vsel %vm2055, %v2121, 0.0
          %v2203 = vsel %vm2056, %v2125, 0.0
          %v2204 = vsel %vm2057, %v2121, 0.0
          %v2205 = vsel %vm2058, %v2125, 0.0
          %v2206 = vsel %vm2059, %v2121, 0.0
          %v2207 = vsel %vm2060, %v2125, 0.0
          %v2208 = vsel %vm2061, %v2121, 0.0
          %v2209 = vsel %vm2062, %v2125, 0.0
          %v2210 = vsel %vm2063, %v2121, 0.0
          %v2211 = vsel %vm2064, %v2125, 0.0
          %v2212 = vsel %vm2065, %v2121, 0.0
          %v2213 = vsel %vm2066, %v2125, 0.0
          %v2214 = vsel %vm2067, %v2121, 0.0
          %v2215 = vsel %vm2068, %v2125, 0.0
          %v2216 = vsel %vm2069, %v2121, 0.0
          %v2217 = vsel %vm2070, %v2125, 0.0
          %v2218 = vsel %vm2071, %v2121, 0.0
          %v2219 = vsel %vm2072, %v2125, 0.0
          %v2220 = vsel %vm2073, %v2121, 0.0
          %v2221 = vsel %vm2074, %v2125, 0.0
          %v2222 = vsel %vm2075, %v2121, 0.0
          %v2223 = vsel %vm2076, %v2125, 0.0
          %v2224 = vsel %vm2077, %v2121, 0.0
          %v2225 = vsel %vm2078, %v2125, 0.0
          %v2226 = vsel %vm2079, %v2121, 0.0
          %v2227 = vsel %vm2080, %v2125, 0.0
          %v2228 = vsel %vm2081, %v2121, 0.0
          %v2229 = vsel %vm2082, %v2125, 0.0
          %v2230 = vsel %vm2083, %v2121, 0.0
          %v2231 = vsel %vm2084, %v2125, 0.0
          %v2232 = vsel %vm2085, %v2121, 0.0
          %v2233 = vsel %vm2086, %v2125, 0.0
          %v2234 = vsel %vm2087, %v2121, 0.0
          %v2235 = vsel %vm2088, %v2125, 0.0
          %v2236 = vsel %vm2089, %v2121, 0.0
          %v2237 = vsel %vm2090, %v2125, 0.0
          %v2238 = vsel %vm2091, %v2121, 0.0
          %v2239 = vsel %vm2092, %v2125, 0.0
          %v2240 = vsel %vm2093, %v2121, 0.0
          %v2241 = vsel %vm2094, %v2125, 0.0
          %v2242 = vsel %vm2095, %v2121, 0.0
          %v2243 = vsel %vm2096, %v2125, 0.0
          %v2244 = vsel %vm2097, %v2121, 0.0
          %v2245 = vsel %vm2098, %v2125, 0.0
          %v2246 = vsel %vm2099, %v2121, 0.0
          %v2247 = vsel %vm2100, %v2125, 0.0
          %v2248 = vsel %vm2101, %v2121, 0.0
          %v2249 = vsel %vm2102, %v2125, 0.0
          %v2250 = vsel %vm2103, %v2121, 0.0
          %v2251 = vsel %vm2104, %v2125, 0.0
          %v2252 = vsel %vm2105, %v2121, 0.0
          %v2253 = vsel %vm2106, %v2125, 0.0
          %v2254 = vadd.f32 %v1835, %v2126
          %v2255 = vadd.f32 %v1836, %v2127
          %v2256 = vadd.f32 %v1837, %v2128
          %v2257 = vadd.f32 %v1838, %v2129
          %v2258 = vadd.f32 %v1839, %v2130
          %v2259 = vadd.f32 %v1840, %v2131
          %v2260 = vadd.f32 %v1841, %v2132
          %v2261 = vadd.f32 %v1842, %v2133
          %v2262 = vadd.f32 %v1843, %v2134
          %v2263 = vadd.f32 %v1844, %v2135
          %v2264 = vadd.f32 %v1845, %v2136
          %v2265 = vadd.f32 %v1846, %v2137
          %v2266 = vadd.f32 %v1847, %v2138
          %v2267 = vadd.f32 %v1848, %v2139
          %v2268 = vadd.f32 %v1849, %v2140
          %v2269 = vadd.f32 %v1850, %v2141
          %v2270 = vadd.f32 %v1851, %v2142
          %v2271 = vadd.f32 %v1852, %v2143
          %v2272 = vadd.f32 %v1853, %v2144
          %v2273 = vadd.f32 %v1854, %v2145
          %v2274 = vadd.f32 %v1855, %v2146
          %v2275 = vadd.f32 %v1856, %v2147
          %v2276 = vadd.f32 %v1857, %v2148
          %v2277 = vadd.f32 %v1858, %v2149
          %v2278 = vadd.f32 %v1859, %v2150
          %v2279 = vadd.f32 %v1860, %v2151
          %v2280 = vadd.f32 %v1861, %v2152
          %v2281 = vadd.f32 %v1862, %v2153
          %v2282 = vadd.f32 %v1863, %v2154
          %v2283 = vadd.f32 %v1864, %v2155
          %v2284 = vadd.f32 %v1865, %v2156
          %v2285 = vadd.f32 %v1866, %v2157
          %v2286 = vadd.f32 %v1867, %v2158
          %v2287 = vadd.f32 %v1868, %v2159
          %v2288 = vadd.f32 %v1869, %v2160
          %v2289 = vadd.f32 %v1870, %v2161
          %v2290 = vadd.f32 %v1871, %v2162
          %v2291 = vadd.f32 %v1872, %v2163
          %v2292 = vadd.f32 %v1873, %v2164
          %v2293 = vadd.f32 %v1874, %v2165
          %v2294 = vadd.f32 %v1875, %v2166
          %v2295 = vadd.f32 %v1876, %v2167
          %v2296 = vadd.f32 %v1877, %v2168
          %v2297 = vadd.f32 %v1878, %v2169
          %v2298 = vadd.f32 %v1879, %v2170
          %v2299 = vadd.f32 %v1880, %v2171
          %v2300 = vadd.f32 %v1881, %v2172
          %v2301 = vadd.f32 %v1882, %v2173
          %v2302 = vadd.f32 %v1883, %v2174
          %v2303 = vadd.f32 %v1884, %v2175
          %v2304 = vadd.f32 %v1885, %v2176
          %v2305 = vadd.f32 %v1886, %v2177
          %v2306 = vadd.f32 %v1887, %v2178
          %v2307 = vadd.f32 %v1888, %v2179
          %v2308 = vadd.f32 %v1889, %v2180
          %v2309 = vadd.f32 %v1890, %v2181
          %v2310 = vadd.f32 %v1891, %v2182
          %v2311 = vadd.f32 %v1892, %v2183
          %v2312 = vadd.f32 %v1893, %v2184
          %v2313 = vadd.f32 %v1894, %v2185
          %v2314 = vadd.f32 %v1895, %v2186
          %v2315 = vadd.f32 %v1896, %v2187
          %v2316 = vadd.f32 %v1897, %v2188
          %v2317 = vadd.f32 %v1898, %v2189
          %v2318 = vadd.f32 %v1899, %v2190
          %v2319 = vadd.f32 %v1900, %v2191
          %v2320 = vadd.f32 %v1901, %v2192
          %v2321 = vadd.f32 %v1902, %v2193
          %v2322 = vadd.f32 %v1903, %v2194
          %v2323 = vadd.f32 %v1904, %v2195
          %v2324 = vadd.f32 %v1905, %v2196
          %v2325 = vadd.f32 %v1906, %v2197
          %v2326 = vadd.f32 %v1907, %v2198
          %v2327 = vadd.f32 %v1908, %v2199
          %v2328 = vadd.f32 %v1909, %v2200
          %v2329 = vadd.f32 %v1910, %v2201
          %v2330 = vadd.f32 %v1911, %v2202
          %v2331 = vadd.f32 %v1912, %v2203
          %v2332 = vadd.f32 %v1913, %v2204
          %v2333 = vadd.f32 %v1914, %v2205
          %v2334 = vadd.f32 %v1915, %v2206
          %v2335 = vadd.f32 %v1916, %v2207
          %v2336 = vadd.f32 %v1917, %v2208
          %v2337 = vadd.f32 %v1918, %v2209
          %v2338 = vadd.f32 %v1919, %v2210
          %v2339 = vadd.f32 %v1920, %v2211
          %v2340 = vadd.f32 %v1921, %v2212
          %v2341 = vadd.f32 %v1922, %v2213
          %v2342 = vadd.f32 %v1923, %v2214
          %v2343 = vadd.f32 %v1924, %v2215
          %v2344 = vadd.f32 %v1925, %v2216
          %v2345 = vadd.f32 %v1926, %v2217
          %v2346 = vadd.f32 %v1927, %v2218
          %v2347 = vadd.f32 %v1928, %v2219
          %v2348 = vadd.f32 %v1929, %v2220
          %v2349 = vadd.f32 %v1930, %v2221
          %v2350 = vadd.f32 %v1931, %v2222
          %v2351 = vadd.f32 %v1932, %v2223
          %v2352 = vadd.f32 %v1933, %v2224
          %v2353 = vadd.f32 %v1934, %v2225
          %v2354 = vadd.f32 %v1935, %v2226
          %v2355 = vadd.f32 %v1936, %v2227
          %v2356 = vadd.f32 %v1937, %v2228
          %v2357 = vadd.f32 %v1938, %v2229
          %v2358 = vadd.f32 %v1939, %v2230
          %v2359 = vadd.f32 %v1940, %v2231
          %v2360 = vadd.f32 %v1941, %v2232
          %v2361 = vadd.f32 %v1942, %v2233
          %v2362 = vadd.f32 %v1943, %v2234
          %v2363 = vadd.f32 %v1944, %v2235
          %v2364 = vadd.f32 %v1945, %v2236
          %v2365 = vadd.f32 %v1946, %v2237
          %v2366 = vadd.f32 %v1947, %v2238
          %v2367 = vadd.f32 %v1948, %v2239
          %v2368 = vadd.f32 %v1949, %v2240
          %v2369 = vadd.f32 %v1950, %v2241
          %v2370 = vadd.f32 %v1951, %v2242
          %v2371 = vadd.f32 %v1952, %v2243
          %v2372 = vadd.f32 %v1953, %v2244
          %v2373 = vadd.f32 %v1954, %v2245
          %v2374 = vadd.f32 %v1955, %v2246
          %v2375 = vadd.f32 %v1956, %v2247
          %v2376 = vadd.f32 %v1957, %v2248
          %v2377 = vadd.f32 %v1958, %v2249
          %v2378 = vadd.f32 %v1959, %v2250
          %v2379 = vadd.f32 %v1960, %v2251
          %v2380 = vadd.f32 %v1961, %v2252
          %v2381 = vadd.f32 %v1962, %v2253
          %v2382 = vlaneseq
          %v2383 = vshrl.u32 %v2382, 7
          %v2384 = vsub.s32 2, %v2383
          %v2385 = vrot.slane %v268, %v2384
          %v2386 = vlaneseq
          %v2387 = vshrl.u32 %v2386, 7
          %v2388 = vsub.s32 6, %v2387
          %v2389 = vrot.slane %v268, %v2388
          %v2390 = vlaneseq
          %v2391 = vshrl.u32 %v2390, 7
          %v2392 = vsub.s32 2, %v2391
          %v2393 = vrot.slane %v2385, %v2392
          %v2394 = vlaneseq
          %v2395 = vshrl.u32 %v2394, 7
          %v2396 = vsub.s32 2, %v2395
          %v2397 = vrot.slane %v2389, %v2396
          %vm2398 = vcmp.eq.s32.totalorder %v351, %v2393
          %vm2399 = vcmp.eq.s32.totalorder %v351, %v2397
          %vm2400 = vcmp.eq.s32.totalorder %v352, %v2393
          %vm2401 = vcmp.eq.s32.totalorder %v352, %v2397
          %vm2402 = vcmp.eq.s32.totalorder %v353, %v2393
          %vm2403 = vcmp.eq.s32.totalorder %v353, %v2397
          %vm2404 = vcmp.eq.s32.totalorder %v354, %v2393
          %vm2405 = vcmp.eq.s32.totalorder %v354, %v2397
          %vm2406 = vcmp.eq.s32.totalorder %v355, %v2393
          %vm2407 = vcmp.eq.s32.totalorder %v355, %v2397
          %vm2408 = vcmp.eq.s32.totalorder %v356, %v2393
          %vm2409 = vcmp.eq.s32.totalorder %v356, %v2397
          %vm2410 = vcmp.eq.s32.totalorder %v357, %v2393
          %vm2411 = vcmp.eq.s32.totalorder %v357, %v2397
          %vm2412 = vcmp.eq.s32.totalorder %v358, %v2393
          %vm2413 = vcmp.eq.s32.totalorder %v358, %v2397
          %vm2414 = vcmp.eq.s32.totalorder %v359, %v2393
          %vm2415 = vcmp.eq.s32.totalorder %v359, %v2397
          %vm2416 = vcmp.eq.s32.totalorder %v360, %v2393
          %vm2417 = vcmp.eq.s32.totalorder %v360, %v2397
          %vm2418 = vcmp.eq.s32.totalorder %v361, %v2393
          %vm2419 = vcmp.eq.s32.totalorder %v361, %v2397
          %vm2420 = vcmp.eq.s32.totalorder %v362, %v2393
          %vm2421 = vcmp.eq.s32.totalorder %v362, %v2397
          %vm2422 = vcmp.eq.s32.totalorder %v363, %v2393
          %vm2423 = vcmp.eq.s32.totalorder %v363, %v2397
          %vm2424 = vcmp.eq.s32.totalorder %v364, %v2393
          %vm2425 = vcmp.eq.s32.totalorder %v364, %v2397
          %vm2426 = vcmp.eq.s32.totalorder %v365, %v2393
          %vm2427 = vcmp.eq.s32.totalorder %v365, %v2397
          %vm2428 = vcmp.eq.s32.totalorder %v366, %v2393
          %vm2429 = vcmp.eq.s32.totalorder %v366, %v2397
          %vm2430 = vcmp.eq.s32.totalorder %v367, %v2393
          %vm2431 = vcmp.eq.s32.totalorder %v367, %v2397
          %vm2432 = vcmp.eq.s32.totalorder %v368, %v2393
          %vm2433 = vcmp.eq.s32.totalorder %v368, %v2397
          %vm2434 = vcmp.eq.s32.totalorder %v369, %v2393
          %vm2435 = vcmp.eq.s32.totalorder %v369, %v2397
          %vm2436 = vcmp.eq.s32.totalorder %v370, %v2393
          %vm2437 = vcmp.eq.s32.totalorder %v370, %v2397
          %vm2438 = vcmp.eq.s32.totalorder %v371, %v2393
          %vm2439 = vcmp.eq.s32.totalorder %v371, %v2397
          %vm2440 = vcmp.eq.s32.totalorder %v372, %v2393
          %vm2441 = vcmp.eq.s32.totalorder %v372, %v2397
          %vm2442 = vcmp.eq.s32.totalorder %v373, %v2393
          %vm2443 = vcmp.eq.s32.totalorder %v373, %v2397
          %vm2444 = vcmp.eq.s32.totalorder %v374, %v2393
          %vm2445 = vcmp.eq.s32.totalorder %v374, %v2397
          %vm2446 = vcmp.eq.s32.totalorder %v375, %v2393
          %vm2447 = vcmp.eq.s32.totalorder %v375, %v2397
          %vm2448 = vcmp.eq.s32.totalorder %v376, %v2393
          %vm2449 = vcmp.eq.s32.totalorder %v376, %v2397
          %vm2450 = vcmp.eq.s32.totalorder %v377, %v2393
          %vm2451 = vcmp.eq.s32.totalorder %v377, %v2397
          %vm2452 = vcmp.eq.s32.totalorder %v378, %v2393
          %vm2453 = vcmp.eq.s32.totalorder %v378, %v2397
          %vm2454 = vcmp.eq.s32.totalorder %v379, %v2393
          %vm2455 = vcmp.eq.s32.totalorder %v379, %v2397
          %vm2456 = vcmp.eq.s32.totalorder %v380, %v2393
          %vm2457 = vcmp.eq.s32.totalorder %v380, %v2397
          %vm2458 = vcmp.eq.s32.totalorder %v381, %v2393
          %vm2459 = vcmp.eq.s32.totalorder %v381, %v2397
          %vm2460 = vcmp.eq.s32.totalorder %v382, %v2393
          %vm2461 = vcmp.eq.s32.totalorder %v382, %v2397
          %vm2462 = vcmp.eq.s32.totalorder %v383, %v2393
          %vm2463 = vcmp.eq.s32.totalorder %v383, %v2397
          %vm2464 = vcmp.eq.s32.totalorder %v384, %v2393
          %vm2465 = vcmp.eq.s32.totalorder %v384, %v2397
          %vm2466 = vcmp.eq.s32.totalorder %v385, %v2393
          %vm2467 = vcmp.eq.s32.totalorder %v385, %v2397
          %vm2468 = vcmp.eq.s32.totalorder %v386, %v2393
          %vm2469 = vcmp.eq.s32.totalorder %v386, %v2397
          %vm2470 = vcmp.eq.s32.totalorder %v387, %v2393
          %vm2471 = vcmp.eq.s32.totalorder %v387, %v2397
          %vm2472 = vcmp.eq.s32.totalorder %v388, %v2393
          %vm2473 = vcmp.eq.s32.totalorder %v388, %v2397
          %vm2474 = vcmp.eq.s32.totalorder %v389, %v2393
          %vm2475 = vcmp.eq.s32.totalorder %v389, %v2397
          %vm2476 = vcmp.eq.s32.totalorder %v390, %v2393
          %vm2477 = vcmp.eq.s32.totalorder %v390, %v2397
          %vm2478 = vcmp.eq.s32.totalorder %v391, %v2393
          %vm2479 = vcmp.eq.s32.totalorder %v391, %v2397
          %vm2480 = vcmp.eq.s32.totalorder %v392, %v2393
          %vm2481 = vcmp.eq.s32.totalorder %v392, %v2397
          %vm2482 = vcmp.eq.s32.totalorder %v393, %v2393
          %vm2483 = vcmp.eq.s32.totalorder %v393, %v2397
          %vm2484 = vcmp.eq.s32.totalorder %v394, %v2393
          %vm2485 = vcmp.eq.s32.totalorder %v394, %v2397
          %vm2486 = vcmp.eq.s32.totalorder %v395, %v2393
          %vm2487 = vcmp.eq.s32.totalorder %v395, %v2397
          %vm2488 = vcmp.eq.s32.totalorder %v396, %v2393
          %vm2489 = vcmp.eq.s32.totalorder %v396, %v2397
          %vm2490 = vcmp.eq.s32.totalorder %v397, %v2393
          %vm2491 = vcmp.eq.s32.totalorder %v397, %v2397
          %vm2492 = vcmp.eq.s32.totalorder %v398, %v2393
          %vm2493 = vcmp.eq.s32.totalorder %v398, %v2397
          %vm2494 = vcmp.eq.s32.totalorder %v399, %v2393
          %vm2495 = vcmp.eq.s32.totalorder %v399, %v2397
          %vm2496 = vcmp.eq.s32.totalorder %v400, %v2393
          %vm2497 = vcmp.eq.s32.totalorder %v400, %v2397
          %vm2498 = vcmp.eq.s32.totalorder %v401, %v2393
          %vm2499 = vcmp.eq.s32.totalorder %v401, %v2397
          %vm2500 = vcmp.eq.s32.totalorder %v402, %v2393
          %vm2501 = vcmp.eq.s32.totalorder %v402, %v2397
          %vm2502 = vcmp.eq.s32.totalorder %v403, %v2393
          %vm2503 = vcmp.eq.s32.totalorder %v403, %v2397
          %vm2504 = vcmp.eq.s32.totalorder %v404, %v2393
          %vm2505 = vcmp.eq.s32.totalorder %v404, %v2397
          %vm2506 = vcmp.eq.s32.totalorder %v405, %v2393
          %vm2507 = vcmp.eq.s32.totalorder %v405, %v2397
          %vm2508 = vcmp.eq.s32.totalorder %v406, %v2393
          %vm2509 = vcmp.eq.s32.totalorder %v406, %v2397
          %vm2510 = vcmp.eq.s32.totalorder %v407, %v2393
          %vm2511 = vcmp.eq.s32.totalorder %v407, %v2397
          %vm2512 = vcmp.eq.s32.totalorder %v408, %v2393
          %vm2513 = vcmp.eq.s32.totalorder %v408, %v2397
          %vm2514 = vcmp.eq.s32.totalorder %v409, %v2393
          %vm2515 = vcmp.eq.s32.totalorder %v409, %v2397
          %vm2516 = vcmp.eq.s32.totalorder %v410, %v2393
          %vm2517 = vcmp.eq.s32.totalorder %v410, %v2397
          %vm2518 = vcmp.eq.s32.totalorder %v411, %v2393
          %vm2519 = vcmp.eq.s32.totalorder %v411, %v2397
          %vm2520 = vcmp.eq.s32.totalorder %v412, %v2393
          %vm2521 = vcmp.eq.s32.totalorder %v412, %v2397
          %vm2522 = vcmp.eq.s32.totalorder %v413, %v2393
          %vm2523 = vcmp.eq.s32.totalorder %v413, %v2397
          %vm2524 = vcmp.eq.s32.totalorder %v414, %v2393
          %vm2525 = vcmp.eq.s32.totalorder %v414, %v2397
          %v2527 = vlaneseq
          %v2528 = vshrl.u32 %v2527, 7
          %v2529 = vsub.s32 2, %v2528
          %v2530 = vrot.slane %v269, %v2529
          %v2531 = vlaneseq
          %v2532 = vshrl.u32 %v2531, 7
          %v2533 = vsub.s32 6, %v2532
          %v2534 = vrot.slane %v269, %v2533
          %v2537 = vlaneseq
          %v2538 = vshrl.u32 %v2537, 7
          %v2539 = vsub.s32 2, %v2538
          %v2540 = vrot.slane %v2530, %v2539
          %v2541 = vlaneseq
          %v2542 = vshrl.u32 %v2541, 7
          %v2543 = vsub.s32 2, %v2542
          %v2544 = vrot.slane %v2534, %v2543
          %v2545 = vsel %vm2398, %v2540, 0.0
          %v2546 = vsel %vm2399, %v2544, 0.0
          %v2547 = vsel %vm2400, %v2540, 0.0
          %v2548 = vsel %vm2401, %v2544, 0.0
          %v2549 = vsel %vm2402, %v2540, 0.0
          %v2550 = vsel %vm2403, %v2544, 0.0
          %v2551 = vsel %vm2404, %v2540, 0.0
          %v2552 = vsel %vm2405, %v2544, 0.0
          %v2553 = vsel %vm2406, %v2540, 0.0
          %v2554 = vsel %vm2407, %v2544, 0.0
          %v2555 = vsel %vm2408, %v2540, 0.0
          %v2556 = vsel %vm2409, %v2544, 0.0
          %v2557 = vsel %vm2410, %v2540, 0.0
          %v2558 = vsel %vm2411, %v2544, 0.0
          %v2559 = vsel %vm2412, %v2540, 0.0
          %v2560 = vsel %vm2413, %v2544, 0.0
          %v2561 = vsel %vm2414, %v2540, 0.0
          %v2562 = vsel %vm2415, %v2544, 0.0
          %v2563 = vsel %vm2416, %v2540, 0.0
          %v2564 = vsel %vm2417, %v2544, 0.0
          %v2565 = vsel %vm2418, %v2540, 0.0
          %v2566 = vsel %vm2419, %v2544, 0.0
          %v2567 = vsel %vm2420, %v2540, 0.0
          %v2568 = vsel %vm2421, %v2544, 0.0
          %v2569 = vsel %vm2422, %v2540, 0.0
          %v2570 = vsel %vm2423, %v2544, 0.0
          %v2571 = vsel %vm2424, %v2540, 0.0
          %v2572 = vsel %vm2425, %v2544, 0.0
          %v2573 = vsel %vm2426, %v2540, 0.0
          %v2574 = vsel %vm2427, %v2544, 0.0
          %v2575 = vsel %vm2428, %v2540, 0.0
          %v2576 = vsel %vm2429, %v2544, 0.0
          %v2577 = vsel %vm2430, %v2540, 0.0
          %v2578 = vsel %vm2431, %v2544, 0.0
          %v2579 = vsel %vm2432, %v2540, 0.0
          %v2580 = vsel %vm2433, %v2544, 0.0
          %v2581 = vsel %vm2434, %v2540, 0.0
          %v2582 = vsel %vm2435, %v2544, 0.0
          %v2583 = vsel %vm2436, %v2540, 0.0
          %v2584 = vsel %vm2437, %v2544, 0.0
          %v2585 = vsel %vm2438, %v2540, 0.0
          %v2586 = vsel %vm2439, %v2544, 0.0
          %v2587 = vsel %vm2440, %v2540, 0.0
          %v2588 = vsel %vm2441, %v2544, 0.0
          %v2589 = vsel %vm2442, %v2540, 0.0
          %v2590 = vsel %vm2443, %v2544, 0.0
          %v2591 = vsel %vm2444, %v2540, 0.0
          %v2592 = vsel %vm2445, %v2544, 0.0
          %v2593 = vsel %vm2446, %v2540, 0.0
          %v2594 = vsel %vm2447, %v2544, 0.0
          %v2595 = vsel %vm2448, %v2540, 0.0
          %v2596 = vsel %vm2449, %v2544, 0.0
          %v2597 = vsel %vm2450, %v2540, 0.0
          %v2598 = vsel %vm2451, %v2544, 0.0
          %v2599 = vsel %vm2452, %v2540, 0.0
          %v2600 = vsel %vm2453, %v2544, 0.0
          %v2601 = vsel %vm2454, %v2540, 0.0
          %v2602 = vsel %vm2455, %v2544, 0.0
          %v2603 = vsel %vm2456, %v2540, 0.0
          %v2604 = vsel %vm2457, %v2544, 0.0
          %v2605 = vsel %vm2458, %v2540, 0.0
          %v2606 = vsel %vm2459, %v2544, 0.0
          %v2607 = vsel %vm2460, %v2540, 0.0
          %v2608 = vsel %vm2461, %v2544, 0.0
          %v2609 = vsel %vm2462, %v2540, 0.0
          %v2610 = vsel %vm2463, %v2544, 0.0
          %v2611 = vsel %vm2464, %v2540, 0.0
          %v2612 = vsel %vm2465, %v2544, 0.0
          %v2613 = vsel %vm2466, %v2540, 0.0
          %v2614 = vsel %vm2467, %v2544, 0.0
          %v2615 = vsel %vm2468, %v2540, 0.0
          %v2616 = vsel %vm2469, %v2544, 0.0
          %v2617 = vsel %vm2470, %v2540, 0.0
          %v2618 = vsel %vm2471, %v2544, 0.0
          %v2619 = vsel %vm2472, %v2540, 0.0
          %v2620 = vsel %vm2473, %v2544, 0.0
          %v2621 = vsel %vm2474, %v2540, 0.0
          %v2622 = vsel %vm2475, %v2544, 0.0
          %v2623 = vsel %vm2476, %v2540, 0.0
          %v2624 = vsel %vm2477, %v2544, 0.0
          %v2625 = vsel %vm2478, %v2540, 0.0
          %v2626 = vsel %vm2479, %v2544, 0.0
          %v2627 = vsel %vm2480, %v2540, 0.0
          %v2628 = vsel %vm2481, %v2544, 0.0
          %v2629 = vsel %vm2482, %v2540, 0.0
          %v2630 = vsel %vm2483, %v2544, 0.0
          %v2631 = vsel %vm2484, %v2540, 0.0
          %v2632 = vsel %vm2485, %v2544, 0.0
          %v2633 = vsel %vm2486, %v2540, 0.0
          %v2634 = vsel %vm2487, %v2544, 0.0
          %v2635 = vsel %vm2488, %v2540, 0.0
          %v2636 = vsel %vm2489, %v2544, 0.0
          %v2637 = vsel %vm2490, %v2540, 0.0
          %v2638 = vsel %vm2491, %v2544, 0.0
          %v2639 = vsel %vm2492, %v2540, 0.0
          %v2640 = vsel %vm2493, %v2544, 0.0
          %v2641 = vsel %vm2494, %v2540, 0.0
          %v2642 = vsel %vm2495, %v2544, 0.0
          %v2643 = vsel %vm2496, %v2540, 0.0
          %v2644 = vsel %vm2497, %v2544, 0.0
          %v2645 = vsel %vm2498, %v2540, 0.0
          %v2646 = vsel %vm2499, %v2544, 0.0
          %v2647 = vsel %vm2500, %v2540, 0.0
          %v2648 = vsel %vm2501, %v2544, 0.0
          %v2649 = vsel %vm2502, %v2540, 0.0
          %v2650 = vsel %vm2503, %v2544, 0.0
          %v2651 = vsel %vm2504, %v2540, 0.0
          %v2652 = vsel %vm2505, %v2544, 0.0
          %v2653 = vsel %vm2506, %v2540, 0.0
          %v2654 = vsel %vm2507, %v2544, 0.0
          %v2655 = vsel %vm2508, %v2540, 0.0
          %v2656 = vsel %vm2509, %v2544, 0.0
          %v2657 = vsel %vm2510, %v2540, 0.0
          %v2658 = vsel %vm2511, %v2544, 0.0
          %v2659 = vsel %vm2512, %v2540, 0.0
          %v2660 = vsel %vm2513, %v2544, 0.0
          %v2661 = vsel %vm2514, %v2540, 0.0
          %v2662 = vsel %vm2515, %v2544, 0.0
          %v2663 = vsel %vm2516, %v2540, 0.0
          %v2664 = vsel %vm2517, %v2544, 0.0
          %v2665 = vsel %vm2518, %v2540, 0.0
          %v2666 = vsel %vm2519, %v2544, 0.0
          %v2667 = vsel %vm2520, %v2540, 0.0
          %v2668 = vsel %vm2521, %v2544, 0.0
          %v2669 = vsel %vm2522, %v2540, 0.0
          %v2670 = vsel %vm2523, %v2544, 0.0
          %v2671 = vsel %vm2524, %v2540, 0.0
          %v2672 = vsel %vm2525, %v2544, 0.0
          %v2673 = vadd.f32 %v2254, %v2545
          %v2674 = vadd.f32 %v2255, %v2546
          %v2675 = vadd.f32 %v2256, %v2547
          %v2676 = vadd.f32 %v2257, %v2548
          %v2677 = vadd.f32 %v2258, %v2549
          %v2678 = vadd.f32 %v2259, %v2550
          %v2679 = vadd.f32 %v2260, %v2551
          %v2680 = vadd.f32 %v2261, %v2552
          %v2681 = vadd.f32 %v2262, %v2553
          %v2682 = vadd.f32 %v2263, %v2554
          %v2683 = vadd.f32 %v2264, %v2555
          %v2684 = vadd.f32 %v2265, %v2556
          %v2685 = vadd.f32 %v2266, %v2557
          %v2686 = vadd.f32 %v2267, %v2558
          %v2687 = vadd.f32 %v2268, %v2559
          %v2688 = vadd.f32 %v2269, %v2560
          %v2689 = vadd.f32 %v2270, %v2561
          %v2690 = vadd.f32 %v2271, %v2562
          %v2691 = vadd.f32 %v2272, %v2563
          %v2692 = vadd.f32 %v2273, %v2564
          %v2693 = vadd.f32 %v2274, %v2565
          %v2694 = vadd.f32 %v2275, %v2566
          %v2695 = vadd.f32 %v2276, %v2567
          %v2696 = vadd.f32 %v2277, %v2568
          %v2697 = vadd.f32 %v2278, %v2569
          %v2698 = vadd.f32 %v2279, %v2570
          %v2699 = vadd.f32 %v2280, %v2571
          %v2700 = vadd.f32 %v2281, %v2572
          %v2701 = vadd.f32 %v2282, %v2573
          %v2702 = vadd.f32 %v2283, %v2574
          %v2703 = vadd.f32 %v2284, %v2575
          %v2704 = vadd.f32 %v2285, %v2576
          %v2705 = vadd.f32 %v2286, %v2577
          %v2706 = vadd.f32 %v2287, %v2578
          %v2707 = vadd.f32 %v2288, %v2579
          %v2708 = vadd.f32 %v2289, %v2580
          %v2709 = vadd.f32 %v2290, %v2581
          %v2710 = vadd.f32 %v2291, %v2582
          %v2711 = vadd.f32 %v2292, %v2583
          %v2712 = vadd.f32 %v2293, %v2584
          %v2713 = vadd.f32 %v2294, %v2585
          %v2714 = vadd.f32 %v2295, %v2586
          %v2715 = vadd.f32 %v2296, %v2587
          %v2716 = vadd.f32 %v2297, %v2588
          %v2717 = vadd.f32 %v2298, %v2589
          %v2718 = vadd.f32 %v2299, %v2590
          %v2719 = vadd.f32 %v2300, %v2591
          %v2720 = vadd.f32 %v2301, %v2592
          %v2721 = vadd.f32 %v2302, %v2593
          %v2722 = vadd.f32 %v2303, %v2594
          %v2723 = vadd.f32 %v2304, %v2595
          %v2724 = vadd.f32 %v2305, %v2596
          %v2725 = vadd.f32 %v2306, %v2597
          %v2726 = vadd.f32 %v2307, %v2598
          %v2727 = vadd.f32 %v2308, %v2599
          %v2728 = vadd.f32 %v2309, %v2600
          %v2729 = vadd.f32 %v2310, %v2601
          %v2730 = vadd.f32 %v2311, %v2602
          %v2731 = vadd.f32 %v2312, %v2603
          %v2732 = vadd.f32 %v2313, %v2604
          %v2733 = vadd.f32 %v2314, %v2605
          %v2734 = vadd.f32 %v2315, %v2606
          %v2735 = vadd.f32 %v2316, %v2607
          %v2736 = vadd.f32 %v2317, %v2608
          %v2737 = vadd.f32 %v2318, %v2609
          %v2738 = vadd.f32 %v2319, %v2610
          %v2739 = vadd.f32 %v2320, %v2611
          %v2740 = vadd.f32 %v2321, %v2612
          %v2741 = vadd.f32 %v2322, %v2613
          %v2742 = vadd.f32 %v2323, %v2614
          %v2743 = vadd.f32 %v2324, %v2615
          %v2744 = vadd.f32 %v2325, %v2616
          %v2745 = vadd.f32 %v2326, %v2617
          %v2746 = vadd.f32 %v2327, %v2618
          %v2747 = vadd.f32 %v2328, %v2619
          %v2748 = vadd.f32 %v2329, %v2620
          %v2749 = vadd.f32 %v2330, %v2621
          %v2750 = vadd.f32 %v2331, %v2622
          %v2751 = vadd.f32 %v2332, %v2623
          %v2752 = vadd.f32 %v2333, %v2624
          %v2753 = vadd.f32 %v2334, %v2625
          %v2754 = vadd.f32 %v2335, %v2626
          %v2755 = vadd.f32 %v2336, %v2627
          %v2756 = vadd.f32 %v2337, %v2628
          %v2757 = vadd.f32 %v2338, %v2629
          %v2758 = vadd.f32 %v2339, %v2630
          %v2759 = vadd.f32 %v2340, %v2631
          %v2760 = vadd.f32 %v2341, %v2632
          %v2761 = vadd.f32 %v2342, %v2633
          %v2762 = vadd.f32 %v2343, %v2634
          %v2763 = vadd.f32 %v2344, %v2635
          %v2764 = vadd.f32 %v2345, %v2636
          %v2765 = vadd.f32 %v2346, %v2637
          %v2766 = vadd.f32 %v2347, %v2638
          %v2767 = vadd.f32 %v2348, %v2639
          %v2768 = vadd.f32 %v2349, %v2640
          %v2769 = vadd.f32 %v2350, %v2641
          %v2770 = vadd.f32 %v2351, %v2642
          %v2771 = vadd.f32 %v2352, %v2643
          %v2772 = vadd.f32 %v2353, %v2644
          %v2773 = vadd.f32 %v2354, %v2645
          %v2774 = vadd.f32 %v2355, %v2646
          %v2775 = vadd.f32 %v2356, %v2647
          %v2776 = vadd.f32 %v2357, %v2648
          %v2777 = vadd.f32 %v2358, %v2649
          %v2778 = vadd.f32 %v2359, %v2650
          %v2779 = vadd.f32 %v2360, %v2651
          %v2780 = vadd.f32 %v2361, %v2652
          %v2781 = vadd.f32 %v2362, %v2653
          %v2782 = vadd.f32 %v2363, %v2654
          %v2783 = vadd.f32 %v2364, %v2655
          %v2784 = vadd.f32 %v2365, %v2656
          %v2785 = vadd.f32 %v2366, %v2657
          %v2786 = vadd.f32 %v2367, %v2658
          %v2787 = vadd.f32 %v2368, %v2659
          %v2788 = vadd.f32 %v2369, %v2660
          %v2789 = vadd.f32 %v2370, %v2661
          %v2790 = vadd.f32 %v2371, %v2662
          %v2791 = vadd.f32 %v2372, %v2663
          %v2792 = vadd.f32 %v2373, %v2664
          %v2793 = vadd.f32 %v2374, %v2665
          %v2794 = vadd.f32 %v2375, %v2666
          %v2795 = vadd.f32 %v2376, %v2667
          %v2796 = vadd.f32 %v2377, %v2668
          %v2797 = vadd.f32 %v2378, %v2669
          %v2798 = vadd.f32 %v2379, %v2670
          %v2799 = vadd.f32 %v2380, %v2671
          %v2800 = vadd.f32 %v2381, %v2672
          %v2801 = vlaneseq
          %v2802 = vshrl.u32 %v2801, 7
          %v2803 = vsub.s32 2, %v2802
          %v2804 = vrot.slane %v271, %v2803
          %v2805 = vlaneseq
          %v2806 = vshrl.u32 %v2805, 7
          %v2807 = vsub.s32 6, %v2806
          %v2808 = vrot.slane %v271, %v2807
          %v2809 = vlaneseq
          %v2810 = vshrl.u32 %v2809, 7
          %v2811 = vsub.s32 2, %v2810
          %v2812 = vrot.slane %v2804, %v2811
          %v2813 = vlaneseq
          %v2814 = vshrl.u32 %v2813, 7
          %v2815 = vsub.s32 2, %v2814
          %v2816 = vrot.slane %v2808, %v2815
          %vm2817 = vcmp.eq.s32.totalorder %v351, %v2812
          %vm2818 = vcmp.eq.s32.totalorder %v351, %v2816
          %vm2819 = vcmp.eq.s32.totalorder %v352, %v2812
          %vm2820 = vcmp.eq.s32.totalorder %v352, %v2816
          %vm2821 = vcmp.eq.s32.totalorder %v353, %v2812
          %vm2822 = vcmp.eq.s32.totalorder %v353, %v2816
          %vm2823 = vcmp.eq.s32.totalorder %v354, %v2812
          %vm2824 = vcmp.eq.s32.totalorder %v354, %v2816
          %vm2825 = vcmp.eq.s32.totalorder %v355, %v2812
          %vm2826 = vcmp.eq.s32.totalorder %v355, %v2816
          %vm2827 = vcmp.eq.s32.totalorder %v356, %v2812
          %vm2828 = vcmp.eq.s32.totalorder %v356, %v2816
          %vm2829 = vcmp.eq.s32.totalorder %v357, %v2812
          %vm2830 = vcmp.eq.s32.totalorder %v357, %v2816
          %vm2831 = vcmp.eq.s32.totalorder %v358, %v2812
          %vm2832 = vcmp.eq.s32.totalorder %v358, %v2816
          %vm2833 = vcmp.eq.s32.totalorder %v359, %v2812
          %vm2834 = vcmp.eq.s32.totalorder %v359, %v2816
          %vm2835 = vcmp.eq.s32.totalorder %v360, %v2812
          %vm2836 = vcmp.eq.s32.totalorder %v360, %v2816
          %vm2837 = vcmp.eq.s32.totalorder %v361, %v2812
          %vm2838 = vcmp.eq.s32.totalorder %v361, %v2816
          %vm2839 = vcmp.eq.s32.totalorder %v362, %v2812
          %vm2840 = vcmp.eq.s32.totalorder %v362, %v2816
          %vm2841 = vcmp.eq.s32.totalorder %v363, %v2812
          %vm2842 = vcmp.eq.s32.totalorder %v363, %v2816
          %vm2843 = vcmp.eq.s32.totalorder %v364, %v2812
          %vm2844 = vcmp.eq.s32.totalorder %v364, %v2816
          %vm2845 = vcmp.eq.s32.totalorder %v365, %v2812
          %vm2846 = vcmp.eq.s32.totalorder %v365, %v2816
          %vm2847 = vcmp.eq.s32.totalorder %v366, %v2812
          %vm2848 = vcmp.eq.s32.totalorder %v366, %v2816
          %vm2849 = vcmp.eq.s32.totalorder %v367, %v2812
          %vm2850 = vcmp.eq.s32.totalorder %v367, %v2816
          %vm2851 = vcmp.eq.s32.totalorder %v368, %v2812
          %vm2852 = vcmp.eq.s32.totalorder %v368, %v2816
          %vm2853 = vcmp.eq.s32.totalorder %v369, %v2812
          %vm2854 = vcmp.eq.s32.totalorder %v369, %v2816
          %vm2855 = vcmp.eq.s32.totalorder %v370, %v2812
          %vm2856 = vcmp.eq.s32.totalorder %v370, %v2816
          %vm2857 = vcmp.eq.s32.totalorder %v371, %v2812
          %vm2858 = vcmp.eq.s32.totalorder %v371, %v2816
          %vm2859 = vcmp.eq.s32.totalorder %v372, %v2812
          %vm2860 = vcmp.eq.s32.totalorder %v372, %v2816
          %vm2861 = vcmp.eq.s32.totalorder %v373, %v2812
          %vm2862 = vcmp.eq.s32.totalorder %v373, %v2816
          %vm2863 = vcmp.eq.s32.totalorder %v374, %v2812
          %vm2864 = vcmp.eq.s32.totalorder %v374, %v2816
          %vm2865 = vcmp.eq.s32.totalorder %v375, %v2812
          %vm2866 = vcmp.eq.s32.totalorder %v375, %v2816
          %vm2867 = vcmp.eq.s32.totalorder %v376, %v2812
          %vm2868 = vcmp.eq.s32.totalorder %v376, %v2816
          %vm2869 = vcmp.eq.s32.totalorder %v377, %v2812
          %vm2870 = vcmp.eq.s32.totalorder %v377, %v2816
          %vm2871 = vcmp.eq.s32.totalorder %v378, %v2812
          %vm2872 = vcmp.eq.s32.totalorder %v378, %v2816
          %vm2873 = vcmp.eq.s32.totalorder %v379, %v2812
          %vm2874 = vcmp.eq.s32.totalorder %v379, %v2816
          %vm2875 = vcmp.eq.s32.totalorder %v380, %v2812
          %vm2876 = vcmp.eq.s32.totalorder %v380, %v2816
          %vm2877 = vcmp.eq.s32.totalorder %v381, %v2812
          %vm2878 = vcmp.eq.s32.totalorder %v381, %v2816
          %vm2879 = vcmp.eq.s32.totalorder %v382, %v2812
          %vm2880 = vcmp.eq.s32.totalorder %v382, %v2816
          %vm2881 = vcmp.eq.s32.totalorder %v383, %v2812
          %vm2882 = vcmp.eq.s32.totalorder %v383, %v2816
          %vm2883 = vcmp.eq.s32.totalorder %v384, %v2812
          %vm2884 = vcmp.eq.s32.totalorder %v384, %v2816
          %vm2885 = vcmp.eq.s32.totalorder %v385, %v2812
          %vm2886 = vcmp.eq.s32.totalorder %v385, %v2816
          %vm2887 = vcmp.eq.s32.totalorder %v386, %v2812
          %vm2888 = vcmp.eq.s32.totalorder %v386, %v2816
          %vm2889 = vcmp.eq.s32.totalorder %v387, %v2812
          %vm2890 = vcmp.eq.s32.totalorder %v387, %v2816
          %vm2891 = vcmp.eq.s32.totalorder %v388, %v2812
          %vm2892 = vcmp.eq.s32.totalorder %v388, %v2816
          %vm2893 = vcmp.eq.s32.totalorder %v389, %v2812
          %vm2894 = vcmp.eq.s32.totalorder %v389, %v2816
          %vm2895 = vcmp.eq.s32.totalorder %v390, %v2812
          %vm2896 = vcmp.eq.s32.totalorder %v390, %v2816
          %vm2897 = vcmp.eq.s32.totalorder %v391, %v2812
          %vm2898 = vcmp.eq.s32.totalorder %v391, %v2816
          %vm2899 = vcmp.eq.s32.totalorder %v392, %v2812
          %vm2900 = vcmp.eq.s32.totalorder %v392, %v2816
          %vm2901 = vcmp.eq.s32.totalorder %v393, %v2812
          %vm2902 = vcmp.eq.s32.totalorder %v393, %v2816
          %vm2903 = vcmp.eq.s32.totalorder %v394, %v2812
          %vm2904 = vcmp.eq.s32.totalorder %v394, %v2816
          %vm2905 = vcmp.eq.s32.totalorder %v395, %v2812
          %vm2906 = vcmp.eq.s32.totalorder %v395, %v2816
          %vm2907 = vcmp.eq.s32.totalorder %v396, %v2812
          %vm2908 = vcmp.eq.s32.totalorder %v396, %v2816
          %vm2909 = vcmp.eq.s32.totalorder %v397, %v2812
          %vm2910 = vcmp.eq.s32.totalorder %v397, %v2816
          %vm2911 = vcmp.eq.s32.totalorder %v398, %v2812
          %vm2912 = vcmp.eq.s32.totalorder %v398, %v2816
          %vm2913 = vcmp.eq.s32.totalorder %v399, %v2812
          %vm2914 = vcmp.eq.s32.totalorder %v399, %v2816
          %vm2915 = vcmp.eq.s32.totalorder %v400, %v2812
          %vm2916 = vcmp.eq.s32.totalorder %v400, %v2816
          %vm2917 = vcmp.eq.s32.totalorder %v401, %v2812
          %vm2918 = vcmp.eq.s32.totalorder %v401, %v2816
          %vm2919 = vcmp.eq.s32.totalorder %v402, %v2812
          %vm2920 = vcmp.eq.s32.totalorder %v402, %v2816
          %vm2921 = vcmp.eq.s32.totalorder %v403, %v2812
          %vm2922 = vcmp.eq.s32.totalorder %v403, %v2816
          %vm2923 = vcmp.eq.s32.totalorder %v404, %v2812
          %vm2924 = vcmp.eq.s32.totalorder %v404, %v2816
          %vm2925 = vcmp.eq.s32.totalorder %v405, %v2812
          %vm2926 = vcmp.eq.s32.totalorder %v405, %v2816
          %vm2927 = vcmp.eq.s32.totalorder %v406, %v2812
          %vm2928 = vcmp.eq.s32.totalorder %v406, %v2816
          %vm2929 = vcmp.eq.s32.totalorder %v407, %v2812
          %vm2930 = vcmp.eq.s32.totalorder %v407, %v2816
          %vm2931 = vcmp.eq.s32.totalorder %v408, %v2812
          %vm2932 = vcmp.eq.s32.totalorder %v408, %v2816
          %vm2933 = vcmp.eq.s32.totalorder %v409, %v2812
          %vm2934 = vcmp.eq.s32.totalorder %v409, %v2816
          %vm2935 = vcmp.eq.s32.totalorder %v410, %v2812
          %vm2936 = vcmp.eq.s32.totalorder %v410, %v2816
          %vm2937 = vcmp.eq.s32.totalorder %v411, %v2812
          %vm2938 = vcmp.eq.s32.totalorder %v411, %v2816
          %vm2939 = vcmp.eq.s32.totalorder %v412, %v2812
          %vm2940 = vcmp.eq.s32.totalorder %v412, %v2816
          %vm2941 = vcmp.eq.s32.totalorder %v413, %v2812
          %vm2942 = vcmp.eq.s32.totalorder %v413, %v2816
          %vm2943 = vcmp.eq.s32.totalorder %v414, %v2812
          %vm2944 = vcmp.eq.s32.totalorder %v414, %v2816
          %v2946 = vlaneseq
          %v2947 = vshrl.u32 %v2946, 7
          %v2948 = vsub.s32 2, %v2947
          %v2949 = vrot.slane %v273, %v2948
          %v2950 = vlaneseq
          %v2951 = vshrl.u32 %v2950, 7
          %v2952 = vsub.s32 6, %v2951
          %v2953 = vrot.slane %v273, %v2952
          %v2956 = vlaneseq
          %v2957 = vshrl.u32 %v2956, 7
          %v2958 = vsub.s32 2, %v2957
          %v2959 = vrot.slane %v2949, %v2958
          %v2960 = vlaneseq
          %v2961 = vshrl.u32 %v2960, 7
          %v2962 = vsub.s32 2, %v2961
          %v2963 = vrot.slane %v2953, %v2962
          %v2964 = vsel %vm2817, %v2959, 0.0
          %v2965 = vsel %vm2818, %v2963, 0.0
          %v2966 = vsel %vm2819, %v2959, 0.0
          %v2967 = vsel %vm2820, %v2963, 0.0
          %v2968 = vsel %vm2821, %v2959, 0.0
          %v2969 = vsel %vm2822, %v2963, 0.0
          %v2970 = vsel %vm2823, %v2959, 0.0
          %v2971 = vsel %vm2824, %v2963, 0.0
          %v2972 = vsel %vm2825, %v2959, 0.0
          %v2973 = vsel %vm2826, %v2963, 0.0
          %v2974 = vsel %vm2827, %v2959, 0.0
          %v2975 = vsel %vm2828, %v2963, 0.0
          %v2976 = vsel %vm2829, %v2959, 0.0
          %v2977 = vsel %vm2830, %v2963, 0.0
          %v2978 = vsel %vm2831, %v2959, 0.0
          %v2979 = vsel %vm2832, %v2963, 0.0
          %v2980 = vsel %vm2833, %v2959, 0.0
          %v2981 = vsel %vm2834, %v2963, 0.0
          %v2982 = vsel %vm2835, %v2959, 0.0
          %v2983 = vsel %vm2836, %v2963, 0.0
          %v2984 = vsel %vm2837, %v2959, 0.0
          %v2985 = vsel %vm2838, %v2963, 0.0
          %v2986 = vsel %vm2839, %v2959, 0.0
          %v2987 = vsel %vm2840, %v2963, 0.0
          %v2988 = vsel %vm2841, %v2959, 0.0
          %v2989 = vsel %vm2842, %v2963, 0.0
          %v2990 = vsel %vm2843, %v2959, 0.0
          %v2991 = vsel %vm2844, %v2963, 0.0
          %v2992 = vsel %vm2845, %v2959, 0.0
          %v2993 = vsel %vm2846, %v2963, 0.0
          %v2994 = vsel %vm2847, %v2959, 0.0
          %v2995 = vsel %vm2848, %v2963, 0.0
          %v2996 = vsel %vm2849, %v2959, 0.0
          %v2997 = vsel %vm2850, %v2963, 0.0
          %v2998 = vsel %vm2851, %v2959, 0.0
          %v2999 = vsel %vm2852, %v2963, 0.0
          %v3000 = vsel %vm2853, %v2959, 0.0
          %v3001 = vsel %vm2854, %v2963, 0.0
          %v3002 = vsel %vm2855, %v2959, 0.0
          %v3003 = vsel %vm2856, %v2963, 0.0
          %v3004 = vsel %vm2857, %v2959, 0.0
          %v3005 = vsel %vm2858, %v2963, 0.0
          %v3006 = vsel %vm2859, %v2959, 0.0
          %v3007 = vsel %vm2860, %v2963, 0.0
          %v3008 = vsel %vm2861, %v2959, 0.0
          %v3009 = vsel %vm2862, %v2963, 0.0
          %v3010 = vsel %vm2863, %v2959, 0.0
          %v3011 = vsel %vm2864, %v2963, 0.0
          %v3012 = vsel %vm2865, %v2959, 0.0
          %v3013 = vsel %vm2866, %v2963, 0.0
          %v3014 = vsel %vm2867, %v2959, 0.0
          %v3015 = vsel %vm2868, %v2963, 0.0
          %v3016 = vsel %vm2869, %v2959, 0.0
          %v3017 = vsel %vm2870, %v2963, 0.0
          %v3018 = vsel %vm2871, %v2959, 0.0
          %v3019 = vsel %vm2872, %v2963, 0.0
          %v3020 = vsel %vm2873, %v2959, 0.0
          %v3021 = vsel %vm2874, %v2963, 0.0
          %v3022 = vsel %vm2875, %v2959, 0.0
          %v3023 = vsel %vm2876, %v2963, 0.0
          %v3024 = vsel %vm2877, %v2959, 0.0
          %v3025 = vsel %vm2878, %v2963, 0.0
          %v3026 = vsel %vm2879, %v2959, 0.0
          %v3027 = vsel %vm2880, %v2963, 0.0
          %v3028 = vsel %vm2881, %v2959, 0.0
          %v3029 = vsel %vm2882, %v2963, 0.0
          %v3030 = vsel %vm2883, %v2959, 0.0
          %v3031 = vsel %vm2884, %v2963, 0.0
          %v3032 = vsel %vm2885, %v2959, 0.0
          %v3033 = vsel %vm2886, %v2963, 0.0
          %v3034 = vsel %vm2887, %v2959, 0.0
          %v3035 = vsel %vm2888, %v2963, 0.0
          %v3036 = vsel %vm2889, %v2959, 0.0
          %v3037 = vsel %vm2890, %v2963, 0.0
          %v3038 = vsel %vm2891, %v2959, 0.0
          %v3039 = vsel %vm2892, %v2963, 0.0
          %v3040 = vsel %vm2893, %v2959, 0.0
          %v3041 = vsel %vm2894, %v2963, 0.0
          %v3042 = vsel %vm2895, %v2959, 0.0
          %v3043 = vsel %vm2896, %v2963, 0.0
          %v3044 = vsel %vm2897, %v2959, 0.0
          %v3045 = vsel %vm2898, %v2963, 0.0
          %v3046 = vsel %vm2899, %v2959, 0.0
          %v3047 = vsel %vm2900, %v2963, 0.0
          %v3048 = vsel %vm2901, %v2959, 0.0
          %v3049 = vsel %vm2902, %v2963, 0.0
          %v3050 = vsel %vm2903, %v2959, 0.0
          %v3051 = vsel %vm2904, %v2963, 0.0
          %v3052 = vsel %vm2905, %v2959, 0.0
          %v3053 = vsel %vm2906, %v2963, 0.0
          %v3054 = vsel %vm2907, %v2959, 0.0
          %v3055 = vsel %vm2908, %v2963, 0.0
          %v3056 = vsel %vm2909, %v2959, 0.0
          %v3057 = vsel %vm2910, %v2963, 0.0
          %v3058 = vsel %vm2911, %v2959, 0.0
          %v3059 = vsel %vm2912, %v2963, 0.0
          %v3060 = vsel %vm2913, %v2959, 0.0
          %v3061 = vsel %vm2914, %v2963, 0.0
          %v3062 = vsel %vm2915, %v2959, 0.0
          %v3063 = vsel %vm2916, %v2963, 0.0
          %v3064 = vsel %vm2917, %v2959, 0.0
          %v3065 = vsel %vm2918, %v2963, 0.0
          %v3066 = vsel %vm2919, %v2959, 0.0
          %v3067 = vsel %vm2920, %v2963, 0.0
          %v3068 = vsel %vm2921, %v2959, 0.0
          %v3069 = vsel %vm2922, %v2963, 0.0
          %v3070 = vsel %vm2923, %v2959, 0.0
          %v3071 = vsel %vm2924, %v2963, 0.0
          %v3072 = vsel %vm2925, %v2959, 0.0
          %v3073 = vsel %vm2926, %v2963, 0.0
          %v3074 = vsel %vm2927, %v2959, 0.0
          %v3075 = vsel %vm2928, %v2963, 0.0
          %v3076 = vsel %vm2929, %v2959, 0.0
          %v3077 = vsel %vm2930, %v2963, 0.0
          %v3078 = vsel %vm2931, %v2959, 0.0
          %v3079 = vsel %vm2932, %v2963, 0.0
          %v3080 = vsel %vm2933, %v2959, 0.0
          %v3081 = vsel %vm2934, %v2963, 0.0
          %v3082 = vsel %vm2935, %v2959, 0.0
          %v3083 = vsel %vm2936, %v2963, 0.0
          %v3084 = vsel %vm2937, %v2959, 0.0
          %v3085 = vsel %vm2938, %v2963, 0.0
          %v3086 = vsel %vm2939, %v2959, 0.0
          %v3087 = vsel %vm2940, %v2963, 0.0
          %v3088 = vsel %vm2941, %v2959, 0.0
          %v3089 = vsel %vm2942, %v2963, 0.0
          %v3090 = vsel %vm2943, %v2959, 0.0
          %v3091 = vsel %vm2944, %v2963, 0.0
          %v3092 = vadd.f32 %v2673, %v2964
          %v3093 = vadd.f32 %v2674, %v2965
          %v3094 = vadd.f32 %v2675, %v2966
          %v3095 = vadd.f32 %v2676, %v2967
          %v3096 = vadd.f32 %v2677, %v2968
          %v3097 = vadd.f32 %v2678, %v2969
          %v3098 = vadd.f32 %v2679, %v2970
          %v3099 = vadd.f32 %v2680, %v2971
          %v3100 = vadd.f32 %v2681, %v2972
          %v3101 = vadd.f32 %v2682, %v2973
          %v3102 = vadd.f32 %v2683, %v2974
          %v3103 = vadd.f32 %v2684, %v2975
          %v3104 = vadd.f32 %v2685, %v2976
          %v3105 = vadd.f32 %v2686, %v2977
          %v3106 = vadd.f32 %v2687, %v2978
          %v3107 = vadd.f32 %v2688, %v2979
          %v3108 = vadd.f32 %v2689, %v2980
          %v3109 = vadd.f32 %v2690, %v2981
          %v3110 = vadd.f32 %v2691, %v2982
          %v3111 = vadd.f32 %v2692, %v2983
          %v3112 = vadd.f32 %v2693, %v2984
          %v3113 = vadd.f32 %v2694, %v2985
          %v3114 = vadd.f32 %v2695, %v2986
          %v3115 = vadd.f32 %v2696, %v2987
          %v3116 = vadd.f32 %v2697, %v2988
          %v3117 = vadd.f32 %v2698, %v2989
          %v3118 = vadd.f32 %v2699, %v2990
          %v3119 = vadd.f32 %v2700, %v2991
          %v3120 = vadd.f32 %v2701, %v2992
          %v3121 = vadd.f32 %v2702, %v2993
          %v3122 = vadd.f32 %v2703, %v2994
          %v3123 = vadd.f32 %v2704, %v2995
          %v3124 = vadd.f32 %v2705, %v2996
          %v3125 = vadd.f32 %v2706, %v2997
          %v3126 = vadd.f32 %v2707, %v2998
          %v3127 = vadd.f32 %v2708, %v2999
          %v3128 = vadd.f32 %v2709, %v3000
          %v3129 = vadd.f32 %v2710, %v3001
          %v3130 = vadd.f32 %v2711, %v3002
          %v3131 = vadd.f32 %v2712, %v3003
          %v3132 = vadd.f32 %v2713, %v3004
          %v3133 = vadd.f32 %v2714, %v3005
          %v3134 = vadd.f32 %v2715, %v3006
          %v3135 = vadd.f32 %v2716, %v3007
          %v3136 = vadd.f32 %v2717, %v3008
          %v3137 = vadd.f32 %v2718, %v3009
          %v3138 = vadd.f32 %v2719, %v3010
          %v3139 = vadd.f32 %v2720, %v3011
          %v3140 = vadd.f32 %v2721, %v3012
          %v3141 = vadd.f32 %v2722, %v3013
          %v3142 = vadd.f32 %v2723, %v3014
          %v3143 = vadd.f32 %v2724, %v3015
          %v3144 = vadd.f32 %v2725, %v3016
          %v3145 = vadd.f32 %v2726, %v3017
          %v3146 = vadd.f32 %v2727, %v3018
          %v3147 = vadd.f32 %v2728, %v3019
          %v3148 = vadd.f32 %v2729, %v3020
          %v3149 = vadd.f32 %v2730, %v3021
          %v3150 = vadd.f32 %v2731, %v3022
          %v3151 = vadd.f32 %v2732, %v3023
          %v3152 = vadd.f32 %v2733, %v3024
          %v3153 = vadd.f32 %v2734, %v3025
          %v3154 = vadd.f32 %v2735, %v3026
          %v3155 = vadd.f32 %v2736, %v3027
          %v3156 = vadd.f32 %v2737, %v3028
          %v3157 = vadd.f32 %v2738, %v3029
          %v3158 = vadd.f32 %v2739, %v3030
          %v3159 = vadd.f32 %v2740, %v3031
          %v3160 = vadd.f32 %v2741, %v3032
          %v3161 = vadd.f32 %v2742, %v3033
          %v3162 = vadd.f32 %v2743, %v3034
          %v3163 = vadd.f32 %v2744, %v3035
          %v3164 = vadd.f32 %v2745, %v3036
          %v3165 = vadd.f32 %v2746, %v3037
          %v3166 = vadd.f32 %v2747, %v3038
          %v3167 = vadd.f32 %v2748, %v3039
          %v3168 = vadd.f32 %v2749, %v3040
          %v3169 = vadd.f32 %v2750, %v3041
          %v3170 = vadd.f32 %v2751, %v3042
          %v3171 = vadd.f32 %v2752, %v3043
          %v3172 = vadd.f32 %v2753, %v3044
          %v3173 = vadd.f32 %v2754, %v3045
          %v3174 = vadd.f32 %v2755, %v3046
          %v3175 = vadd.f32 %v2756, %v3047
          %v3176 = vadd.f32 %v2757, %v3048
          %v3177 = vadd.f32 %v2758, %v3049
          %v3178 = vadd.f32 %v2759, %v3050
          %v3179 = vadd.f32 %v2760, %v3051
          %v3180 = vadd.f32 %v2761, %v3052
          %v3181 = vadd.f32 %v2762, %v3053
          %v3182 = vadd.f32 %v2763, %v3054
          %v3183 = vadd.f32 %v2764, %v3055
          %v3184 = vadd.f32 %v2765, %v3056
          %v3185 = vadd.f32 %v2766, %v3057
          %v3186 = vadd.f32 %v2767, %v3058
          %v3187 = vadd.f32 %v2768, %v3059
          %v3188 = vadd.f32 %v2769, %v3060
          %v3189 = vadd.f32 %v2770, %v3061
          %v3190 = vadd.f32 %v2771, %v3062
          %v3191 = vadd.f32 %v2772, %v3063
          %v3192 = vadd.f32 %v2773, %v3064
          %v3193 = vadd.f32 %v2774, %v3065
          %v3194 = vadd.f32 %v2775, %v3066
          %v3195 = vadd.f32 %v2776, %v3067
          %v3196 = vadd.f32 %v2777, %v3068
          %v3197 = vadd.f32 %v2778, %v3069
          %v3198 = vadd.f32 %v2779, %v3070
          %v3199 = vadd.f32 %v2780, %v3071
          %v3200 = vadd.f32 %v2781, %v3072
          %v3201 = vadd.f32 %v2782, %v3073
          %v3202 = vadd.f32 %v2783, %v3074
          %v3203 = vadd.f32 %v2784, %v3075
          %v3204 = vadd.f32 %v2785, %v3076
          %v3205 = vadd.f32 %v2786, %v3077
          %v3206 = vadd.f32 %v2787, %v3078
          %v3207 = vadd.f32 %v2788, %v3079
          %v3208 = vadd.f32 %v2789, %v3080
          %v3209 = vadd.f32 %v2790, %v3081
          %v3210 = vadd.f32 %v2791, %v3082
          %v3211 = vadd.f32 %v2792, %v3083
          %v3212 = vadd.f32 %v2793, %v3084
          %v3213 = vadd.f32 %v2794, %v3085
          %v3214 = vadd.f32 %v2795, %v3086
          %v3215 = vadd.f32 %v2796, %v3087
          %v3216 = vadd.f32 %v2797, %v3088
          %v3217 = vadd.f32 %v2798, %v3089
          %v3218 = vadd.f32 %v2799, %v3090
          %v3219 = vadd.f32 %v2800, %v3091
          %v3220 = vlaneseq
          %v3221 = vshrl.u32 %v3220, 7
          %v3222 = vsub.s32 2, %v3221
          %v3223 = vrot.slane %v274, %v3222
          %v3224 = vlaneseq
          %v3225 = vshrl.u32 %v3224, 7
          %v3226 = vsub.s32 6, %v3225
          %v3227 = vrot.slane %v274, %v3226
          %v3228 = vlaneseq
          %v3229 = vshrl.u32 %v3228, 7
          %v3230 = vsub.s32 2, %v3229
          %v3231 = vrot.slane %v3223, %v3230
          %v3232 = vlaneseq
          %v3233 = vshrl.u32 %v3232, 7
          %v3234 = vsub.s32 2, %v3233
          %v3235 = vrot.slane %v3227, %v3234
          %vm3236 = vcmp.eq.s32.totalorder %v351, %v3231
          %vm3237 = vcmp.eq.s32.totalorder %v351, %v3235
          %vm3238 = vcmp.eq.s32.totalorder %v352, %v3231
          %vm3239 = vcmp.eq.s32.totalorder %v352, %v3235
          %vm3240 = vcmp.eq.s32.totalorder %v353, %v3231
          %vm3241 = vcmp.eq.s32.totalorder %v353, %v3235
          %vm3242 = vcmp.eq.s32.totalorder %v354, %v3231
          %vm3243 = vcmp.eq.s32.totalorder %v354, %v3235
          %vm3244 = vcmp.eq.s32.totalorder %v355, %v3231
          %vm3245 = vcmp.eq.s32.totalorder %v355, %v3235
          %vm3246 = vcmp.eq.s32.totalorder %v356, %v3231
          %vm3247 = vcmp.eq.s32.totalorder %v356, %v3235
          %vm3248 = vcmp.eq.s32.totalorder %v357, %v3231
          %vm3249 = vcmp.eq.s32.totalorder %v357, %v3235
          %vm3250 = vcmp.eq.s32.totalorder %v358, %v3231
          %vm3251 = vcmp.eq.s32.totalorder %v358, %v3235
          %vm3252 = vcmp.eq.s32.totalorder %v359, %v3231
          %vm3253 = vcmp.eq.s32.totalorder %v359, %v3235
          %vm3254 = vcmp.eq.s32.totalorder %v360, %v3231
          %vm3255 = vcmp.eq.s32.totalorder %v360, %v3235
          %vm3256 = vcmp.eq.s32.totalorder %v361, %v3231
          %vm3257 = vcmp.eq.s32.totalorder %v361, %v3235
          %vm3258 = vcmp.eq.s32.totalorder %v362, %v3231
          %vm3259 = vcmp.eq.s32.totalorder %v362, %v3235
          %vm3260 = vcmp.eq.s32.totalorder %v363, %v3231
          %vm3261 = vcmp.eq.s32.totalorder %v363, %v3235
          %vm3262 = vcmp.eq.s32.totalorder %v364, %v3231
          %vm3263 = vcmp.eq.s32.totalorder %v364, %v3235
          %vm3264 = vcmp.eq.s32.totalorder %v365, %v3231
          %vm3265 = vcmp.eq.s32.totalorder %v365, %v3235
          %vm3266 = vcmp.eq.s32.totalorder %v366, %v3231
          %vm3267 = vcmp.eq.s32.totalorder %v366, %v3235
          %vm3268 = vcmp.eq.s32.totalorder %v367, %v3231
          %vm3269 = vcmp.eq.s32.totalorder %v367, %v3235
          %vm3270 = vcmp.eq.s32.totalorder %v368, %v3231
          %vm3271 = vcmp.eq.s32.totalorder %v368, %v3235
          %vm3272 = vcmp.eq.s32.totalorder %v369, %v3231
          %vm3273 = vcmp.eq.s32.totalorder %v369, %v3235
          %vm3274 = vcmp.eq.s32.totalorder %v370, %v3231
          %vm3275 = vcmp.eq.s32.totalorder %v370, %v3235
          %vm3276 = vcmp.eq.s32.totalorder %v371, %v3231
          %vm3277 = vcmp.eq.s32.totalorder %v371, %v3235
          %vm3278 = vcmp.eq.s32.totalorder %v372, %v3231
          %vm3279 = vcmp.eq.s32.totalorder %v372, %v3235
          %vm3280 = vcmp.eq.s32.totalorder %v373, %v3231
          %vm3281 = vcmp.eq.s32.totalorder %v373, %v3235
          %vm3282 = vcmp.eq.s32.totalorder %v374, %v3231
          %vm3283 = vcmp.eq.s32.totalorder %v374, %v3235
          %vm3284 = vcmp.eq.s32.totalorder %v375, %v3231
          %vm3285 = vcmp.eq.s32.totalorder %v375, %v3235
          %vm3286 = vcmp.eq.s32.totalorder %v376, %v3231
          %vm3287 = vcmp.eq.s32.totalorder %v376, %v3235
          %vm3288 = vcmp.eq.s32.totalorder %v377, %v3231
          %vm3289 = vcmp.eq.s32.totalorder %v377, %v3235
          %vm3290 = vcmp.eq.s32.totalorder %v378, %v3231
          %vm3291 = vcmp.eq.s32.totalorder %v378, %v3235
          %vm3292 = vcmp.eq.s32.totalorder %v379, %v3231
          %vm3293 = vcmp.eq.s32.totalorder %v379, %v3235
          %vm3294 = vcmp.eq.s32.totalorder %v380, %v3231
          %vm3295 = vcmp.eq.s32.totalorder %v380, %v3235
          %vm3296 = vcmp.eq.s32.totalorder %v381, %v3231
          %vm3297 = vcmp.eq.s32.totalorder %v381, %v3235
          %vm3298 = vcmp.eq.s32.totalorder %v382, %v3231
          %vm3299 = vcmp.eq.s32.totalorder %v382, %v3235
          %vm3300 = vcmp.eq.s32.totalorder %v383, %v3231
          %vm3301 = vcmp.eq.s32.totalorder %v383, %v3235
          %vm3302 = vcmp.eq.s32.totalorder %v384, %v3231
          %vm3303 = vcmp.eq.s32.totalorder %v384, %v3235
          %vm3304 = vcmp.eq.s32.totalorder %v385, %v3231
          %vm3305 = vcmp.eq.s32.totalorder %v385, %v3235
          %vm3306 = vcmp.eq.s32.totalorder %v386, %v3231
          %vm3307 = vcmp.eq.s32.totalorder %v386, %v3235
          %vm3308 = vcmp.eq.s32.totalorder %v387, %v3231
          %vm3309 = vcmp.eq.s32.totalorder %v387, %v3235
          %vm3310 = vcmp.eq.s32.totalorder %v388, %v3231
          %vm3311 = vcmp.eq.s32.totalorder %v388, %v3235
          %vm3312 = vcmp.eq.s32.totalorder %v389, %v3231
          %vm3313 = vcmp.eq.s32.totalorder %v389, %v3235
          %vm3314 = vcmp.eq.s32.totalorder %v390, %v3231
          %vm3315 = vcmp.eq.s32.totalorder %v390, %v3235
          %vm3316 = vcmp.eq.s32.totalorder %v391, %v3231
          %vm3317 = vcmp.eq.s32.totalorder %v391, %v3235
          %vm3318 = vcmp.eq.s32.totalorder %v392, %v3231
          %vm3319 = vcmp.eq.s32.totalorder %v392, %v3235
          %vm3320 = vcmp.eq.s32.totalorder %v393, %v3231
          %vm3321 = vcmp.eq.s32.totalorder %v393, %v3235
          %vm3322 = vcmp.eq.s32.totalorder %v394, %v3231
          %vm3323 = vcmp.eq.s32.totalorder %v394, %v3235
          %vm3324 = vcmp.eq.s32.totalorder %v395, %v3231
          %vm3325 = vcmp.eq.s32.totalorder %v395, %v3235
          %vm3326 = vcmp.eq.s32.totalorder %v396, %v3231
          %vm3327 = vcmp.eq.s32.totalorder %v396, %v3235
          %vm3328 = vcmp.eq.s32.totalorder %v397, %v3231
          %vm3329 = vcmp.eq.s32.totalorder %v397, %v3235
          %vm3330 = vcmp.eq.s32.totalorder %v398, %v3231
          %vm3331 = vcmp.eq.s32.totalorder %v398, %v3235
          %vm3332 = vcmp.eq.s32.totalorder %v399, %v3231
          %vm3333 = vcmp.eq.s32.totalorder %v399, %v3235
          %vm3334 = vcmp.eq.s32.totalorder %v400, %v3231
          %vm3335 = vcmp.eq.s32.totalorder %v400, %v3235
          %vm3336 = vcmp.eq.s32.totalorder %v401, %v3231
          %vm3337 = vcmp.eq.s32.totalorder %v401, %v3235
          %vm3338 = vcmp.eq.s32.totalorder %v402, %v3231
          %vm3339 = vcmp.eq.s32.totalorder %v402, %v3235
          %vm3340 = vcmp.eq.s32.totalorder %v403, %v3231
          %vm3341 = vcmp.eq.s32.totalorder %v403, %v3235
          %vm3342 = vcmp.eq.s32.totalorder %v404, %v3231
          %vm3343 = vcmp.eq.s32.totalorder %v404, %v3235
          %vm3344 = vcmp.eq.s32.totalorder %v405, %v3231
          %vm3345 = vcmp.eq.s32.totalorder %v405, %v3235
          %vm3346 = vcmp.eq.s32.totalorder %v406, %v3231
          %vm3347 = vcmp.eq.s32.totalorder %v406, %v3235
          %vm3348 = vcmp.eq.s32.totalorder %v407, %v3231
          %vm3349 = vcmp.eq.s32.totalorder %v407, %v3235
          %vm3350 = vcmp.eq.s32.totalorder %v408, %v3231
          %vm3351 = vcmp.eq.s32.totalorder %v408, %v3235
          %vm3352 = vcmp.eq.s32.totalorder %v409, %v3231
          %vm3353 = vcmp.eq.s32.totalorder %v409, %v3235
          %vm3354 = vcmp.eq.s32.totalorder %v410, %v3231
          %vm3355 = vcmp.eq.s32.totalorder %v410, %v3235
          %vm3356 = vcmp.eq.s32.totalorder %v411, %v3231
          %vm3357 = vcmp.eq.s32.totalorder %v411, %v3235
          %vm3358 = vcmp.eq.s32.totalorder %v412, %v3231
          %vm3359 = vcmp.eq.s32.totalorder %v412, %v3235
          %vm3360 = vcmp.eq.s32.totalorder %v413, %v3231
          %vm3361 = vcmp.eq.s32.totalorder %v413, %v3235
          %vm3362 = vcmp.eq.s32.totalorder %v414, %v3231
          %vm3363 = vcmp.eq.s32.totalorder %v414, %v3235
          %v3365 = vlaneseq
          %v3366 = vshrl.u32 %v3365, 7
          %v3367 = vsub.s32 2, %v3366
          %v3368 = vrot.slane %v275, %v3367
          %v3369 = vlaneseq
          %v3370 = vshrl.u32 %v3369, 7
          %v3371 = vsub.s32 6, %v3370
          %v3372 = vrot.slane %v275, %v3371
          %v3375 = vlaneseq
          %v3376 = vshrl.u32 %v3375, 7
          %v3377 = vsub.s32 2, %v3376
          %v3378 = vrot.slane %v3368, %v3377
          %v3379 = vlaneseq
          %v3380 = vshrl.u32 %v3379, 7
          %v3381 = vsub.s32 2, %v3380
          %v3382 = vrot.slane %v3372, %v3381
          %v3383 = vsel %vm3236, %v3378, 0.0
          %v3384 = vsel %vm3237, %v3382, 0.0
          %v3385 = vsel %vm3238, %v3378, 0.0
          %v3386 = vsel %vm3239, %v3382, 0.0
          %v3387 = vsel %vm3240, %v3378, 0.0
          %v3388 = vsel %vm3241, %v3382, 0.0
          %v3389 = vsel %vm3242, %v3378, 0.0
          %v3390 = vsel %vm3243, %v3382, 0.0
          %v3391 = vsel %vm3244, %v3378, 0.0
          %v3392 = vsel %vm3245, %v3382, 0.0
          %v3393 = vsel %vm3246, %v3378, 0.0
          %v3394 = vsel %vm3247, %v3382, 0.0
          %v3395 = vsel %vm3248, %v3378, 0.0
          %v3396 = vsel %vm3249, %v3382, 0.0
          %v3397 = vsel %vm3250, %v3378, 0.0
          %v3398 = vsel %vm3251, %v3382, 0.0
          %v3399 = vsel %vm3252, %v3378, 0.0
          %v3400 = vsel %vm3253, %v3382, 0.0
          %v3401 = vsel %vm3254, %v3378, 0.0
          %v3402 = vsel %vm3255, %v3382, 0.0
          %v3403 = vsel %vm3256, %v3378, 0.0
          %v3404 = vsel %vm3257, %v3382, 0.0
          %v3405 = vsel %vm3258, %v3378, 0.0
          %v3406 = vsel %vm3259, %v3382, 0.0
          %v3407 = vsel %vm3260, %v3378, 0.0
          %v3408 = vsel %vm3261, %v3382, 0.0
          %v3409 = vsel %vm3262, %v3378, 0.0
          %v3410 = vsel %vm3263, %v3382, 0.0
          %v3411 = vsel %vm3264, %v3378, 0.0
          %v3412 = vsel %vm3265, %v3382, 0.0
          %v3413 = vsel %vm3266, %v3378, 0.0
          %v3414 = vsel %vm3267, %v3382, 0.0
          %v3415 = vsel %vm3268, %v3378, 0.0
          %v3416 = vsel %vm3269, %v3382, 0.0
          %v3417 = vsel %vm3270, %v3378, 0.0
          %v3418 = vsel %vm3271, %v3382, 0.0
          %v3419 = vsel %vm3272, %v3378, 0.0
          %v3420 = vsel %vm3273, %v3382, 0.0
          %v3421 = vsel %vm3274, %v3378, 0.0
          %v3422 = vsel %vm3275, %v3382, 0.0
          %v3423 = vsel %vm3276, %v3378, 0.0
          %v3424 = vsel %vm3277, %v3382, 0.0
          %v3425 = vsel %vm3278, %v3378, 0.0
          %v3426 = vsel %vm3279, %v3382, 0.0
          %v3427 = vsel %vm3280, %v3378, 0.0
          %v3428 = vsel %vm3281, %v3382, 0.0
          %v3429 = vsel %vm3282, %v3378, 0.0
          %v3430 = vsel %vm3283, %v3382, 0.0
          %v3431 = vsel %vm3284, %v3378, 0.0
          %v3432 = vsel %vm3285, %v3382, 0.0
          %v3433 = vsel %vm3286, %v3378, 0.0
          %v3434 = vsel %vm3287, %v3382, 0.0
          %v3435 = vsel %vm3288, %v3378, 0.0
          %v3436 = vsel %vm3289, %v3382, 0.0
          %v3437 = vsel %vm3290, %v3378, 0.0
          %v3438 = vsel %vm3291, %v3382, 0.0
          %v3439 = vsel %vm3292, %v3378, 0.0
          %v3440 = vsel %vm3293, %v3382, 0.0
          %v3441 = vsel %vm3294, %v3378, 0.0
          %v3442 = vsel %vm3295, %v3382, 0.0
          %v3443 = vsel %vm3296, %v3378, 0.0
          %v3444 = vsel %vm3297, %v3382, 0.0
          %v3445 = vsel %vm3298, %v3378, 0.0
          %v3446 = vsel %vm3299, %v3382, 0.0
          %v3447 = vsel %vm3300, %v3378, 0.0
          %v3448 = vsel %vm3301, %v3382, 0.0
          %v3449 = vsel %vm3302, %v3378, 0.0
          %v3450 = vsel %vm3303, %v3382, 0.0
          %v3451 = vsel %vm3304, %v3378, 0.0
          %v3452 = vsel %vm3305, %v3382, 0.0
          %v3453 = vsel %vm3306, %v3378, 0.0
          %v3454 = vsel %vm3307, %v3382, 0.0
          %v3455 = vsel %vm3308, %v3378, 0.0
          %v3456 = vsel %vm3309, %v3382, 0.0
          %v3457 = vsel %vm3310, %v3378, 0.0
          %v3458 = vsel %vm3311, %v3382, 0.0
          %v3459 = vsel %vm3312, %v3378, 0.0
          %v3460 = vsel %vm3313, %v3382, 0.0
          %v3461 = vsel %vm3314, %v3378, 0.0
          %v3462 = vsel %vm3315, %v3382, 0.0
          %v3463 = vsel %vm3316, %v3378, 0.0
          %v3464 = vsel %vm3317, %v3382, 0.0
          %v3465 = vsel %vm3318, %v3378, 0.0
          %v3466 = vsel %vm3319, %v3382, 0.0
          %v3467 = vsel %vm3320, %v3378, 0.0
          %v3468 = vsel %vm3321, %v3382, 0.0
          %v3469 = vsel %vm3322, %v3378, 0.0
          %v3470 = vsel %vm3323, %v3382, 0.0
          %v3471 = vsel %vm3324, %v3378, 0.0
          %v3472 = vsel %vm3325, %v3382, 0.0
          %v3473 = vsel %vm3326, %v3378, 0.0
          %v3474 = vsel %vm3327, %v3382, 0.0
          %v3475 = vsel %vm3328, %v3378, 0.0
          %v3476 = vsel %vm3329, %v3382, 0.0
          %v3477 = vsel %vm3330, %v3378, 0.0
          %v3478 = vsel %vm3331, %v3382, 0.0
          %v3479 = vsel %vm3332, %v3378, 0.0
          %v3480 = vsel %vm3333, %v3382, 0.0
          %v3481 = vsel %vm3334, %v3378, 0.0
          %v3482 = vsel %vm3335, %v3382, 0.0
          %v3483 = vsel %vm3336, %v3378, 0.0
          %v3484 = vsel %vm3337, %v3382, 0.0
          %v3485 = vsel %vm3338, %v3378, 0.0
          %v3486 = vsel %vm3339, %v3382, 0.0
          %v3487 = vsel %vm3340, %v3378, 0.0
          %v3488 = vsel %vm3341, %v3382, 0.0
          %v3489 = vsel %vm3342, %v3378, 0.0
          %v3490 = vsel %vm3343, %v3382, 0.0
          %v3491 = vsel %vm3344, %v3378, 0.0
          %v3492 = vsel %vm3345, %v3382, 0.0
          %v3493 = vsel %vm3346, %v3378, 0.0
          %v3494 = vsel %vm3347, %v3382, 0.0
          %v3495 = vsel %vm3348, %v3378, 0.0
          %v3496 = vsel %vm3349, %v3382, 0.0
          %v3497 = vsel %vm3350, %v3378, 0.0
          %v3498 = vsel %vm3351, %v3382, 0.0
          %v3499 = vsel %vm3352, %v3378, 0.0
          %v3500 = vsel %vm3353, %v3382, 0.0
          %v3501 = vsel %vm3354, %v3378, 0.0
          %v3502 = vsel %vm3355, %v3382, 0.0
          %v3503 = vsel %vm3356, %v3378, 0.0
          %v3504 = vsel %vm3357, %v3382, 0.0
          %v3505 = vsel %vm3358, %v3378, 0.0
          %v3506 = vsel %vm3359, %v3382, 0.0
          %v3507 = vsel %vm3360, %v3378, 0.0
          %v3508 = vsel %vm3361, %v3382, 0.0
          %v3509 = vsel %vm3362, %v3378, 0.0
          %v3510 = vsel %vm3363, %v3382, 0.0
          %v3511 = vadd.f32 %v3092, %v3383
          %v3512 = vadd.f32 %v3093, %v3384
          %v3513 = vadd.f32 %v3094, %v3385
          %v3514 = vadd.f32 %v3095, %v3386
          %v3515 = vadd.f32 %v3096, %v3387
          %v3516 = vadd.f32 %v3097, %v3388
          %v3517 = vadd.f32 %v3098, %v3389
          %v3518 = vadd.f32 %v3099, %v3390
          %v3519 = vadd.f32 %v3100, %v3391
          %v3520 = vadd.f32 %v3101, %v3392
          %v3521 = vadd.f32 %v3102, %v3393
          %v3522 = vadd.f32 %v3103, %v3394
          %v3523 = vadd.f32 %v3104, %v3395
          %v3524 = vadd.f32 %v3105, %v3396
          %v3525 = vadd.f32 %v3106, %v3397
          %v3526 = vadd.f32 %v3107, %v3398
          %v3527 = vadd.f32 %v3108, %v3399
          %v3528 = vadd.f32 %v3109, %v3400
          %v3529 = vadd.f32 %v3110, %v3401
          %v3530 = vadd.f32 %v3111, %v3402
          %v3531 = vadd.f32 %v3112, %v3403
          %v3532 = vadd.f32 %v3113, %v3404
          %v3533 = vadd.f32 %v3114, %v3405
          %v3534 = vadd.f32 %v3115, %v3406
          %v3535 = vadd.f32 %v3116, %v3407
          %v3536 = vadd.f32 %v3117, %v3408
          %v3537 = vadd.f32 %v3118, %v3409
          %v3538 = vadd.f32 %v3119, %v3410
          %v3539 = vadd.f32 %v3120, %v3411
          %v3540 = vadd.f32 %v3121, %v3412
          %v3541 = vadd.f32 %v3122, %v3413
          %v3542 = vadd.f32 %v3123, %v3414
          %v3543 = vadd.f32 %v3124, %v3415
          %v3544 = vadd.f32 %v3125, %v3416
          %v3545 = vadd.f32 %v3126, %v3417
          %v3546 = vadd.f32 %v3127, %v3418
          %v3547 = vadd.f32 %v3128, %v3419
          %v3548 = vadd.f32 %v3129, %v3420
          %v3549 = vadd.f32 %v3130, %v3421
          %v3550 = vadd.f32 %v3131, %v3422
          %v3551 = vadd.f32 %v3132, %v3423
          %v3552 = vadd.f32 %v3133, %v3424
          %v3553 = vadd.f32 %v3134, %v3425
          %v3554 = vadd.f32 %v3135, %v3426
          %v3555 = vadd.f32 %v3136, %v3427
          %v3556 = vadd.f32 %v3137, %v3428
          %v3557 = vadd.f32 %v3138, %v3429
          %v3558 = vadd.f32 %v3139, %v3430
          %v3559 = vadd.f32 %v3140, %v3431
          %v3560 = vadd.f32 %v3141, %v3432
          %v3561 = vadd.f32 %v3142, %v3433
          %v3562 = vadd.f32 %v3143, %v3434
          %v3563 = vadd.f32 %v3144, %v3435
          %v3564 = vadd.f32 %v3145, %v3436
          %v3565 = vadd.f32 %v3146, %v3437
          %v3566 = vadd.f32 %v3147, %v3438
          %v3567 = vadd.f32 %v3148, %v3439
          %v3568 = vadd.f32 %v3149, %v3440
          %v3569 = vadd.f32 %v3150, %v3441
          %v3570 = vadd.f32 %v3151, %v3442
          %v3571 = vadd.f32 %v3152, %v3443
          %v3572 = vadd.f32 %v3153, %v3444
          %v3573 = vadd.f32 %v3154, %v3445
          %v3574 = vadd.f32 %v3155, %v3446
          %v3575 = vadd.f32 %v3156, %v3447
          %v3576 = vadd.f32 %v3157, %v3448
          %v3577 = vadd.f32 %v3158, %v3449
          %v3578 = vadd.f32 %v3159, %v3450
          %v3579 = vadd.f32 %v3160, %v3451
          %v3580 = vadd.f32 %v3161, %v3452
          %v3581 = vadd.f32 %v3162, %v3453
          %v3582 = vadd.f32 %v3163, %v3454
          %v3583 = vadd.f32 %v3164, %v3455
          %v3584 = vadd.f32 %v3165, %v3456
          %v3585 = vadd.f32 %v3166, %v3457
          %v3586 = vadd.f32 %v3167, %v3458
          %v3587 = vadd.f32 %v3168, %v3459
          %v3588 = vadd.f32 %v3169, %v3460
          %v3589 = vadd.f32 %v3170, %v3461
          %v3590 = vadd.f32 %v3171, %v3462
          %v3591 = vadd.f32 %v3172, %v3463
          %v3592 = vadd.f32 %v3173, %v3464
          %v3593 = vadd.f32 %v3174, %v3465
          %v3594 = vadd.f32 %v3175, %v3466
          %v3595 = vadd.f32 %v3176, %v3467
          %v3596 = vadd.f32 %v3177, %v3468
          %v3597 = vadd.f32 %v3178, %v3469
          %v3598 = vadd.f32 %v3179, %v3470
          %v3599 = vadd.f32 %v3180, %v3471
          %v3600 = vadd.f32 %v3181, %v3472
          %v3601 = vadd.f32 %v3182, %v3473
          %v3602 = vadd.f32 %v3183, %v3474
          %v3603 = vadd.f32 %v3184, %v3475
          %v3604 = vadd.f32 %v3185, %v3476
          %v3605 = vadd.f32 %v3186, %v3477
          %v3606 = vadd.f32 %v3187, %v3478
          %v3607 = vadd.f32 %v3188, %v3479
          %v3608 = vadd.f32 %v3189, %v3480
          %v3609 = vadd.f32 %v3190, %v3481
          %v3610 = vadd.f32 %v3191, %v3482
          %v3611 = vadd.f32 %v3192, %v3483
          %v3612 = vadd.f32 %v3193, %v3484
          %v3613 = vadd.f32 %v3194, %v3485
          %v3614 = vadd.f32 %v3195, %v3486
          %v3615 = vadd.f32 %v3196, %v3487
          %v3616 = vadd.f32 %v3197, %v3488
          %v3617 = vadd.f32 %v3198, %v3489
          %v3618 = vadd.f32 %v3199, %v3490
          %v3619 = vadd.f32 %v3200, %v3491
          %v3620 = vadd.f32 %v3201, %v3492
          %v3621 = vadd.f32 %v3202, %v3493
          %v3622 = vadd.f32 %v3203, %v3494
          %v3623 = vadd.f32 %v3204, %v3495
          %v3624 = vadd.f32 %v3205, %v3496
          %v3625 = vadd.f32 %v3206, %v3497
          %v3626 = vadd.f32 %v3207, %v3498
          %v3627 = vadd.f32 %v3208, %v3499
          %v3628 = vadd.f32 %v3209, %v3500
          %v3629 = vadd.f32 %v3210, %v3501
          %v3630 = vadd.f32 %v3211, %v3502
          %v3631 = vadd.f32 %v3212, %v3503
          %v3632 = vadd.f32 %v3213, %v3504
          %v3633 = vadd.f32 %v3214, %v3505
          %v3634 = vadd.f32 %v3215, %v3506
          %v3635 = vadd.f32 %v3216, %v3507
          %v3636 = vadd.f32 %v3217, %v3508
          %v3637 = vadd.f32 %v3218, %v3509
          %v3638 = vadd.f32 %v3219, %v3510
          %s3639 = smul.u32 %s342, 4
          %s3640 = smul.addr %s3639, 4
          %s3641 = scalar_lea.vmem [#allocation2], %s3640
          %v3642 = vld [vmem:[%s3641] sm:$0xff]
          %v3643 = vld [vmem:[%s3641 + $0x8] sm:$0xff]
          %v3646 = vcombine.high %v3642, %v3642
          %v3647 = vcombine.high %v3643, %v3643
          %3650 = vmatprep.subr.mxu0 %v3542
          %3651 = vmatpush1.msra.mxu0 %v3541
          %3652 = vmatprep.subr.mxu0 %v3540
          %3653 = vmatpush1.msra.mxu0 %v3539
          %3654 = vmatprep.subr.mxu0 %v3538
          %3655 = vmatpush1.msra.mxu0 %v3537
          %3656 = vmatprep.subr.mxu0 %v3536
          %3657 = vmatpush1.msra.mxu0 %v3535
          %3658 = vmatprep.subr.mxu0 %v3534
          %3659 = vmatpush1.msra.mxu0 %v3533
          %3660 = vmatprep.subr.mxu0 %v3532
          %3661 = vmatpush1.msra.mxu0 %v3531
          %3662 = vmatprep.subr.mxu0 %v3530
          %3663 = vmatpush1.msra.mxu0 %v3529
          %3664 = vmatprep.subr.mxu0 %v3528
          %3665 = vmatpush1.msra.mxu0 %v3527
          %3666 = vmatprep.subr.mxu0 %v3526
          %3667 = vmatpush1.msra.mxu0 %v3525
          %3668 = vmatprep.subr.mxu0 %v3524
          %3669 = vmatpush1.msra.mxu0 %v3523
          %3670 = vmatprep.subr.mxu0 %v3522
          %3671 = vmatpush1.msra.mxu0 %v3521
          %3672 = vmatprep.subr.mxu0 %v3520
          %3673 = vmatpush1.msra.mxu0 %v3519
          %3674 = vmatprep.subr.mxu0 %v3518
          %3675 = vmatpush1.msra.mxu0 %v3517
          %3676 = vmatprep.subr.mxu0 %v3516
          %3677 = vmatpush1.msra.mxu0 %v3515
          %3678 = vmatprep.subr.mxu0 %v3514
          %3679 = vmatpush1.msra.mxu0 %v3513
          %3680 = vmatprep.subr.mxu0 %v3512
          %3681 = vmatpush1.msra.mxu0 %v3511
          %3682 = vmatprep.subr.mxu0 %v3574
          %3683 = vmatpush2.msra.mxu0 %v3573
          %3684 = vmatprep.subr.mxu0 %v3572
          %3685 = vmatpush2.msra.mxu0 %v3571
          %3686 = vmatprep.subr.mxu0 %v3570
          %3687 = vmatpush2.msra.mxu0 %v3569
          %3688 = vmatprep.subr.mxu0 %v3568
          %3689 = vmatpush2.msra.mxu0 %v3567
          %3690 = vmatprep.subr.mxu0 %v3566
          %3691 = vmatpush2.msra.mxu0 %v3565
          %3692 = vmatprep.subr.mxu0 %v3564
          %3693 = vmatpush2.msra.mxu0 %v3563
          %3694 = vmatprep.subr.mxu0 %v3562
          %3695 = vmatpush2.msra.mxu0 %v3561
          %3696 = vmatprep.subr.mxu0 %v3560
          %3697 = vmatpush2.msra.mxu0 %v3559
          %3698 = vmatprep.subr.mxu0 %v3558
          %3699 = vmatpush2.msra.mxu0 %v3557
          %3700 = vmatprep.subr.mxu0 %v3556
          %3701 = vmatpush2.msra.mxu0 %v3555
          %3702 = vmatprep.subr.mxu0 %v3554
          %3703 = vmatpush2.msra.mxu0 %v3553
          %3704 = vmatprep.subr.mxu0 %v3552
          %3705 = vmatpush2.msra.mxu0 %v3551
          %3706 = vmatprep.subr.mxu0 %v3550
          %3707 = vmatpush2.msra.mxu0 %v3549
          %3708 = vmatprep.subr.mxu0 %v3548
          %3709 = vmatpush2.msra.mxu0 %v3547
          %3710 = vmatprep.subr.mxu0 %v3546
          %3711 = vmatpush2.msra.mxu0 %v3545
          %3712 = vmatprep.subr.mxu0 %v3544
          %3713 = vmatpush2.msra.mxu0 %v3543
          %3714 = vmatprep.mubr.f32.mxu0 %v3646
          %3715 = vmatmul.mubr.f32.gmra.mxu0 %v3642
          %v3716 = vpop.f32.mrf.mxu0
          %v3717 = vadd.f32 0.0, %v3716
          %v3718 = vpop.f32.mrf.mxu0
          %v3719 = vadd.f32 0.0, %v3718
          %3720 = vdwg.mxu0
          %3721 = vmatprep.subr.mxu0 %v3606
          %3722 = vmatpush1.msra.mxu0 %v3605
          %3723 = vmatprep.subr.mxu0 %v3604
          %3724 = vmatpush1.msra.mxu0 %v3603
          %3725 = vmatprep.subr.mxu0 %v3602
          %3726 = vmatpush1.msra.mxu0 %v3601
          %3727 = vmatprep.subr.mxu0 %v3600
          %3728 = vmatpush1.msra.mxu0 %v3599
          %3729 = vmatprep.subr.mxu0 %v3598
          %3730 = vmatpush1.msra.mxu0 %v3597
          %3731 = vmatprep.subr.mxu0 %v3596
          %3732 = vmatpush1.msra.mxu0 %v3595
          %3733 = vmatprep.subr.mxu0 %v3594
          %3734 = vmatpush1.msra.mxu0 %v3593
          %3735 = vmatprep.subr.mxu0 %v3592
          %3736 = vmatpush1.msra.mxu0 %v3591
          %3737 = vmatprep.subr.mxu0 %v3590
          %3738 = vmatpush1.msra.mxu0 %v3589
          %3739 = vmatprep.subr.mxu0 %v3588
          %3740 = vmatpush1.msra.mxu0 %v3587
          %3741 = vmatprep.subr.mxu0 %v3586
          %3742 = vmatpush1.msra.mxu0 %v3585
          %3743 = vmatprep.subr.mxu0 %v3584
          %3744 = vmatpush1.msra.mxu0 %v3583
          %3745 = vmatprep.subr.mxu0 %v3582
          %3746 = vmatpush1.msra.mxu0 %v3581
          %3747 = vmatprep.subr.mxu0 %v3580
          %3748 = vmatpush1.msra.mxu0 %v3579
          %3749 = vmatprep.subr.mxu0 %v3578
          %3750 = vmatpush1.msra.mxu0 %v3577
          %3751 = vmatprep.subr.mxu0 %v3576
          %3752 = vmatpush1.msra.mxu0 %v3575
          %3753 = vmatprep.subr.mxu0 %v3638
          %3754 = vmatpush2.msra.mxu0 %v3637
          %3755 = vmatprep.subr.mxu0 %v3636
          %3756 = vmatpush2.msra.mxu0 %v3635
          %3757 = vmatprep.subr.mxu0 %v3634
          %3758 = vmatpush2.msra.mxu0 %v3633
          %3759 = vmatprep.subr.mxu0 %v3632
          %3760 = vmatpush2.msra.mxu0 %v3631
          %3761 = vmatprep.subr.mxu0 %v3630
          %3762 = vmatpush2.msra.mxu0 %v3629
          %3763 = vmatprep.subr.mxu0 %v3628
          %3764 = vmatpush2.msra.mxu0 %v3627
          %3765 = vmatprep.subr.mxu0 %v3626
          %3766 = vmatpush2.msra.mxu0 %v3625
          %3767 = vmatprep.subr.mxu0 %v3624
          %3768 = vmatpush2.msra.mxu0 %v3623
          %3769 = vmatprep.subr.mxu0 %v3622
          %3770 = vmatpush2.msra.mxu0 %v3621
          %3771 = vmatprep.subr.mxu0 %v3620
          %3772 = vmatpush2.msra.mxu0 %v3619
          %3773 = vmatprep.subr.mxu0 %v3618
          %3774 = vmatpush2.msra.mxu0 %v3617
          %3775 = vmatprep.subr.mxu0 %v3616
          %3776 = vmatpush2.msra.mxu0 %v3615
          %3777 = vmatprep.subr.mxu0 %v3614
          %3778 = vmatpush2.msra.mxu0 %v3613
          %3779 = vmatprep.subr.mxu0 %v3612
          %3780 = vmatpush2.msra.mxu0 %v3611
          %3781 = vmatprep.subr.mxu0 %v3610
          %3782 = vmatpush2.msra.mxu0 %v3609
          %3783 = vmatprep.subr.mxu0 %v3608
          %3784 = vmatpush2.msra.mxu0 %v3607
          %3785 = vmatprep.mubr.f32.mxu0 %v3647
          %3786 = vmatmul.mubr.f32.gmra.mxu0 %v3643
          %v3787 = vpop.f32.mrf.mxu0
          %v3788 = vadd.f32 %v3717, %v3787
          %v3789 = vpop.f32.mrf.mxu0
          %v3790 = vadd.f32 %v3719, %v3789
          %3791 = vdwg.mxu0
          %v3792 = vadd.f32 %v347, %v3788
          %v3793 = vadd.f32 %v348, %v3790
        $region67: #{tpu_custom_call.1} parent=23 // loop_footer
          %s346 = sadd.s32 1, %s342
        $region68: #{tpu_custom_call.1} parent=23 // loop_footer_branch
          %341 = sbr.rel target = $region64
        $region69: #{tpu_custom_call.1} parent=23 // loop_exit
          _
        %v3796 = vcombine.low %v347, %v348
        %3798 = vst [vmem:[%s135] sm:$0xff] %v3796
        %s3799 = sand.u32 %s66, 1
        %s3800 = scalar_lea.sflag [#allocation5], %s3799
        %s3801 = sand.u32 %s66, 1
        %s3802 = smul.addr %s3801, 8
        %s3803 = scalar_lea.vmem [#allocation4], %s3802
        // Predicated region
        $region70: #{tpu_custom_call.1} parent=23 // pred_check
          %p3804 = pneg %p76
        $region71: #{tpu_custom_call.1} parent=23 // pred_check_branch
          %3806 = sbr.rel (%p3804) target = $region73
        $region72: #{tpu_custom_call.1} parent=23 // pred_region
          %s3807 = smul.u32 2, %s21
          %s3809 = ssub.s32 128, 128
          %3810 = vsyncadd %s3800, %s3809
          %s3811 = smul.addr %s20, 16
          %s3812 = sadd.s32 %s3807, %s3811
          %s3813 = smul.addr %s3812, 64
          %s3814 = scalar_lea.hbm %s2, %s3813
          %s3816 = sshll.u32 %s3803, 4
          %s3817 = int_to_ptr.vmem [resolvable:$true] %s3816
          %3819 = dma.vmem_to_hbm [thread:$0]  %s3817, 128, %s3814, %s3800
        $region73: #{tpu_custom_call.1} parent=23 // pred_fallthru
          _
      $region24: #{tpu_custom_call.1} parent=5 // pred_fallthru
        _
      %p3820 = scmp.le.s32.totalorder 2, %s11
      // Predicated region
      $region74: #{tpu_custom_call.1} parent=5 // pred_check
        %p3821 = pneg %p3820
      $region75: #{tpu_custom_call.1} parent=5 // pred_check_branch
        %3823 = sbr.rel (%p3821) target = $region77
      $region76: #{tpu_custom_call.1} parent=5 // pred_region
        %s3824 = ssub.s32 %s11, 2
        // Predicated region
        $region78: #{tpu_custom_call.1} parent=76 // pred_check
          %p3825 = pneg %p82
        $region79: #{tpu_custom_call.1} parent=76 // pred_check_branch
          %3827 = sbr.rel (%p3825) target = $region81
        $region80: #{tpu_custom_call.1} parent=76 // pred_region
          %s3828 = sand.u32 %s67, 1
          %s3829 = scalar_lea.sflag [#allocation5], %s3828
          %s3830 = sand.u32 %s67, 1
          %s3831 = smul.addr %s3830, 8
          %s3832 = scalar_lea.vmem [#allocation4], %s3831
          %3833 = dma.done %s3829, 128
        $region81: #{tpu_custom_call.1} parent=76 // pred_fallthru
          _
      $region77: #{tpu_custom_call.1} parent=5 // pred_fallthru
        _
    $region6: #{tpu_custom_call.1} parent=1 // loop_footer
      %s15 = sadd.s32 1, %s11
    $region7: #{tpu_custom_call.1} parent=1 // loop_footer_branch
      %10 = sbr.rel target = $region3
    $region8: #{tpu_custom_call.1} parent=1 // loop_exit
      _
    %3834 = vsyncpa [#allocation5], 1
    %s3835 = scalar_lea.sflag [#allocation5], 1
    %3836 = vsyncpa %s3835, 1
  %3837 = vsyncmov [#allocation3]
  %s3838 = vpop.sfrf %3837
  %p3839 = scmp.eq.s32.totalorder %s3838, 0
  %p3840 = pneg %p3839
  %3842 = shalt.err (%p3840)

</llo_original>
